<compile_context>
chip_gen: v5e
topology: v5e:2x2
jax: 0.10.0
libtpu: 0.0.40
codegen_flags: <defaults>
</compile_context>

<pallas_src>
import numpy as np
import jax
import jax.numpy as jnp
from jax import lax
from jax.experimental import pallas as pl
from jax.experimental.pallas import tpu as pltpu


HIDDEN = 128  # LSTM hidden size (fixed by the module)


# ----------------------------- Pallas kernel --------------------------------

def _conv_as_matmul(x, r_ref, g_ref, b_ref):
  """One stride-2 VALID 3x3 conv + ReLU as 3 pairs of dense MXU matmuls.

  x:      (B*H, W*Cin)        lane-dense activation
  r_ref:  (3, B*ho, B*H)      one-hot row selection per kernel row dh
  g_ref:  (3, W*Cin, wo*Cout) block-Toeplitz weights per kernel row dh
  b_ref:  (1, wo*Cout)        bias tiled across output columns
  returns (B*ho, wo*Cout)
  """
  acc = None
  for dh in range(3):
    rows = jnp.dot(r_ref[dh], x, preferred_element_type=jnp.float32)
    t = jnp.dot(rows, g_ref[dh], preferred_element_type=jnp.float32)
    acc = t if acc is None else acc + t
  return jnp.maximum(acc + b_ref[...], 0.0)


def refine_kernel(
    x_ref, state_ref, h_ref, c_ref,
    r1_ref, g1_ref, cb1_ref,
    r2_ref, g2_ref, cb2_ref,
    r3_ref, g3_ref, cb3_ref,
    r4_ref, g4_ref, cb4_ref,
    wm1_ref, bm1_ref, wm2_ref, bm2_ref,
    wihs_ref, wihc_ref, whh_ref, blstm_ref,
    wout_ref, bout_ref,
    out_ref, hout_ref, cout_ref):
  f32 = jnp.float32

  # --- Encoder convs (Conv2d(k=3, stride=2) + ReLU, x4) ---------------------
  x = x_ref[...]                                   # (B*32, 32*Cin)
  x = _conv_as_matmul(x, r1_ref, g1_ref, cb1_ref)  # (B*15, 15*32)
  x = _conv_as_matmul(x, r2_ref, g2_ref, cb2_ref)  # (B*7,  7*32)
  x = _conv_as_matmul(x, r3_ref, g3_ref, cb3_ref)  # (B*3,  3*64)
  x = _conv_as_matmul(x, r4_ref, g4_ref, cb4_ref)  # (B*1,  1*64) == (B, 64)

  # --- Encoder MLP: Linear(64,256)+ReLU, Linear(256,128) -------------------
  x = jnp.maximum(
      jnp.dot(x, wm1_ref[...], preferred_element_type=f32) + bm1_ref[...], 0.0)
  codes = jnp.dot(x, wm2_ref[...], preferred_element_type=f32) + bm2_ref[...]

  # --- LSTMCell -------------------------------------------------------------
  # lstm_input = concat([state, conv_codes]); concat folded into two matmuls.
  gates = (jnp.dot(state_ref[...], wihs_ref[...], preferred_element_type=f32)
           + jnp.dot(codes, wihc_ref[...], preferred_element_type=f32)
           + jnp.dot(h_ref[...], whh_ref[...], preferred_element_type=f32)
           + blstm_ref[...])                       # (B, 4*HIDDEN), order i,f,g,o

  def sigmoid(v):
    return 1.0 / (1.0 + jnp.exp(-v))

  i = sigmoid(gates[:, 0 * HIDDEN:1 * HIDDEN])
  f = sigmoid(gates[:, 1 * HIDDEN:2 * HIDDEN])
  g = jnp.tanh(gates[:, 2 * HIDDEN:3 * HIDDEN])
  o = sigmoid(gates[:, 3 * HIDDEN:4 * HIDDEN])
  c_new = f * c_ref[...] + i * g
  h_new = o * jnp.tanh(c_new)

  # --- fc_out ---------------------------------------------------------------
  out_ref[...] = (jnp.dot(h_new, wout_ref[...], preferred_element_type=f32)
                  + bout_ref[...])
  hout_ref[...] = h_new
  cout_ref[...] = c_new


# ------------------------------ wrapper --------------------------------------

def refine_net_lstm(img, state, h, c, params):
  """img: (B, Cin, H, W); state: (B, 4*z); h, c: (B, 128) -> (fc_out, h', c')."""
  b, cin, hi, wi = img.shape
  z2 = params["wout"].shape[-1]  # 2 * z_dim

  # lane-dense NHWC layout folded over batch: (B*H, W*Cin)  (layout plumbing)
  x0 = jnp.transpose(img, (0, 2, 3, 1)).reshape(b * hi, wi * cin)

  inputs = [
      x0, state, h, c,
      params["R1"], params["G1"], params["cb1"],
      params["R2"], params["G2"], params["cb2"],
      params["R3"], params["G3"], params["cb3"],
      params["R4"], params["G4"], params["cb4"],
      params["wm1"], params["bm1"], params["wm2"], params["bm2"],
      params["wih_s"], params["wih_c"], params["whh"], params["b_lstm"],
      params["wout"], params["bout"],
  ]

  def full_spec(a):
    return pl.BlockSpec(a.shape, lambda i, _nd=a.ndim: (0,) * _nd)

  out_shapes = (
      jax.ShapeDtypeStruct((b, z2), jnp.float32),
      jax.ShapeDtypeStruct((b, HIDDEN), jnp.float32),
      jax.ShapeDtypeStruct((b, HIDDEN), jnp.float32),
  )
  out_specs = [
      pl.BlockSpec((b, z2), lambda i: (0, 0)),
      pl.BlockSpec((b, HIDDEN), lambda i: (0, 0)),
      pl.BlockSpec((b, HIDDEN), lambda i: (0, 0)),
  ]

  out, h_new, c_new = pl.pallas_call(
      refine_kernel,
      out_shape=out_shapes,
      grid_spec=pltpu.PrefetchScalarGridSpec(
          num_scalar_prefetch=0,
          grid=(1,),
          in_specs=[full_spec(a) for a in inputs],
          out_specs=out_specs,
      ),
      compiler_params=pltpu.CompilerParams(
          dimension_semantics=("arbitrary",)),
  )(*inputs)
  return out, h_new, c_new


# ----------------------- deterministic parameter init ------------------------

def _conv_out(n):
  return (n - 3) // 2 + 1


def _selection_matrices(batch, h_in, h_out):
  """R[dh]: (B*h_out, B*h_in) one-hot, row b*h_out+i selects input row b*h_in+2i+dh."""
  r = np.zeros((3, batch * h_out, batch * h_in), np.float32)
  for dh in range(3):
    for bb in range(batch):
      for i in range(h_out):
        r[dh, bb * h_out + i, bb * h_in + 2 * i + dh] = 1.0
  return jnp.asarray(r)


def _toeplitz_weights(w_hwio, w_in, w_out):
  """G[dh]: (w_in*Cin, w_out*Cout); G[dh][(2j+dw)*Cin+c, j*Cout+o] = w[dh,dw,c,o]."""
  w = np.asarray(w_hwio)
  _, _, cin, cout = w.shape
  g = np.zeros((3, w_in * cin, w_out * cout), np.float32)
  for dh in range(3):
    for dw in range(3):
      for j in range(w_out):
        col = 2 * j + dw
        g[dh, col * cin:(col + 1) * cin, j * cout:(j + 1) * cout] = w[dh, dw]
  return jnp.asarray(g)


def init_params(key, channels_in, z_dim, image_size, batch):
  hgt, wdt = image_size
  f32 = jnp.float32
  keys = iter(jax.random.split(key, 32))

  def uniform(shape, bound):
    return jax.random.uniform(next(keys), shape, f32, -float(bound), float(bound))

  params = {}

  # ----- Encoder convs (weights stored HWIO) -----
  conv_cfg = [(channels_in, 32), (32, 32), (32, 64), (64, 64)]
  h, w = hgt, wdt
  raw_convs = []
  for idx, (cin, cout) in enumerate(conv_cfg, start=1):
    bound = 1.0 / np.sqrt(3 * 3 * cin)
    cw = uniform((3, 3, cin, cout), bound)
    cb = uniform((cout,), bound)
    raw_convs.append((cw, cb))
    ho, wo = _conv_out(h), _conv_out(w)
    params[f"R{idx}"] = _selection_matrices(batch, h, ho)
    params[f"G{idx}"] = _toeplitz_weights(cw, w, wo)
    params[f"cb{idx}"] = jnp.tile(cb, (wo,)).reshape(1, wo * cout)
    h, w = ho, wo
  params["_raw_convs"] = raw_convs
  flat_dim = 64 * h * w  # final spatial is 1x1 for 32x32 input -> 64

  # ----- Encoder MLP -----
  b1 = 1.0 / np.sqrt(flat_dim)
  params["wm1"] = uniform((flat_dim, 256), b1)
  params["bm1"] = uniform((1, 256), b1)
  b2 = 1.0 / np.sqrt(256)
  params["wm2"] = uniform((256, HIDDEN), b2)
  params["bm2"] = uniform((1, HIDDEN), b2)

  # ----- LSTMCell: input = [state(4*z_dim) ; conv_codes(128)], gates i,f,g,o -----
  in_lstm = HIDDEN + 4 * z_dim
  bl = 1.0 / np.sqrt(HIDDEN)
  w_ih = uniform((in_lstm, 4 * HIDDEN), bl)        # transposed layout (in, 4H)
  params["_raw_wih"] = w_ih
  params["wih_s"] = w_ih[:4 * z_dim]               # state rows
  params["wih_c"] = w_ih[4 * z_dim:]               # conv_codes rows
  params["whh"] = uniform((HIDDEN, 4 * HIDDEN), bl)
  params["b_lstm"] = (uniform((1, 4 * HIDDEN), bl)
                      + uniform((1, 4 * HIDDEN), bl))  # b_ih + b_hh

  # ----- fc_out: Linear(128, 2*z_dim) -----
  bo = 1.0 / np.sqrt(HIDDEN)
  params["wout"] = uniform((HIDDEN, 2 * z_dim), bo)
  params["bout"] = uniform((1, 2 * z_dim), bo)
  return params


# ----------------------------- pure-JAX reference ----------------------------

def reference(img, state, h, c, params):
  x = jnp.transpose(img, (0, 2, 3, 1))  # NHWC
  dn = ("NHWC", "HWIO", "NHWC")
  for cw, cb in params["_raw_convs"]:
    x = lax.conv_general_dilated(x, cw, (2, 2), "VALID", dimension_numbers=dn)
    x = jnp.maximum(x + cb.reshape(1, 1, 1, -1), 0.0)
  flat = x.reshape(x.shape[0], -1)  # final spatial is 1x1 -> order-independent
  y = jnp.maximum(flat @ params["wm1"] + params["bm1"], 0.0)
  codes = y @ params["wm2"] + params["bm2"]

  lstm_in = jnp.concatenate([state, codes], axis=1)
  gates = lstm_in @ params["_raw_wih"] + h @ params["whh"] + params["b_lstm"]
  i = jax.nn.sigmoid(gates[:, 0 * HIDDEN:1 * HIDDEN])
  f = jax.nn.sigmoid(gates[:, 1 * HIDDEN:2 * HIDDEN])
  g = jnp.tanh(gates[:, 2 * HIDDEN:3 * HIDDEN])
  o = jax.nn.sigmoid(gates[:, 3 * HIDDEN:4 * HIDDEN])
  c_new = f * c + i * g
  h_new = o * jnp.tanh(c_new)
  out = h_new @ params["wout"] + params["bout"]
  return out, h_new, c_new


# --------------------------------- main ---------------------------------------

if __name__ == "__main__":
  BATCH = 2
  CHANNELS_IN = 4
  Z_DIM = 4
  IMAGE_SIZE = (32, 32)  # smallest convenient size surviving 4 stride-2 convs

  key = jax.random.PRNGKey(0)
  kp, ki, ks, kh, kc = jax.random.split(key, 5)
  params = init_params(kp, CHANNELS_IN, Z_DIM, IMAGE_SIZE, BATCH)

  img = jax.random.normal(ki, (BATCH, CHANNELS_IN) + IMAGE_SIZE, jnp.float32)
  state = jax.random.normal(ks, (BATCH, 4 * Z_DIM), jnp.float32)
  h = jax.random.normal(kh, (BATCH, HIDDEN), jnp.float32)
  c = jax.random.normal(kc, (BATCH, HIDDEN), jnp.float32)

  out, h_new, c_new = jax.block_until_ready(
      refine_net_lstm(img, state, h, c, params))
  ref_out, ref_h, ref_c = jax.block_until_ready(
      reference(img, state, h, c, params))

  assert out.shape == (BATCH, 2 * Z_DIM), out.shape
  assert h_new.shape == (BATCH, HIDDEN) and c_new.shape == (BATCH, HIDDEN)
  for got, want in ((out, ref_out), (h_new, ref_h), (c_new, ref_c)):
    assert jnp.allclose(got, want, rtol=1e-3, atol=1e-3), (
        float(jnp.max(jnp.abs(got - want))))

  print("KERNEL_OK")
</pallas_src>

<mosaic_0001>
module attributes {stable_mosaic.version = 11 : i64} {
  func.func @refine_kernel(%arg0: i32, %arg1: memref<64x128xf32, #tpu.memory_space<vmem>>, %arg2: memref<2x16xf32, #tpu.memory_space<vmem>>, %arg3: memref<2x128xf32, #tpu.memory_space<vmem>>, %arg4: memref<2x128xf32, #tpu.memory_space<vmem>>, %arg5: memref<3x30x64xf32, #tpu.memory_space<vmem>>, %arg6: memref<3x128x480xf32, #tpu.memory_space<vmem>>, %arg7: memref<1x480xf32, #tpu.memory_space<vmem>>, %arg8: memref<3x14x30xf32, #tpu.memory_space<vmem>>, %arg9: memref<3x480x224xf32, #tpu.memory_space<vmem>>, %arg10: memref<1x224xf32, #tpu.memory_space<vmem>>, %arg11: memref<3x6x14xf32, #tpu.memory_space<vmem>>, %arg12: memref<3x224x192xf32, #tpu.memory_space<vmem>>, %arg13: memref<1x192xf32, #tpu.memory_space<vmem>>, %arg14: memref<3x2x6xf32, #tpu.memory_space<vmem>>, %arg15: memref<3x192x64xf32, #tpu.memory_space<vmem>>, %arg16: memref<1x64xf32, #tpu.memory_space<vmem>>, %arg17: memref<64x256xf32, #tpu.memory_space<vmem>>, %arg18: memref<1x256xf32, #tpu.memory_space<vmem>>, %arg19: memref<256x128xf32, #tpu.memory_space<vmem>>, %arg20: memref<1x128xf32, #tpu.memory_space<vmem>>, %arg21: memref<16x512xf32, #tpu.memory_space<vmem>>, %arg22: memref<128x512xf32, #tpu.memory_space<vmem>>, %arg23: memref<128x512xf32, #tpu.memory_space<vmem>>, %arg24: memref<1x512xf32, #tpu.memory_space<vmem>>, %arg25: memref<128x8xf32, #tpu.memory_space<vmem>>, %arg26: memref<1x8xf32, #tpu.memory_space<vmem>>, %arg27: memref<2x8xf32, #tpu.memory_space<vmem>>, %arg28: memref<2x128xf32, #tpu.memory_space<vmem>>, %arg29: memref<2x128xf32, #tpu.memory_space<vmem>>) attributes {dimension_semantics = [#tpu.dimension_semantics<arbitrary>], iteration_bounds = array<i64: 1>, scalar_prefetch = 0 : i64, scratch_operands = 0 : i64, tpu.core_type = #tpu.core_type<tc>, window_params = [{pipeline_mode = #tpu.pipeline_mode<synchronous>, transform_indices = @transform_0, window_bounds = array<i64: 64, 128>}, {pipeline_mode = #tpu.pipeline_mode<synchronous>, transform_indices = @transform_1, window_bounds = array<i64: 2, 16>}, {pipeline_mode = #tpu.pipeline_mode<synchronous>, transform_indices = @transform_2, window_bounds = array<i64: 2, 128>}, {pipeline_mode = #tpu.pipeline_mode<synchronous>, transform_indices = @transform_3, window_bounds = array<i64: 2, 128>}, {pipeline_mode = #tpu.pipeline_mode<synchronous>, transform_indices = @transform_4, window_bounds = array<i64: 3, 30, 64>}, {pipeline_mode = #tpu.pipeline_mode<synchronous>, transform_indices = @transform_5, window_bounds = array<i64: 3, 128, 480>}, {pipeline_mode = #tpu.pipeline_mode<synchronous>, transform_indices = @transform_6, window_bounds = array<i64: 1, 480>}, {pipeline_mode = #tpu.pipeline_mode<synchronous>, transform_indices = @transform_7, window_bounds = array<i64: 3, 14, 30>}, {pipeline_mode = #tpu.pipeline_mode<synchronous>, transform_indices = @transform_8, window_bounds = array<i64: 3, 480, 224>}, {pipeline_mode = #tpu.pipeline_mode<synchronous>, transform_indices = @transform_9, window_bounds = array<i64: 1, 224>}, {pipeline_mode = #tpu.pipeline_mode<synchronous>, transform_indices = @transform_10, window_bounds = array<i64: 3, 6, 14>}, {pipeline_mode = #tpu.pipeline_mode<synchronous>, transform_indices = @transform_11, window_bounds = array<i64: 3, 224, 192>}, {pipeline_mode = #tpu.pipeline_mode<synchronous>, transform_indices = @transform_12, window_bounds = array<i64: 1, 192>}, {pipeline_mode = #tpu.pipeline_mode<synchronous>, transform_indices = @transform_13, window_bounds = array<i64: 3, 2, 6>}, {pipeline_mode = #tpu.pipeline_mode<synchronous>, transform_indices = @transform_14, window_bounds = array<i64: 3, 192, 64>}, {pipeline_mode = #tpu.pipeline_mode<synchronous>, transform_indices = @transform_15, window_bounds = array<i64: 1, 64>}, {pipeline_mode = #tpu.pipeline_mode<synchronous>, transform_indices = @transform_16, window_bounds = array<i64: 64, 256>}, {pipeline_mode = #tpu.pipeline_mode<synchronous>, transform_indices = @transform_17, window_bounds = array<i64: 1, 256>}, {pipeline_mode = #tpu.pipeline_mode<synchronous>, transform_indices = @transform_18, window_bounds = array<i64: 256, 128>}, {pipeline_mode = #tpu.pipeline_mode<synchronous>, transform_indices = @transform_19, window_bounds = array<i64: 1, 128>}, {pipeline_mode = #tpu.pipeline_mode<synchronous>, transform_indices = @transform_20, window_bounds = array<i64: 16, 512>}, {pipeline_mode = #tpu.pipeline_mode<synchronous>, transform_indices = @transform_21, window_bounds = array<i64: 128, 512>}, {pipeline_mode = #tpu.pipeline_mode<synchronous>, transform_indices = @transform_22, window_bounds = array<i64: 128, 512>}, {pipeline_mode = #tpu.pipeline_mode<synchronous>, transform_indices = @transform_23, window_bounds = array<i64: 1, 512>}, {pipeline_mode = #tpu.pipeline_mode<synchronous>, transform_indices = @transform_24, window_bounds = array<i64: 128, 8>}, {pipeline_mode = #tpu.pipeline_mode<synchronous>, transform_indices = @transform_25, window_bounds = array<i64: 1, 8>}, {pipeline_mode = #tpu.pipeline_mode<synchronous>, transform_indices = @transform_26, window_bounds = array<i64: 2, 8>}, {pipeline_mode = #tpu.pipeline_mode<synchronous>, transform_indices = @transform_27, window_bounds = array<i64: 2, 128>}, {pipeline_mode = #tpu.pipeline_mode<synchronous>, transform_indices = @transform_28, window_bounds = array<i64: 2, 128>}]} {
    %c0 = arith.constant 0 : index
    %c0_0 = arith.constant 0 : index
    %0 = vector.load %arg1[%c0, %c0_0] : memref<64x128xf32, #tpu.memory_space<vmem>>, vector<64x128xf32>
    %c0_1 = arith.constant 0 : index
    %c0_2 = arith.constant 0 : index
    %c0_3 = arith.constant 0 : index
    %1 = vector.load %arg5[%c0_1, %c0_2, %c0_3] : memref<3x30x64xf32, #tpu.memory_space<vmem>>, vector<1x30x64xf32>
    %2 = vector.shape_cast %1 : vector<1x30x64xf32> to vector<30x64xf32>
    %cst = arith.constant dense<0.000000e+00> : vector<30x128xf32>
    %3 = tpu.matmul %2, %0, %cst {dimension_numbers = #tpu.dot_dimension_numbers<[1], [0], [0], [1], [0, 0, 1, 1], [], []>} : vector<30x64xf32>, vector<64x128xf32>, vector<30x128xf32> -> vector<30x128xf32>
    %c0_4 = arith.constant 0 : index
    %c0_5 = arith.constant 0 : index
    %c0_6 = arith.constant 0 : index
    %4 = vector.load %arg6[%c0_4, %c0_5, %c0_6] : memref<3x128x480xf32, #tpu.memory_space<vmem>>, vector<1x128x480xf32>
    %5 = vector.shape_cast %4 : vector<1x128x480xf32> to vector<128x480xf32>
    %cst_7 = arith.constant dense<0.000000e+00> : vector<30x480xf32>
    %6 = tpu.matmul %3, %5, %cst_7 {dimension_numbers = #tpu.dot_dimension_numbers<[1], [0], [0], [1], [0, 0, 1, 1], [], []>} : vector<30x128xf32>, vector<128x480xf32>, vector<30x480xf32> -> vector<30x480xf32>
    %c1 = arith.constant 1 : index
    %c0_8 = arith.constant 0 : index
    %c0_9 = arith.constant 0 : index
    %7 = vector.load %arg5[%c1, %c0_8, %c0_9] : memref<3x30x64xf32, #tpu.memory_space<vmem>>, vector<1x30x64xf32>
    %8 = vector.shape_cast %7 : vector<1x30x64xf32> to vector<30x64xf32>
    %cst_10 = arith.constant dense<0.000000e+00> : vector<30x128xf32>
    %9 = tpu.matmul %8, %0, %cst_10 {dimension_numbers = #tpu.dot_dimension_numbers<[1], [0], [0], [1], [0, 0, 1, 1], [], []>} : vector<30x64xf32>, vector<64x128xf32>, vector<30x128xf32> -> vector<30x128xf32>
    %c1_11 = arith.constant 1 : index
    %c0_12 = arith.constant 0 : index
    %c0_13 = arith.constant 0 : index
    %10 = vector.load %arg6[%c1_11, %c0_12, %c0_13] : memref<3x128x480xf32, #tpu.memory_space<vmem>>, vector<1x128x480xf32>
    %11 = vector.shape_cast %10 : vector<1x128x480xf32> to vector<128x480xf32>
    %cst_14 = arith.constant dense<0.000000e+00> : vector<30x480xf32>
    %12 = tpu.matmul %9, %11, %cst_14 {dimension_numbers = #tpu.dot_dimension_numbers<[1], [0], [0], [1], [0, 0, 1, 1], [], []>} : vector<30x128xf32>, vector<128x480xf32>, vector<30x480xf32> -> vector<30x480xf32>
    %13 = arith.addf %6, %12 : vector<30x480xf32>
    %c2 = arith.constant 2 : index
    %c0_15 = arith.constant 0 : index
    %c0_16 = arith.constant 0 : index
    %14 = vector.load %arg5[%c2, %c0_15, %c0_16] : memref<3x30x64xf32, #tpu.memory_space<vmem>>, vector<1x30x64xf32>
    %15 = vector.shape_cast %14 : vector<1x30x64xf32> to vector<30x64xf32>
    %cst_17 = arith.constant dense<0.000000e+00> : vector<30x128xf32>
    %16 = tpu.matmul %15, %0, %cst_17 {dimension_numbers = #tpu.dot_dimension_numbers<[1], [0], [0], [1], [0, 0, 1, 1], [], []>} : vector<30x64xf32>, vector<64x128xf32>, vector<30x128xf32> -> vector<30x128xf32>
    %c2_18 = arith.constant 2 : index
    %c0_19 = arith.constant 0 : index
    %c0_20 = arith.constant 0 : index
    %17 = vector.load %arg6[%c2_18, %c0_19, %c0_20] : memref<3x128x480xf32, #tpu.memory_space<vmem>>, vector<1x128x480xf32>
    %18 = vector.shape_cast %17 : vector<1x128x480xf32> to vector<128x480xf32>
    %cst_21 = arith.constant dense<0.000000e+00> : vector<30x480xf32>
    %19 = tpu.matmul %16, %18, %cst_21 {dimension_numbers = #tpu.dot_dimension_numbers<[1], [0], [0], [1], [0, 0, 1, 1], [], []>} : vector<30x128xf32>, vector<128x480xf32>, vector<30x480xf32> -> vector<30x480xf32>
    %20 = arith.addf %13, %19 : vector<30x480xf32>
    %c0_22 = arith.constant 0 : index
    %c0_23 = arith.constant 0 : index
    %21 = vector.load %arg7[%c0_22, %c0_23] : memref<1x480xf32, #tpu.memory_space<vmem>>, vector<1x480xf32>
    %22 = vector.broadcast %21 : vector<1x480xf32> to vector<30x480xf32>
    %23 = arith.addf %20, %22 : vector<30x480xf32>
    %cst_24 = arith.constant 0.000000e+00 : f32
    %24 = vector.broadcast %cst_24 : f32 to vector<30x480xf32>
    %25 = arith.maximumf %23, %24 : vector<30x480xf32>
    %c0_25 = arith.constant 0 : index
    %c0_26 = arith.constant 0 : index
    %c0_27 = arith.constant 0 : index
    %26 = vector.load %arg8[%c0_25, %c0_26, %c0_27] : memref<3x14x30xf32, #tpu.memory_space<vmem>>, vector<1x14x30xf32>
    %27 = vector.shape_cast %26 : vector<1x14x30xf32> to vector<14x30xf32>
    %cst_28 = arith.constant dense<0.000000e+00> : vector<14x480xf32>
    %28 = tpu.matmul %27, %25, %cst_28 {dimension_numbers = #tpu.dot_dimension_numbers<[1], [0], [0], [1], [0, 0, 1, 1], [], []>} : vector<14x30xf32>, vector<30x480xf32>, vector<14x480xf32> -> vector<14x480xf32>
    %c0_29 = arith.constant 0 : index
    %c0_30 = arith.constant 0 : index
    %c0_31 = arith.constant 0 : index
    %29 = vector.load %arg9[%c0_29, %c0_30, %c0_31] : memref<3x480x224xf32, #tpu.memory_space<vmem>>, vector<1x480x224xf32>
    %30 = vector.shape_cast %29 : vector<1x480x224xf32> to vector<480x224xf32>
    %cst_32 = arith.constant dense<0.000000e+00> : vector<14x224xf32>
    %31 = tpu.matmul %28, %30, %cst_32 {dimension_numbers = #tpu.dot_dimension_numbers<[1], [0], [0], [1], [0, 0, 1, 1], [], []>} : vector<14x480xf32>, vector<480x224xf32>, vector<14x224xf32> -> vector<14x224xf32>
    %c1_33 = arith.constant 1 : index
    %c0_34 = arith.constant 0 : index
    %c0_35 = arith.constant 0 : index
    %32 = vector.load %arg8[%c1_33, %c0_34, %c0_35] : memref<3x14x30xf32, #tpu.memory_space<vmem>>, vector<1x14x30xf32>
    %33 = vector.shape_cast %32 : vector<1x14x30xf32> to vector<14x30xf32>
    %cst_36 = arith.constant dense<0.000000e+00> : vector<14x480xf32>
    %34 = tpu.matmul %33, %25, %cst_36 {dimension_numbers = #tpu.dot_dimension_numbers<[1], [0], [0], [1], [0, 0, 1, 1], [], []>} : vector<14x30xf32>, vector<30x480xf32>, vector<14x480xf32> -> vector<14x480xf32>
    %c1_37 = arith.constant 1 : index
    %c0_38 = arith.constant 0 : index
    %c0_39 = arith.constant 0 : index
    %35 = vector.load %arg9[%c1_37, %c0_38, %c0_39] : memref<3x480x224xf32, #tpu.memory_space<vmem>>, vector<1x480x224xf32>
    %36 = vector.shape_cast %35 : vector<1x480x224xf32> to vector<480x224xf32>
    %cst_40 = arith.constant dense<0.000000e+00> : vector<14x224xf32>
    %37 = tpu.matmul %34, %36, %cst_40 {dimension_numbers = #tpu.dot_dimension_numbers<[1], [0], [0], [1], [0, 0, 1, 1], [], []>} : vector<14x480xf32>, vector<480x224xf32>, vector<14x224xf32> -> vector<14x224xf32>
    %38 = arith.addf %31, %37 : vector<14x224xf32>
    %c2_41 = arith.constant 2 : index
    %c0_42 = arith.constant 0 : index
    %c0_43 = arith.constant 0 : index
    %39 = vector.load %arg8[%c2_41, %c0_42, %c0_43] : memref<3x14x30xf32, #tpu.memory_space<vmem>>, vector<1x14x30xf32>
    %40 = vector.shape_cast %39 : vector<1x14x30xf32> to vector<14x30xf32>
    %cst_44 = arith.constant dense<0.000000e+00> : vector<14x480xf32>
    %41 = tpu.matmul %40, %25, %cst_44 {dimension_numbers = #tpu.dot_dimension_numbers<[1], [0], [0], [1], [0, 0, 1, 1], [], []>} : vector<14x30xf32>, vector<30x480xf32>, vector<14x480xf32> -> vector<14x480xf32>
    %c2_45 = arith.constant 2 : index
    %c0_46 = arith.constant 0 : index
    %c0_47 = arith.constant 0 : index
    %42 = vector.load %arg9[%c2_45, %c0_46, %c0_47] : memref<3x480x224xf32, #tpu.memory_space<vmem>>, vector<1x480x224xf32>
    %43 = vector.shape_cast %42 : vector<1x480x224xf32> to vector<480x224xf32>
    %cst_48 = arith.constant dense<0.000000e+00> : vector<14x224xf32>
    %44 = tpu.matmul %41, %43, %cst_48 {dimension_numbers = #tpu.dot_dimension_numbers<[1], [0], [0], [1], [0, 0, 1, 1], [], []>} : vector<14x480xf32>, vector<480x224xf32>, vector<14x224xf32> -> vector<14x224xf32>
    %45 = arith.addf %38, %44 : vector<14x224xf32>
    %c0_49 = arith.constant 0 : index
    %c0_50 = arith.constant 0 : index
    %46 = vector.load %arg10[%c0_49, %c0_50] : memref<1x224xf32, #tpu.memory_space<vmem>>, vector<1x224xf32>
    %47 = vector.broadcast %46 : vector<1x224xf32> to vector<14x224xf32>
    %48 = arith.addf %45, %47 : vector<14x224xf32>
    %cst_51 = arith.constant 0.000000e+00 : f32
    %49 = vector.broadcast %cst_51 : f32 to vector<14x224xf32>
    %50 = arith.maximumf %48, %49 : vector<14x224xf32>
    %c0_52 = arith.constant 0 : index
    %c0_53 = arith.constant 0 : index
    %c0_54 = arith.constant 0 : index
    %51 = vector.load %arg11[%c0_52, %c0_53, %c0_54] : memref<3x6x14xf32, #tpu.memory_space<vmem>>, vector<1x6x14xf32>
    %52 = vector.shape_cast %51 : vector<1x6x14xf32> to vector<6x14xf32>
    %cst_55 = arith.constant dense<0.000000e+00> : vector<6x224xf32>
    %53 = tpu.matmul %52, %50, %cst_55 {dimension_numbers = #tpu.dot_dimension_numbers<[1], [0], [0], [1], [0, 0, 1, 1], [], []>} : vector<6x14xf32>, vector<14x224xf32>, vector<6x224xf32> -> vector<6x224xf32>
    %c0_56 = arith.constant 0 : index
    %c0_57 = arith.constant 0 : index
    %c0_58 = arith.constant 0 : index
    %54 = vector.load %arg12[%c0_56, %c0_57, %c0_58] : memref<3x224x192xf32, #tpu.memory_space<vmem>>, vector<1x224x192xf32>
    %55 = vector.shape_cast %54 : vector<1x224x192xf32> to vector<224x192xf32>
    %cst_59 = arith.constant dense<0.000000e+00> : vector<6x192xf32>
    %56 = tpu.matmul %53, %55, %cst_59 {dimension_numbers = #tpu.dot_dimension_numbers<[1], [0], [0], [1], [0, 0, 1, 1], [], []>} : vector<6x224xf32>, vector<224x192xf32>, vector<6x192xf32> -> vector<6x192xf32>
    %c1_60 = arith.constant 1 : index
    %c0_61 = arith.constant 0 : index
    %c0_62 = arith.constant 0 : index
    %57 = vector.load %arg11[%c1_60, %c0_61, %c0_62] : memref<3x6x14xf32, #tpu.memory_space<vmem>>, vector<1x6x14xf32>
    %58 = vector.shape_cast %57 : vector<1x6x14xf32> to vector<6x14xf32>
    %cst_63 = arith.constant dense<0.000000e+00> : vector<6x224xf32>
    %59 = tpu.matmul %58, %50, %cst_63 {dimension_numbers = #tpu.dot_dimension_numbers<[1], [0], [0], [1], [0, 0, 1, 1], [], []>} : vector<6x14xf32>, vector<14x224xf32>, vector<6x224xf32> -> vector<6x224xf32>
    %c1_64 = arith.constant 1 : index
    %c0_65 = arith.constant 0 : index
    %c0_66 = arith.constant 0 : index
    %60 = vector.load %arg12[%c1_64, %c0_65, %c0_66] : memref<3x224x192xf32, #tpu.memory_space<vmem>>, vector<1x224x192xf32>
    %61 = vector.shape_cast %60 : vector<1x224x192xf32> to vector<224x192xf32>
    %cst_67 = arith.constant dense<0.000000e+00> : vector<6x192xf32>
    %62 = tpu.matmul %59, %61, %cst_67 {dimension_numbers = #tpu.dot_dimension_numbers<[1], [0], [0], [1], [0, 0, 1, 1], [], []>} : vector<6x224xf32>, vector<224x192xf32>, vector<6x192xf32> -> vector<6x192xf32>
    %63 = arith.addf %56, %62 : vector<6x192xf32>
    %c2_68 = arith.constant 2 : index
    %c0_69 = arith.constant 0 : index
    %c0_70 = arith.constant 0 : index
    %64 = vector.load %arg11[%c2_68, %c0_69, %c0_70] : memref<3x6x14xf32, #tpu.memory_space<vmem>>, vector<1x6x14xf32>
    %65 = vector.shape_cast %64 : vector<1x6x14xf32> to vector<6x14xf32>
    %cst_71 = arith.constant dense<0.000000e+00> : vector<6x224xf32>
    %66 = tpu.matmul %65, %50, %cst_71 {dimension_numbers = #tpu.dot_dimension_numbers<[1], [0], [0], [1], [0, 0, 1, 1], [], []>} : vector<6x14xf32>, vector<14x224xf32>, vector<6x224xf32> -> vector<6x224xf32>
    %c2_72 = arith.constant 2 : index
    %c0_73 = arith.constant 0 : index
    %c0_74 = arith.constant 0 : index
    %67 = vector.load %arg12[%c2_72, %c0_73, %c0_74] : memref<3x224x192xf32, #tpu.memory_space<vmem>>, vector<1x224x192xf32>
    %68 = vector.shape_cast %67 : vector<1x224x192xf32> to vector<224x192xf32>
    %cst_75 = arith.constant dense<0.000000e+00> : vector<6x192xf32>
    %69 = tpu.matmul %66, %68, %cst_75 {dimension_numbers = #tpu.dot_dimension_numbers<[1], [0], [0], [1], [0, 0, 1, 1], [], []>} : vector<6x224xf32>, vector<224x192xf32>, vector<6x192xf32> -> vector<6x192xf32>
    %70 = arith.addf %63, %69 : vector<6x192xf32>
    %c0_76 = arith.constant 0 : index
    %c0_77 = arith.constant 0 : index
    %71 = vector.load %arg13[%c0_76, %c0_77] : memref<1x192xf32, #tpu.memory_space<vmem>>, vector<1x192xf32>
    %72 = vector.broadcast %71 : vector<1x192xf32> to vector<6x192xf32>
    %73 = arith.addf %70, %72 : vector<6x192xf32>
    %cst_78 = arith.constant 0.000000e+00 : f32
    %74 = vector.broadcast %cst_78 : f32 to vector<6x192xf32>
    %75 = arith.maximumf %73, %74 : vector<6x192xf32>
    %c0_79 = arith.constant 0 : index
    %c0_80 = arith.constant 0 : index
    %c0_81 = arith.constant 0 : index
    %76 = vector.load %arg14[%c0_79, %c0_80, %c0_81] : memref<3x2x6xf32, #tpu.memory_space<vmem>>, vector<1x2x6xf32>
    %77 = vector.shape_cast %76 : vector<1x2x6xf32> to vector<2x6xf32>
    %cst_82 = arith.constant dense<0.000000e+00> : vector<2x192xf32>
    %78 = tpu.matmul %77, %75, %cst_82 {dimension_numbers = #tpu.dot_dimension_numbers<[1], [0], [0], [1], [0, 0, 1, 1], [], []>} : vector<2x6xf32>, vector<6x192xf32>, vector<2x192xf32> -> vector<2x192xf32>
    %c0_83 = arith.constant 0 : index
    %c0_84 = arith.constant 0 : index
    %c0_85 = arith.constant 0 : index
    %79 = vector.load %arg15[%c0_83, %c0_84, %c0_85] : memref<3x192x64xf32, #tpu.memory_space<vmem>>, vector<1x192x64xf32>
    %80 = vector.shape_cast %79 : vector<1x192x64xf32> to vector<192x64xf32>
    %cst_86 = arith.constant dense<0.000000e+00> : vector<2x64xf32>
    %81 = tpu.matmul %78, %80, %cst_86 {dimension_numbers = #tpu.dot_dimension_numbers<[1], [0], [0], [1], [0, 0, 1, 1], [], []>} : vector<2x192xf32>, vector<192x64xf32>, vector<2x64xf32> -> vector<2x64xf32>
    %c1_87 = arith.constant 1 : index
    %c0_88 = arith.constant 0 : index
    %c0_89 = arith.constant 0 : index
    %82 = vector.load %arg14[%c1_87, %c0_88, %c0_89] : memref<3x2x6xf32, #tpu.memory_space<vmem>>, vector<1x2x6xf32>
    %83 = vector.shape_cast %82 : vector<1x2x6xf32> to vector<2x6xf32>
    %cst_90 = arith.constant dense<0.000000e+00> : vector<2x192xf32>
    %84 = tpu.matmul %83, %75, %cst_90 {dimension_numbers = #tpu.dot_dimension_numbers<[1], [0], [0], [1], [0, 0, 1, 1], [], []>} : vector<2x6xf32>, vector<6x192xf32>, vector<2x192xf32> -> vector<2x192xf32>
    %c1_91 = arith.constant 1 : index
    %c0_92 = arith.constant 0 : index
    %c0_93 = arith.constant 0 : index
    %85 = vector.load %arg15[%c1_91, %c0_92, %c0_93] : memref<3x192x64xf32, #tpu.memory_space<vmem>>, vector<1x192x64xf32>
    %86 = vector.shape_cast %85 : vector<1x192x64xf32> to vector<192x64xf32>
    %cst_94 = arith.constant dense<0.000000e+00> : vector<2x64xf32>
    %87 = tpu.matmul %84, %86, %cst_94 {dimension_numbers = #tpu.dot_dimension_numbers<[1], [0], [0], [1], [0, 0, 1, 1], [], []>} : vector<2x192xf32>, vector<192x64xf32>, vector<2x64xf32> -> vector<2x64xf32>
    %88 = arith.addf %81, %87 : vector<2x64xf32>
    %c2_95 = arith.constant 2 : index
    %c0_96 = arith.constant 0 : index
    %c0_97 = arith.constant 0 : index
    %89 = vector.load %arg14[%c2_95, %c0_96, %c0_97] : memref<3x2x6xf32, #tpu.memory_space<vmem>>, vector<1x2x6xf32>
    %90 = vector.shape_cast %89 : vector<1x2x6xf32> to vector<2x6xf32>
    %cst_98 = arith.constant dense<0.000000e+00> : vector<2x192xf32>
    %91 = tpu.matmul %90, %75, %cst_98 {dimension_numbers = #tpu.dot_dimension_numbers<[1], [0], [0], [1], [0, 0, 1, 1], [], []>} : vector<2x6xf32>, vector<6x192xf32>, vector<2x192xf32> -> vector<2x192xf32>
    %c2_99 = arith.constant 2 : index
    %c0_100 = arith.constant 0 : index
    %c0_101 = arith.constant 0 : index
    %92 = vector.load %arg15[%c2_99, %c0_100, %c0_101] : memref<3x192x64xf32, #tpu.memory_space<vmem>>, vector<1x192x64xf32>
    %93 = vector.shape_cast %92 : vector<1x192x64xf32> to vector<192x64xf32>
    %cst_102 = arith.constant dense<0.000000e+00> : vector<2x64xf32>
    %94 = tpu.matmul %91, %93, %cst_102 {dimension_numbers = #tpu.dot_dimension_numbers<[1], [0], [0], [1], [0, 0, 1, 1], [], []>} : vector<2x192xf32>, vector<192x64xf32>, vector<2x64xf32> -> vector<2x64xf32>
    %95 = arith.addf %88, %94 : vector<2x64xf32>
    %c0_103 = arith.constant 0 : index
    %c0_104 = arith.constant 0 : index
    %96 = vector.load %arg16[%c0_103, %c0_104] : memref<1x64xf32, #tpu.memory_space<vmem>>, vector<1x64xf32>
    %97 = vector.broadcast %96 : vector<1x64xf32> to vector<2x64xf32>
    %98 = arith.addf %95, %97 : vector<2x64xf32>
    %cst_105 = arith.constant 0.000000e+00 : f32
    %99 = vector.broadcast %cst_105 : f32 to vector<2x64xf32>
    %100 = arith.maximumf %98, %99 : vector<2x64xf32>
    %c0_106 = arith.constant 0 : index
    %c0_107 = arith.constant 0 : index
    %101 = vector.load %arg17[%c0_106, %c0_107] : memref<64x256xf32, #tpu.memory_space<vmem>>, vector<64x256xf32>
    %cst_108 = arith.constant dense<0.000000e+00> : vector<2x256xf32>
    %102 = tpu.matmul %100, %101, %cst_108 {dimension_numbers = #tpu.dot_dimension_numbers<[1], [0], [0], [1], [0, 0, 1, 1], [], []>} : vector<2x64xf32>, vector<64x256xf32>, vector<2x256xf32> -> vector<2x256xf32>
    %c0_109 = arith.constant 0 : index
    %c0_110 = arith.constant 0 : index
    %103 = vector.load %arg18[%c0_109, %c0_110] : memref<1x256xf32, #tpu.memory_space<vmem>>, vector<1x256xf32>
    %104 = vector.broadcast %103 : vector<1x256xf32> to vector<2x256xf32>
    %105 = arith.addf %102, %104 : vector<2x256xf32>
    %cst_111 = arith.constant 0.000000e+00 : f32
    %106 = vector.broadcast %cst_111 : f32 to vector<2x256xf32>
    %107 = arith.maximumf %105, %106 : vector<2x256xf32>
    %c0_112 = arith.constant 0 : index
    %c0_113 = arith.constant 0 : index
    %108 = vector.load %arg19[%c0_112, %c0_113] : memref<256x128xf32, #tpu.memory_space<vmem>>, vector<256x128xf32>
    %cst_114 = arith.constant dense<0.000000e+00> : vector<2x128xf32>
    %109 = tpu.matmul %107, %108, %cst_114 {dimension_numbers = #tpu.dot_dimension_numbers<[1], [0], [0], [1], [0, 0, 1, 1], [], []>} : vector<2x256xf32>, vector<256x128xf32>, vector<2x128xf32> -> vector<2x128xf32>
    %c0_115 = arith.constant 0 : index
    %c0_116 = arith.constant 0 : index
    %110 = vector.load %arg20[%c0_115, %c0_116] : memref<1x128xf32, #tpu.memory_space<vmem>>, vector<1x128xf32>
    %111 = vector.broadcast %110 : vector<1x128xf32> to vector<2x128xf32>
    %112 = arith.addf %109, %111 : vector<2x128xf32>
    %c0_117 = arith.constant 0 : index
    %c0_118 = arith.constant 0 : index
    %113 = vector.load %arg2[%c0_117, %c0_118] : memref<2x16xf32, #tpu.memory_space<vmem>>, vector<2x16xf32>
    %c0_119 = arith.constant 0 : index
    %c0_120 = arith.constant 0 : index
    %114 = vector.load %arg21[%c0_119, %c0_120] : memref<16x512xf32, #tpu.memory_space<vmem>>, vector<16x512xf32>
    %cst_121 = arith.constant dense<0.000000e+00> : vector<2x512xf32>
    %115 = tpu.matmul %113, %114, %cst_121 {dimension_numbers = #tpu.dot_dimension_numbers<[1], [0], [0], [1], [0, 0, 1, 1], [], []>} : vector<2x16xf32>, vector<16x512xf32>, vector<2x512xf32> -> vector<2x512xf32>
    %c0_122 = arith.constant 0 : index
    %c0_123 = arith.constant 0 : index
    %116 = vector.load %arg22[%c0_122, %c0_123] : memref<128x512xf32, #tpu.memory_space<vmem>>, vector<128x512xf32>
    %cst_124 = arith.constant dense<0.000000e+00> : vector<2x512xf32>
    %117 = tpu.matmul %112, %116, %cst_124 {dimension_numbers = #tpu.dot_dimension_numbers<[1], [0], [0], [1], [0, 0, 1, 1], [], []>} : vector<2x128xf32>, vector<128x512xf32>, vector<2x512xf32> -> vector<2x512xf32>
    %118 = arith.addf %115, %117 : vector<2x512xf32>
    %c0_125 = arith.constant 0 : index
    %c0_126 = arith.constant 0 : index
    %119 = vector.load %arg3[%c0_125, %c0_126] : memref<2x128xf32, #tpu.memory_space<vmem>>, vector<2x128xf32>
    %c0_127 = arith.constant 0 : index
    %c0_128 = arith.constant 0 : index
    %120 = vector.load %arg23[%c0_127, %c0_128] : memref<128x512xf32, #tpu.memory_space<vmem>>, vector<128x512xf32>
    %cst_129 = arith.constant dense<0.000000e+00> : vector<2x512xf32>
    %121 = tpu.matmul %119, %120, %cst_129 {dimension_numbers = #tpu.dot_dimension_numbers<[1], [0], [0], [1], [0, 0, 1, 1], [], []>} : vector<2x128xf32>, vector<128x512xf32>, vector<2x512xf32> -> vector<2x512xf32>
    %122 = arith.addf %118, %121 : vector<2x512xf32>
    %c0_130 = arith.constant 0 : index
    %c0_131 = arith.constant 0 : index
    %123 = vector.load %arg24[%c0_130, %c0_131] : memref<1x512xf32, #tpu.memory_space<vmem>>, vector<1x512xf32>
    %124 = vector.broadcast %123 : vector<1x512xf32> to vector<2x512xf32>
    %125 = arith.addf %122, %124 : vector<2x512xf32>
    %126 = vector.extract_strided_slice %125 {offsets = [0, 0], sizes = [2, 128], strides = [1, 1]} : vector<2x512xf32> to vector<2x128xf32>
    %cst_132 = arith.constant 0.000000e+00 : f32
    %127 = vector.broadcast %cst_132 : f32 to vector<2x128xf32>
    %128 = arith.subf %127, %126 : vector<2x128xf32>
    %129 = math.exp %128 : vector<2x128xf32>
    %cst_133 = arith.constant 1.000000e+00 : f32
    %130 = vector.broadcast %cst_133 : f32 to vector<2x128xf32>
    %131 = arith.addf %130, %129 : vector<2x128xf32>
    %cst_134 = arith.constant 1.000000e+00 : f32
    %132 = vector.broadcast %cst_134 : f32 to vector<2x128xf32>
    %133 = arith.divf %132, %131 : vector<2x128xf32>
    %134 = vector.extract_strided_slice %125 {offsets = [0, 128], sizes = [2, 128], strides = [1, 1]} : vector<2x512xf32> to vector<2x128xf32>
    %cst_135 = arith.constant 0.000000e+00 : f32
    %135 = vector.broadcast %cst_135 : f32 to vector<2x128xf32>
    %136 = arith.subf %135, %134 : vector<2x128xf32>
    %137 = math.exp %136 : vector<2x128xf32>
    %cst_136 = arith.constant 1.000000e+00 : f32
    %138 = vector.broadcast %cst_136 : f32 to vector<2x128xf32>
    %139 = arith.addf %138, %137 : vector<2x128xf32>
    %cst_137 = arith.constant 1.000000e+00 : f32
    %140 = vector.broadcast %cst_137 : f32 to vector<2x128xf32>
    %141 = arith.divf %140, %139 : vector<2x128xf32>
    %142 = vector.extract_strided_slice %125 {offsets = [0, 256], sizes = [2, 128], strides = [1, 1]} : vector<2x512xf32> to vector<2x128xf32>
    %143 = math.tanh %142 : vector<2x128xf32>
    %144 = vector.extract_strided_slice %125 {offsets = [0, 384], sizes = [2, 128], strides = [1, 1]} : vector<2x512xf32> to vector<2x128xf32>
    %cst_138 = arith.constant 0.000000e+00 : f32
    %145 = vector.broadcast %cst_138 : f32 to vector<2x128xf32>
    %146 = arith.subf %145, %144 : vector<2x128xf32>
    %147 = math.exp %146 : vector<2x128xf32>
    %cst_139 = arith.constant 1.000000e+00 : f32
    %148 = vector.broadcast %cst_139 : f32 to vector<2x128xf32>
    %149 = arith.addf %148, %147 : vector<2x128xf32>
    %cst_140 = arith.constant 1.000000e+00 : f32
    %150 = vector.broadcast %cst_140 : f32 to vector<2x128xf32>
    %151 = arith.divf %150, %149 : vector<2x128xf32>
    %c0_141 = arith.constant 0 : index
    %c0_142 = arith.constant 0 : index
    %152 = vector.load %arg4[%c0_141, %c0_142] : memref<2x128xf32, #tpu.memory_space<vmem>>, vector<2x128xf32>
    %153 = arith.mulf %141, %152 : vector<2x128xf32>
    %154 = arith.mulf %133, %143 : vector<2x128xf32>
    %155 = arith.addf %153, %154 : vector<2x128xf32>
    %156 = math.tanh %155 : vector<2x128xf32>
    %157 = arith.mulf %151, %156 : vector<2x128xf32>
    %c0_143 = arith.constant 0 : index
    %c0_144 = arith.constant 0 : index
    %158 = vector.load %arg25[%c0_143, %c0_144] : memref<128x8xf32, #tpu.memory_space<vmem>>, vector<128x8xf32>
    %cst_145 = arith.constant dense<0.000000e+00> : vector<2x8xf32>
    %159 = tpu.matmul %157, %158, %cst_145 {dimension_numbers = #tpu.dot_dimension_numbers<[1], [0], [0], [1], [0, 0, 1, 1], [], []>} : vector<2x128xf32>, vector<128x8xf32>, vector<2x8xf32> -> vector<2x8xf32>
    %c0_146 = arith.constant 0 : index
    %c0_147 = arith.constant 0 : index
    %160 = vector.load %arg26[%c0_146, %c0_147] : memref<1x8xf32, #tpu.memory_space<vmem>>, vector<1x8xf32>
    %161 = vector.broadcast %160 : vector<1x8xf32> to vector<2x8xf32>
    %162 = arith.addf %159, %161 : vector<2x8xf32>
    %c0_148 = arith.constant 0 : index
    %c0_149 = arith.constant 0 : index
    %163 = vector.load %arg27[%c0_148, %c0_149] : memref<2x8xf32, #tpu.memory_space<vmem>>, vector<2x8xf32>
    tpu.vector_store %arg27[%c0_148, %c0_149], %162 {strides = array<i32>} : memref<2x8xf32, #tpu.memory_space<vmem>>, vector<2x8xf32>,
    %c0_150 = arith.constant 0 : index
    %c0_151 = arith.constant 0 : index
    %164 = vector.load %arg28[%c0_150, %c0_151] : memref<2x128xf32, #tpu.memory_space<vmem>>, vector<2x128xf32>
    tpu.vector_store %arg28[%c0_150, %c0_151], %157 {strides = array<i32>} : memref<2x128xf32, #tpu.memory_space<vmem>>, vector<2x128xf32>,
    %c0_152 = arith.constant 0 : index
    %c0_153 = arith.constant 0 : index
    %165 = vector.load %arg29[%c0_152, %c0_153] : memref<2x128xf32, #tpu.memory_space<vmem>>, vector<2x128xf32>
    tpu.vector_store %arg29[%c0_152, %c0_153], %155 {strides = array<i32>} : memref<2x128xf32, #tpu.memory_space<vmem>>, vector<2x128xf32>,
    return
  }
  func.func @transform_0(%arg0: i32) -> (i32, i32) {
    %c0_i32 = arith.constant 0 : i32
    %c0_i32_0 = arith.constant 0 : i32
    %c0_i32_1 = arith.constant 0 : i32
    return %c0_i32, %c0_i32_0 : i32, i32
  }
  func.func @transform_1(%arg0: i32) -> (i32, i32) {
    %c0_i32 = arith.constant 0 : i32
    %c0_i32_0 = arith.constant 0 : i32
    %c0_i32_1 = arith.constant 0 : i32
    return %c0_i32, %c0_i32_0 : i32, i32
  }
  func.func @transform_2(%arg0: i32) -> (i32, i32) {
    %c0_i32 = arith.constant 0 : i32
    %c0_i32_0 = arith.constant 0 : i32
    %c0_i32_1 = arith.constant 0 : i32
    return %c0_i32, %c0_i32_0 : i32, i32
  }
  func.func @transform_3(%arg0: i32) -> (i32, i32) {
    %c0_i32 = arith.constant 0 : i32
    %c0_i32_0 = arith.constant 0 : i32
    %c0_i32_1 = arith.constant 0 : i32
    return %c0_i32, %c0_i32_0 : i32, i32
  }
  func.func @transform_4(%arg0: i32) -> (i32, i32, i32) {
    %c0_i32 = arith.constant 0 : i32
    %c0_i32_0 = arith.constant 0 : i32
    %c0_i32_1 = arith.constant 0 : i32
    %c0_i32_2 = arith.constant 0 : i32
    return %c0_i32, %c0_i32_0, %c0_i32_1 : i32, i32, i32
  }
  func.func @transform_5(%arg0: i32) -> (i32, i32, i32) {
    %c0_i32 = arith.constant 0 : i32
    %c0_i32_0 = arith.constant 0 : i32
    %c0_i32_1 = arith.constant 0 : i32
    %c0_i32_2 = arith.constant 0 : i32
    return %c0_i32, %c0_i32_0, %c0_i32_1 : i32, i32, i32
  }
  func.func @transform_6(%arg0: i32) -> (i32, i32) {
    %c0_i32 = arith.constant 0 : i32
    %c0_i32_0 = arith.constant 0 : i32
    %c0_i32_1 = arith.constant 0 : i32
    return %c0_i32, %c0_i32_0 : i32, i32
  }
  func.func @transform_7(%arg0: i32) -> (i32, i32, i32) {
    %c0_i32 = arith.constant 0 : i32
    %c0_i32_0 = arith.constant 0 : i32
    %c0_i32_1 = arith.constant 0 : i32
    %c0_i32_2 = arith.constant 0 : i32
    return %c0_i32, %c0_i32_0, %c0_i32_1 : i32, i32, i32
  }
  func.func @transform_8(%arg0: i32) -> (i32, i32, i32) {
    %c0_i32 = arith.constant 0 : i32
    %c0_i32_0 = arith.constant 0 : i32
    %c0_i32_1 = arith.constant 0 : i32
    %c0_i32_2 = arith.constant 0 : i32
    return %c0_i32, %c0_i32_0, %c0_i32_1 : i32, i32, i32
  }
  func.func @transform_9(%arg0: i32) -> (i32, i32) {
    %c0_i32 = arith.constant 0 : i32
    %c0_i32_0 = arith.constant 0 : i32
    %c0_i32_1 = arith.constant 0 : i32
    return %c0_i32, %c0_i32_0 : i32, i32
  }
  func.func @transform_10(%arg0: i32) -> (i32, i32, i32) {
    %c0_i32 = arith.constant 0 : i32
    %c0_i32_0 = arith.constant 0 : i32
    %c0_i32_1 = arith.constant 0 : i32
    %c0_i32_2 = arith.constant 0 : i32
    return %c0_i32, %c0_i32_0, %c0_i32_1 : i32, i32, i32
  }
  func.func @transform_11(%arg0: i32) -> (i32, i32, i32) {
    %c0_i32 = arith.constant 0 : i32
    %c0_i32_0 = arith.constant 0 : i32
    %c0_i32_1 = arith.constant 0 : i32
    %c0_i32_2 = arith.constant 0 : i32
    return %c0_i32, %c0_i32_0, %c0_i32_1 : i32, i32, i32
  }
  func.func @transform_12(%arg0: i32) -> (i32, i32) {
    %c0_i32 = arith.constant 0 : i32
    %c0_i32_0 = arith.constant 0 : i32
    %c0_i32_1 = arith.constant 0 : i32
    return %c0_i32, %c0_i32_0 : i32, i32
  }
  func.func @transform_13(%arg0: i32) -> (i32, i32, i32) {
    %c0_i32 = arith.constant 0 : i32
    %c0_i32_0 = arith.constant 0 : i32
    %c0_i32_1 = arith.constant 0 : i32
    %c0_i32_2 = arith.constant 0 : i32
    return %c0_i32, %c0_i32_0, %c0_i32_1 : i32, i32, i32
  }
  func.func @transform_14(%arg0: i32) -> (i32, i32, i32) {
    %c0_i32 = arith.constant 0 : i32
    %c0_i32_0 = arith.constant 0 : i32
    %c0_i32_1 = arith.constant 0 : i32
    %c0_i32_2 = arith.constant 0 : i32
    return %c0_i32, %c0_i32_0, %c0_i32_1 : i32, i32, i32
  }
  func.func @transform_15(%arg0: i32) -> (i32, i32) {
    %c0_i32 = arith.constant 0 : i32
    %c0_i32_0 = arith.constant 0 : i32
    %c0_i32_1 = arith.constant 0 : i32
    return %c0_i32, %c0_i32_0 : i32, i32
  }
  func.func @transform_16(%arg0: i32) -> (i32, i32) {
    %c0_i32 = arith.constant 0 : i32
    %c0_i32_0 = arith.constant 0 : i32
    %c0_i32_1 = arith.constant 0 : i32
    return %c0_i32, %c0_i32_0 : i32, i32
  }
  func.func @transform_17(%arg0: i32) -> (i32, i32) {
    %c0_i32 = arith.constant 0 : i32
    %c0_i32_0 = arith.constant 0 : i32
    %c0_i32_1 = arith.constant 0 : i32
    return %c0_i32, %c0_i32_0 : i32, i32
  }
  func.func @transform_18(%arg0: i32) -> (i32, i32) {
    %c0_i32 = arith.constant 0 : i32
    %c0_i32_0 = arith.constant 0 : i32
    %c0_i32_1 = arith.constant 0 : i32
    return %c0_i32, %c0_i32_0 : i32, i32
  }
  func.func @transform_19(%arg0: i32) -> (i32, i32) {
    %c0_i32 = arith.constant 0 : i32
    %c0_i32_0 = arith.constant 0 : i32
    %c0_i32_1 = arith.constant 0 : i32
    return %c0_i32, %c0_i32_0 : i32, i32
  }
  func.func @transform_20(%arg0: i32) -> (i32, i32) {
    %c0_i32 = arith.constant 0 : i32
    %c0_i32_0 = arith.constant 0 : i32
    %c0_i32_1 = arith.constant 0 : i32
    return %c0_i32, %c0_i32_0 : i32, i32
  }
  func.func @transform_21(%arg0: i32) -> (i32, i32) {
    %c0_i32 = arith.constant 0 : i32
    %c0_i32_0 = arith.constant 0 : i32
    %c0_i32_1 = arith.constant 0 : i32
    return %c0_i32, %c0_i32_0 : i32, i32
  }
  func.func @transform_22(%arg0: i32) -> (i32, i32) {
    %c0_i32 = arith.constant 0 : i32
    %c0_i32_0 = arith.constant 0 : i32
    %c0_i32_1 = arith.constant 0 : i32
    return %c0_i32, %c0_i32_0 : i32, i32
  }
  func.func @transform_23(%arg0: i32) -> (i32, i32) {
    %c0_i32 = arith.constant 0 : i32
    %c0_i32_0 = arith.constant 0 : i32
    %c0_i32_1 = arith.constant 0 : i32
    return %c0_i32, %c0_i32_0 : i32, i32
  }
  func.func @transform_24(%arg0: i32) -> (i32, i32) {
    %c0_i32 = arith.constant 0 : i32
    %c0_i32_0 = arith.constant 0 : i32
    %c0_i32_1 = arith.constant 0 : i32
    return %c0_i32, %c0_i32_0 : i32, i32
  }
  func.func @transform_25(%arg0: i32) -> (i32, i32) {
    %c0_i32 = arith.constant 0 : i32
    %c0_i32_0 = arith.constant 0 : i32
    %c0_i32_1 = arith.constant 0 : i32
    return %c0_i32, %c0_i32_0 : i32, i32
  }
  func.func @transform_26(%arg0: i32) -> (i32, i32) {
    %c0_i32 = arith.constant 0 : i32
    %c0_i32_0 = arith.constant 0 : i32
    %c0_i32_1 = arith.constant 0 : i32
    return %c0_i32, %c0_i32_0 : i32, i32
  }
  func.func @transform_27(%arg0: i32) -> (i32, i32) {
    %c0_i32 = arith.constant 0 : i32
    %c0_i32_0 = arith.constant 0 : i32
    %c0_i32_1 = arith.constant 0 : i32
    return %c0_i32, %c0_i32_0 : i32, i32
  }
  func.func @transform_28(%arg0: i32) -> (i32, i32) {
    %c0_i32 = arith.constant 0 : i32
    %c0_i32_0 = arith.constant 0 : i32
    %c0_i32_1 = arith.constant 0 : i32
    return %c0_i32, %c0_i32_0 : i32, i32
  }
}

</mosaic_0001>

<llo_original>
// kernel: tpu_custom_call.1
$region0: #{tpu_custom_call.1}
  #allocation0 [shape = 'u32[]', space=smem, size = 0x4, offset = 0x4, fixed_abs, tag = 'smem constant byte address 0x4 - core index']
  #allocation1 [shape = 'u32[72,128]{1,0:T(1,128)}', space=vmem, size = 0x9000, scoped, tag = 'internal scratch']
  %s0 = inlined_call_operand.vmem [shape: f32[64,128], index: 0, kind: input, shape index: {}]
  %s1 = inlined_call_operand.vmem [shape: f32[2,16], index: 1, kind: input, shape index: {}]
  %s2 = inlined_call_operand.vmem [shape: f32[2,128], index: 2, kind: input, shape index: {}]
  %s3 = inlined_call_operand.vmem [shape: f32[2,128], index: 3, kind: input, shape index: {}]
  %s4 = inlined_call_operand.vmem [shape: f32[3,30,64], index: 4, kind: input, shape index: {}]
  %s5 = inlined_call_operand.vmem [shape: f32[3,128,480], index: 5, kind: input, shape index: {}]
  %s6 = inlined_call_operand.vmem [shape: f32[1,480], index: 6, kind: input, shape index: {}]
  %s7 = inlined_call_operand.vmem [shape: f32[3,14,30], index: 7, kind: input, shape index: {}]
  %s8 = inlined_call_operand.vmem [shape: f32[3,480,224], index: 8, kind: input, shape index: {}]
  %s9 = inlined_call_operand.vmem [shape: f32[1,224], index: 9, kind: input, shape index: {}]
  %s10 = inlined_call_operand.vmem [shape: f32[3,6,14], index: 10, kind: input, shape index: {}]
  %s11 = inlined_call_operand.vmem [shape: f32[3,224,192], index: 11, kind: input, shape index: {}]
  %s12 = inlined_call_operand.vmem [shape: f32[1,192], index: 12, kind: input, shape index: {}]
  %s13 = inlined_call_operand.vmem [shape: f32[3,2,6], index: 13, kind: input, shape index: {}]
  %s14 = inlined_call_operand.vmem [shape: f32[3,192,64], index: 14, kind: input, shape index: {}]
  %s15 = inlined_call_operand.vmem [shape: f32[1,64], index: 15, kind: input, shape index: {}]
  %s16 = inlined_call_operand.vmem [shape: f32[64,256], index: 16, kind: input, shape index: {}]
  %s17 = inlined_call_operand.vmem [shape: f32[1,256], index: 17, kind: input, shape index: {}]
  %s18 = inlined_call_operand.vmem [shape: f32[256,128], index: 18, kind: input, shape index: {}]
  %s19 = inlined_call_operand.vmem [shape: f32[1,128], index: 19, kind: input, shape index: {}]
  %s20 = inlined_call_operand.vmem [shape: f32[16,512], index: 20, kind: input, shape index: {}]
  %s21 = inlined_call_operand.vmem [shape: f32[128,512], index: 21, kind: input, shape index: {}]
  %s22 = inlined_call_operand.vmem [shape: f32[128,512], index: 22, kind: input, shape index: {}]
  %s23 = inlined_call_operand.vmem [shape: f32[1,512], index: 23, kind: input, shape index: {}]
  %s24 = inlined_call_operand.vmem [shape: f32[128,8], index: 24, kind: input, shape index: {}]
  %s25 = inlined_call_operand.vmem [shape: f32[1,8], index: 25, kind: input, shape index: {}]
  %s26 = inlined_call_operand.hbm [shape: f32[2,8], index: 26, kind: output, shape index: {0}]
  %s27 = inlined_call_operand.hbm [shape: f32[2,128], index: 27, kind: output, shape index: {1}]
  %s28 = inlined_call_operand.hbm [shape: f32[2,128], index: 28, kind: output, shape index: {2}]
  %29 = xla_tuple %s26, %s27, %s28
  %s30 = sld [smem:[#allocation0]]
  $region130: #{tpu_custom_call.1} parent=0
    _
  %s32 = ssub.s32 1, %s30
  %s33 = scalar_select 0, %s32, %s30
  $region1: #{tpu_custom_call.1} parent=0
    #allocation2 [shape = 'u8[1024]{0}', space=vmem, size = 0x400, scoped, tag = 'output window, operand 0, single buffered']
    #allocation3 [shape = 's32[1]{0}', space=sflag, size = 0x4, scoped, tag = 'scoped memory for tpu_custom_call.1']
    #allocation4 [shape = 'u8[1024]{0}', space=vmem, size = 0x400, scoped, tag = 'output window, operand 1, single buffered']
    #allocation5 [shape = 's32[1]{0}', space=sflag, size = 0x4, scoped, tag = 'scoped memory for tpu_custom_call.1']
    #allocation6 [shape = 'u8[1024]{0}', space=vmem, size = 0x400, scoped, tag = 'output window, operand 2, single buffered']
    %34 = vsyncpa [#allocation3], 0
    %35 = vsyncpa [#allocation5], 0
    // Predicated region
    $region2: #{tpu_custom_call.1} parent=1 // pred_check
      _
    $region3: #{tpu_custom_call.1} parent=1 // pred_check_branch
      %37 = sbr.rel (0) target = $region5
    $region4: #{tpu_custom_call.1} parent=1 // pred_region
      _
    $region5: #{tpu_custom_call.1} parent=1 // pred_fallthru
      _
    // Predicated region
    $region6: #{tpu_custom_call.1} parent=1 // pred_check
      _
    $region7: #{tpu_custom_call.1} parent=1 // pred_check_branch
      %39 = sbr.rel (0) target = $region9
    $region8: #{tpu_custom_call.1} parent=1 // pred_region
      _
    $region9: #{tpu_custom_call.1} parent=1 // pred_fallthru
      _
    // Predicated region
    $region10: #{tpu_custom_call.1} parent=1 // pred_check
      _
    $region11: #{tpu_custom_call.1} parent=1 // pred_check_branch
      %41 = sbr.rel (0) target = $region13
    $region12: #{tpu_custom_call.1} parent=1 // pred_region
      _
    $region13: #{tpu_custom_call.1} parent=1 // pred_fallthru
      _
    // Predicated region
    $region14: #{tpu_custom_call.1} parent=1 // pred_check
      _
    $region15: #{tpu_custom_call.1} parent=1 // pred_check_branch
      %43 = sbr.rel (0) target = $region17
    $region16: #{tpu_custom_call.1} parent=1 // pred_region
      _
    $region17: #{tpu_custom_call.1} parent=1 // pred_fallthru
      _
    // Predicated region
    $region18: #{tpu_custom_call.1} parent=1 // pred_check
      _
    $region19: #{tpu_custom_call.1} parent=1 // pred_check_branch
      %45 = sbr.rel (0) target = $region21
    $region20: #{tpu_custom_call.1} parent=1 // pred_region
      _
    $region21: #{tpu_custom_call.1} parent=1 // pred_fallthru
      _
    // Predicated region
    $region22: #{tpu_custom_call.1} parent=1 // pred_check
      _
    $region23: #{tpu_custom_call.1} parent=1 // pred_check_branch
      %47 = sbr.rel (0) target = $region25
    $region24: #{tpu_custom_call.1} parent=1 // pred_region
      _
    $region25: #{tpu_custom_call.1} parent=1 // pred_fallthru
      _
    // Predicated region
    $region26: #{tpu_custom_call.1} parent=1 // pred_check
      _
    $region27: #{tpu_custom_call.1} parent=1 // pred_check_branch
      %49 = sbr.rel (0) target = $region29
    $region28: #{tpu_custom_call.1} parent=1 // pred_region
      _
    $region29: #{tpu_custom_call.1} parent=1 // pred_fallthru
      _
    // Predicated region
    $region30: #{tpu_custom_call.1} parent=1 // pred_check
      _
    $region31: #{tpu_custom_call.1} parent=1 // pred_check_branch
      %51 = sbr.rel (0) target = $region33
    $region32: #{tpu_custom_call.1} parent=1 // pred_region
      _
    $region33: #{tpu_custom_call.1} parent=1 // pred_fallthru
      _
    // Predicated region
    $region34: #{tpu_custom_call.1} parent=1 // pred_check
      _
    $region35: #{tpu_custom_call.1} parent=1 // pred_check_branch
      %53 = sbr.rel (0) target = $region37
    $region36: #{tpu_custom_call.1} parent=1 // pred_region
      _
    $region37: #{tpu_custom_call.1} parent=1 // pred_fallthru
      _
    // Predicated region
    $region38: #{tpu_custom_call.1} parent=1 // pred_check
      _
    $region39: #{tpu_custom_call.1} parent=1 // pred_check_branch
      %55 = sbr.rel (0) target = $region41
    $region40: #{tpu_custom_call.1} parent=1 // pred_region
      _
    $region41: #{tpu_custom_call.1} parent=1 // pred_fallthru
      _
    // Predicated region
    $region42: #{tpu_custom_call.1} parent=1 // pred_check
      _
    $region43: #{tpu_custom_call.1} parent=1 // pred_check_branch
      %57 = sbr.rel (0) target = $region45
    $region44: #{tpu_custom_call.1} parent=1 // pred_region
      _
    $region45: #{tpu_custom_call.1} parent=1 // pred_fallthru
      _
    // Predicated region
    $region46: #{tpu_custom_call.1} parent=1 // pred_check
      _
    $region47: #{tpu_custom_call.1} parent=1 // pred_check_branch
      %59 = sbr.rel (0) target = $region49
    $region48: #{tpu_custom_call.1} parent=1 // pred_region
      _
    $region49: #{tpu_custom_call.1} parent=1 // pred_fallthru
      _
    // Predicated region
    $region50: #{tpu_custom_call.1} parent=1 // pred_check
      _
    $region51: #{tpu_custom_call.1} parent=1 // pred_check_branch
      %61 = sbr.rel (0) target = $region53
    $region52: #{tpu_custom_call.1} parent=1 // pred_region
      _
    $region53: #{tpu_custom_call.1} parent=1 // pred_fallthru
      _
    // Predicated region
    $region54: #{tpu_custom_call.1} parent=1 // pred_check
      _
    $region55: #{tpu_custom_call.1} parent=1 // pred_check_branch
      %63 = sbr.rel (0) target = $region57
    $region56: #{tpu_custom_call.1} parent=1 // pred_region
      _
    $region57: #{tpu_custom_call.1} parent=1 // pred_fallthru
      _
    // Predicated region
    $region58: #{tpu_custom_call.1} parent=1 // pred_check
      _
    $region59: #{tpu_custom_call.1} parent=1 // pred_check_branch
      %65 = sbr.rel (0) target = $region61
    $region60: #{tpu_custom_call.1} parent=1 // pred_region
      _
    $region61: #{tpu_custom_call.1} parent=1 // pred_fallthru
      _
    // Predicated region
    $region62: #{tpu_custom_call.1} parent=1 // pred_check
      _
    $region63: #{tpu_custom_call.1} parent=1 // pred_check_branch
      %67 = sbr.rel (0) target = $region65
    $region64: #{tpu_custom_call.1} parent=1 // pred_region
      _
    $region65: #{tpu_custom_call.1} parent=1 // pred_fallthru
      _
    // Predicated region
    $region66: #{tpu_custom_call.1} parent=1 // pred_check
      _
    $region67: #{tpu_custom_call.1} parent=1 // pred_check_branch
      %69 = sbr.rel (0) target = $region69
    $region68: #{tpu_custom_call.1} parent=1 // pred_region
      _
    $region69: #{tpu_custom_call.1} parent=1 // pred_fallthru
      _
    // Predicated region
    $region70: #{tpu_custom_call.1} parent=1 // pred_check
      _
    $region71: #{tpu_custom_call.1} parent=1 // pred_check_branch
      %71 = sbr.rel (0) target = $region73
    $region72: #{tpu_custom_call.1} parent=1 // pred_region
      _
    $region73: #{tpu_custom_call.1} parent=1 // pred_fallthru
      _
    // Predicated region
    $region74: #{tpu_custom_call.1} parent=1 // pred_check
      _
    $region75: #{tpu_custom_call.1} parent=1 // pred_check_branch
      %73 = sbr.rel (0) target = $region77
    $region76: #{tpu_custom_call.1} parent=1 // pred_region
      _
    $region77: #{tpu_custom_call.1} parent=1 // pred_fallthru
      _
    // Predicated region
    $region78: #{tpu_custom_call.1} parent=1 // pred_check
      _
    $region79: #{tpu_custom_call.1} parent=1 // pred_check_branch
      %75 = sbr.rel (0) target = $region81
    $region80: #{tpu_custom_call.1} parent=1 // pred_region
      _
    $region81: #{tpu_custom_call.1} parent=1 // pred_fallthru
      _
    // Predicated region
    $region82: #{tpu_custom_call.1} parent=1 // pred_check
      _
    $region83: #{tpu_custom_call.1} parent=1 // pred_check_branch
      %77 = sbr.rel (0) target = $region85
    $region84: #{tpu_custom_call.1} parent=1 // pred_region
      _
    $region85: #{tpu_custom_call.1} parent=1 // pred_fallthru
      _
    // Predicated region
    $region86: #{tpu_custom_call.1} parent=1 // pred_check
      _
    $region87: #{tpu_custom_call.1} parent=1 // pred_check_branch
      %79 = sbr.rel (0) target = $region89
    $region88: #{tpu_custom_call.1} parent=1 // pred_region
      _
    $region89: #{tpu_custom_call.1} parent=1 // pred_fallthru
      _
    // Predicated region
    $region90: #{tpu_custom_call.1} parent=1 // pred_check
      _
    $region91: #{tpu_custom_call.1} parent=1 // pred_check_branch
      %81 = sbr.rel (0) target = $region93
    $region92: #{tpu_custom_call.1} parent=1 // pred_region
      _
    $region93: #{tpu_custom_call.1} parent=1 // pred_fallthru
      _
    // Predicated region
    $region94: #{tpu_custom_call.1} parent=1 // pred_check
      _
    $region95: #{tpu_custom_call.1} parent=1 // pred_check_branch
      %83 = sbr.rel (0) target = $region97
    $region96: #{tpu_custom_call.1} parent=1 // pred_region
      _
    $region97: #{tpu_custom_call.1} parent=1 // pred_fallthru
      _
    // Predicated region
    $region98: #{tpu_custom_call.1} parent=1 // pred_check
      _
    $region99: #{tpu_custom_call.1} parent=1 // pred_check_branch
      %85 = sbr.rel (0) target = $region101
    $region100: #{tpu_custom_call.1} parent=1 // pred_region
      _
    $region101: #{tpu_custom_call.1} parent=1 // pred_fallthru
      _
    // Predicated region
    $region102: #{tpu_custom_call.1} parent=1 // pred_check
      _
    $region103: #{tpu_custom_call.1} parent=1 // pred_check_branch
      %87 = sbr.rel (0) target = $region105
    $region104: #{tpu_custom_call.1} parent=1 // pred_region
      _
    $region105: #{tpu_custom_call.1} parent=1 // pred_fallthru
      _
    %v88 = vld [vmem:[%s0] sm:$0xff]
    %v89 = vld [vmem:[%s0 + $0x8] sm:$0xff]
    %v90 = vld [vmem:[%s0 + $0x10] sm:$0xff]
    %v91 = vld [vmem:[%s0 + $0x18] sm:$0xff]
    %v92 = vld [vmem:[%s0 + $0x20] sm:$0xff]
    %v93 = vld [vmem:[%s0 + $0x28] sm:$0xff]
    %v94 = vld [vmem:[%s0 + $0x30] sm:$0xff]
    %v95 = vld [vmem:[%s0 + $0x38] sm:$0xff]
    %v96 = vld [vmem:[%s4] sm:$0xff]
    %v97 = vld [vmem:[%s4 + $0x8] sm:$0xff]
    %v98 = vld [vmem:[%s4 + $0x10] sm:$0xff]
    %v99 = vld [vmem:[%s4 + $0x18] sm:$0x3f]
    %vm100 = vcmask 523264
    %v102 = vsel %vm100, %v96, 0
    %v105 = vsel %vm100, %v97, 0
    %v108 = vsel %vm100, %v98, 0
    %v111 = vsel %vm100, %v99, 0
    %113 = vmatpush.msra.mxu0 0.0
    %114 = vmatpush.msra.mxu0 0.0
    %115 = vmatpush.msra.mxu0 0.0
    %116 = vmatpush.msra.mxu0 0.0
    %117 = vmatpush.msra.mxu0 0.0
    %118 = vmatpush.msra.mxu0 0.0
    %119 = vmatpush.msra.mxu0 0.0
    %120 = vmatpush.msra.mxu0 0.0
    %121 = vmatpush.msra.mxu0 %v95
    %122 = vmatpush.msra.mxu0 %v94
    %123 = vmatpush.msra.mxu0 %v93
    %124 = vmatpush.msra.mxu0 %v92
    %125 = vmatpush.msra.mxu0 %v91
    %126 = vmatpush.msra.mxu0 %v90
    %127 = vmatpush.msra.mxu0 %v89
    %128 = vmatpush.msra.mxu0 %v88
    %129 = vmatmul.f32.gmra.mxu0 %v102
    %v130 = vpop.f32.mrf.mxu0
    %v131 = vadd.f32 0.0, %v130
    %132 = vmatmul.f32.gmra.mxu0 %v105
    %v133 = vpop.f32.mrf.mxu0
    %v134 = vadd.f32 0.0, %v133
    %135 = vmatmul.f32.gmra.mxu0 %v108
    %v136 = vpop.f32.mrf.mxu0
    %v137 = vadd.f32 0.0, %v136
    %138 = vmatmul.f32.gmra.mxu0 %v111
    %v139 = vpop.f32.mrf.mxu0
    %v140 = vadd.f32 0.0, %v139
    %141 = vdwg.mxu0
    %v142 = vld [vmem:[%s5] sm:$0xff]
    %v143 = vld [vmem:[%s5 + $0x8] sm:$0xff]
    %v144 = vld [vmem:[%s5 + $0x10] sm:$0xff]
    %v145 = vld [vmem:[%s5 + $0x18] sm:$0xff]
    %v146 = vld [vmem:[%s5 + $0x20] sm:$0xff]
    %v147 = vld [vmem:[%s5 + $0x28] sm:$0xff]
    %v148 = vld [vmem:[%s5 + $0x30] sm:$0xff]
    %v149 = vld [vmem:[%s5 + $0x38] sm:$0xff]
    %v150 = vld [vmem:[%s5 + $0x40] sm:$0xff]
    %v151 = vld [vmem:[%s5 + $0x48] sm:$0xff]
    %v152 = vld [vmem:[%s5 + $0x50] sm:$0xff]
    %v153 = vld [vmem:[%s5 + $0x58] sm:$0xff]
    %v154 = vld [vmem:[%s5 + $0x60] sm:$0xff]
    %v155 = vld [vmem:[%s5 + $0x68] sm:$0xff]
    %v156 = vld [vmem:[%s5 + $0x70] sm:$0xff]
    %v157 = vld [vmem:[%s5 + $0x78] sm:$0xff]
    %v158 = vld [vmem:[%s5 + $0x80] sm:$0xff]
    %v159 = vld [vmem:[%s5 + $0x88] sm:$0xff]
    %v160 = vld [vmem:[%s5 + $0x90] sm:$0xff]
    %v161 = vld [vmem:[%s5 + $0x98] sm:$0xff]
    %v162 = vld [vmem:[%s5 + $0xa0] sm:$0xff]
    %v163 = vld [vmem:[%s5 + $0xa8] sm:$0xff]
    %v164 = vld [vmem:[%s5 + $0xb0] sm:$0xff]
    %v165 = vld [vmem:[%s5 + $0xb8] sm:$0xff]
    %v166 = vld [vmem:[%s5 + $0xc0] sm:$0xff]
    %v167 = vld [vmem:[%s5 + $0xc8] sm:$0xff]
    %v168 = vld [vmem:[%s5 + $0xd0] sm:$0xff]
    %v169 = vld [vmem:[%s5 + $0xd8] sm:$0xff]
    %v170 = vld [vmem:[%s5 + $0xe0] sm:$0xff]
    %v171 = vld [vmem:[%s5 + $0xe8] sm:$0xff]
    %v172 = vld [vmem:[%s5 + $0xf0] sm:$0xff]
    %v173 = vld [vmem:[%s5 + $0xf8] sm:$0xff]
    %v174 = vld [vmem:[%s5 + $0x100] sm:$0xff]
    %v175 = vld [vmem:[%s5 + $0x108] sm:$0xff]
    %v176 = vld [vmem:[%s5 + $0x110] sm:$0xff]
    %v177 = vld [vmem:[%s5 + $0x118] sm:$0xff]
    %v178 = vld [vmem:[%s5 + $0x120] sm:$0xff]
    %v179 = vld [vmem:[%s5 + $0x128] sm:$0xff]
    %v180 = vld [vmem:[%s5 + $0x130] sm:$0xff]
    %v181 = vld [vmem:[%s5 + $0x138] sm:$0xff]
    %v182 = vld [vmem:[%s5 + $0x140] sm:$0xff]
    %v183 = vld [vmem:[%s5 + $0x148] sm:$0xff]
    %v184 = vld [vmem:[%s5 + $0x150] sm:$0xff]
    %v185 = vld [vmem:[%s5 + $0x158] sm:$0xff]
    %v186 = vld [vmem:[%s5 + $0x160] sm:$0xff]
    %v187 = vld [vmem:[%s5 + $0x168] sm:$0xff]
    %v188 = vld [vmem:[%s5 + $0x170] sm:$0xff]
    %v189 = vld [vmem:[%s5 + $0x178] sm:$0xff]
    %v190 = vld [vmem:[%s5 + $0x180] sm:$0xff]
    %v191 = vld [vmem:[%s5 + $0x188] sm:$0xff]
    %v192 = vld [vmem:[%s5 + $0x190] sm:$0xff]
    %v193 = vld [vmem:[%s5 + $0x198] sm:$0xff]
    %v194 = vld [vmem:[%s5 + $0x1a0] sm:$0xff]
    %v195 = vld [vmem:[%s5 + $0x1a8] sm:$0xff]
    %v196 = vld [vmem:[%s5 + $0x1b0] sm:$0xff]
    %v197 = vld [vmem:[%s5 + $0x1b8] sm:$0xff]
    %v198 = vld [vmem:[%s5 + $0x1c0] sm:$0xff]
    %v199 = vld [vmem:[%s5 + $0x1c8] sm:$0xff]
    %v200 = vld [vmem:[%s5 + $0x1d0] sm:$0xff]
    %v201 = vld [vmem:[%s5 + $0x1d8] sm:$0xff]
    %v202 = vld [vmem:[%s5 + $0x1e0] sm:$0xff]
    %v203 = vld [vmem:[%s5 + $0x1e8] sm:$0xff]
    %v204 = vld [vmem:[%s5 + $0x1f0] sm:$0xff]
    %v205 = vld [vmem:[%s5 + $0x1f8] sm:$0xff]
    %s206 = scalar_lea.vmem %s4, 32
    %v207 = vld [vmem:[%s206] sm:$0xff]
    %v208 = vld [vmem:[%s206 + $0x8] sm:$0xff]
    %v209 = vld [vmem:[%s206 + $0x10] sm:$0xff]
    %v210 = vld [vmem:[%s206 + $0x18] sm:$0x3f]
    %v212 = vsel %vm100, %v207, 0
    %v215 = vsel %vm100, %v208, 0
    %v218 = vsel %vm100, %v209, 0
    %v221 = vsel %vm100, %v210, 0
    %223 = vmatpush.msra.mxu0 0.0
    %224 = vmatpush.msra.mxu0 0.0
    %225 = vmatpush.msra.mxu0 0.0
    %226 = vmatpush.msra.mxu0 0.0
    %227 = vmatpush.msra.mxu0 0.0
    %228 = vmatpush.msra.mxu0 0.0
    %229 = vmatpush.msra.mxu0 0.0
    %230 = vmatpush.msra.mxu0 0.0
    %231 = vmatpush.msra.mxu0 %v95
    %232 = vmatpush.msra.mxu0 %v94
    %233 = vmatpush.msra.mxu0 %v93
    %234 = vmatpush.msra.mxu0 %v92
    %235 = vmatpush.msra.mxu0 %v91
    %236 = vmatpush.msra.mxu0 %v90
    %237 = vmatpush.msra.mxu0 %v89
    %238 = vmatpush.msra.mxu0 %v88
    %239 = vmatmul.f32.gmra.mxu0 %v212
    %v240 = vpop.f32.mrf.mxu0
    %v241 = vadd.f32 0.0, %v240
    %242 = vmatmul.f32.gmra.mxu0 %v215
    %v243 = vpop.f32.mrf.mxu0
    %v244 = vadd.f32 0.0, %v243
    %245 = vmatmul.f32.gmra.mxu0 %v218
    %v246 = vpop.f32.mrf.mxu0
    %v247 = vadd.f32 0.0, %v246
    %248 = vmatmul.f32.gmra.mxu0 %v221
    %v249 = vpop.f32.mrf.mxu0
    %v250 = vadd.f32 0.0, %v249
    %251 = vdwg.mxu0
    %s252 = scalar_lea.vmem %s5, 512
    %v253 = vld [vmem:[%s252] sm:$0xff]
    %v254 = vld [vmem:[%s252 + $0x8] sm:$0xff]
    %v255 = vld [vmem:[%s252 + $0x10] sm:$0xff]
    %v256 = vld [vmem:[%s252 + $0x18] sm:$0xff]
    %v257 = vld [vmem:[%s252 + $0x20] sm:$0xff]
    %v258 = vld [vmem:[%s252 + $0x28] sm:$0xff]
    %v259 = vld [vmem:[%s252 + $0x30] sm:$0xff]
    %v260 = vld [vmem:[%s252 + $0x38] sm:$0xff]
    %v261 = vld [vmem:[%s252 + $0x40] sm:$0xff]
    %v262 = vld [vmem:[%s252 + $0x48] sm:$0xff]
    %v263 = vld [vmem:[%s252 + $0x50] sm:$0xff]
    %v264 = vld [vmem:[%s252 + $0x58] sm:$0xff]
    %v265 = vld [vmem:[%s252 + $0x60] sm:$0xff]
    %v266 = vld [vmem:[%s252 + $0x68] sm:$0xff]
    %v267 = vld [vmem:[%s252 + $0x70] sm:$0xff]
    %v268 = vld [vmem:[%s252 + $0x78] sm:$0xff]
    %v269 = vld [vmem:[%s252 + $0x80] sm:$0xff]
    %v270 = vld [vmem:[%s252 + $0x88] sm:$0xff]
    %v271 = vld [vmem:[%s252 + $0x90] sm:$0xff]
    %v272 = vld [vmem:[%s252 + $0x98] sm:$0xff]
    %v273 = vld [vmem:[%s252 + $0xa0] sm:$0xff]
    %v274 = vld [vmem:[%s252 + $0xa8] sm:$0xff]
    %v275 = vld [vmem:[%s252 + $0xb0] sm:$0xff]
    %v276 = vld [vmem:[%s252 + $0xb8] sm:$0xff]
    %v277 = vld [vmem:[%s252 + $0xc0] sm:$0xff]
    %v278 = vld [vmem:[%s252 + $0xc8] sm:$0xff]
    %v279 = vld [vmem:[%s252 + $0xd0] sm:$0xff]
    %v280 = vld [vmem:[%s252 + $0xd8] sm:$0xff]
    %v281 = vld [vmem:[%s252 + $0xe0] sm:$0xff]
    %v282 = vld [vmem:[%s252 + $0xe8] sm:$0xff]
    %v283 = vld [vmem:[%s252 + $0xf0] sm:$0xff]
    %v284 = vld [vmem:[%s252 + $0xf8] sm:$0xff]
    %v285 = vld [vmem:[%s252 + $0x100] sm:$0xff]
    %v286 = vld [vmem:[%s252 + $0x108] sm:$0xff]
    %v287 = vld [vmem:[%s252 + $0x110] sm:$0xff]
    %v288 = vld [vmem:[%s252 + $0x118] sm:$0xff]
    %v289 = vld [vmem:[%s252 + $0x120] sm:$0xff]
    %v290 = vld [vmem:[%s252 + $0x128] sm:$0xff]
    %v291 = vld [vmem:[%s252 + $0x130] sm:$0xff]
    %v292 = vld [vmem:[%s252 + $0x138] sm:$0xff]
    %v293 = vld [vmem:[%s252 + $0x140] sm:$0xff]
    %v294 = vld [vmem:[%s252 + $0x148] sm:$0xff]
    %v295 = vld [vmem:[%s252 + $0x150] sm:$0xff]
    %v296 = vld [vmem:[%s252 + $0x158] sm:$0xff]
    %v297 = vld [vmem:[%s252 + $0x160] sm:$0xff]
    %v298 = vld [vmem:[%s252 + $0x168] sm:$0xff]
    %v299 = vld [vmem:[%s252 + $0x170] sm:$0xff]
    %v300 = vld [vmem:[%s252 + $0x178] sm:$0xff]
    %v301 = vld [vmem:[%s252 + $0x180] sm:$0xff]
    %v302 = vld [vmem:[%s252 + $0x188] sm:$0xff]
    %v303 = vld [vmem:[%s252 + $0x190] sm:$0xff]
    %v304 = vld [vmem:[%s252 + $0x198] sm:$0xff]
    %v305 = vld [vmem:[%s252 + $0x1a0] sm:$0xff]
    %v306 = vld [vmem:[%s252 + $0x1a8] sm:$0xff]
    %v307 = vld [vmem:[%s252 + $0x1b0] sm:$0xff]
    %v308 = vld [vmem:[%s252 + $0x1b8] sm:$0xff]
    %v309 = vld [vmem:[%s252 + $0x1c0] sm:$0xff]
    %v310 = vld [vmem:[%s252 + $0x1c8] sm:$0xff]
    %v311 = vld [vmem:[%s252 + $0x1d0] sm:$0xff]
    %v312 = vld [vmem:[%s252 + $0x1d8] sm:$0xff]
    %v313 = vld [vmem:[%s252 + $0x1e0] sm:$0xff]
    %v314 = vld [vmem:[%s252 + $0x1e8] sm:$0xff]
    %v315 = vld [vmem:[%s252 + $0x1f0] sm:$0xff]
    %v316 = vld [vmem:[%s252 + $0x1f8] sm:$0xff]
    %317 = vmatpush.msra.mxu0 %v313
    %318 = vmatpush.msra.mxu0 %v309
    %319 = vmatpush.msra.mxu0 %v305
    %320 = vmatpush.msra.mxu0 %v301
    %321 = vmatpush.msra.mxu0 %v297
    %322 = vmatpush.msra.mxu0 %v293
    %323 = vmatpush.msra.mxu0 %v289
    %324 = vmatpush.msra.mxu0 %v285
    %325 = vmatpush.msra.mxu0 %v281
    %326 = vmatpush.msra.mxu0 %v277
    %327 = vmatpush.msra.mxu0 %v273
    %328 = vmatpush.msra.mxu0 %v269
    %329 = vmatpush.msra.mxu0 %v265
    %330 = vmatpush.msra.mxu0 %v261
    %331 = vmatpush.msra.mxu0 %v257
    %332 = vmatpush.msra.mxu0 %v253
    %333 = vmatmul.f32.gmra.mxu0 %v241
    %v334 = vpop.f32.mrf.mxu0
    %v335 = vadd.f32 0.0, %v334
    %336 = vmatmul.f32.gmra.mxu0 %v244
    %v337 = vpop.f32.mrf.mxu0
    %v338 = vadd.f32 0.0, %v337
    %339 = vmatmul.f32.gmra.mxu0 %v247
    %v340 = vpop.f32.mrf.mxu0
    %v341 = vadd.f32 0.0, %v340
    %342 = vmatmul.f32.gmra.mxu0 %v250
    %v343 = vpop.f32.mrf.mxu0
    %v344 = vadd.f32 0.0, %v343
    %345 = vdwg.mxu0
    %346 = vmatpush.msra.mxu0 %v314
    %347 = vmatpush.msra.mxu0 %v310
    %348 = vmatpush.msra.mxu0 %v306
    %349 = vmatpush.msra.mxu0 %v302
    %350 = vmatpush.msra.mxu0 %v298
    %351 = vmatpush.msra.mxu0 %v294
    %352 = vmatpush.msra.mxu0 %v290
    %353 = vmatpush.msra.mxu0 %v286
    %354 = vmatpush.msra.mxu0 %v282
    %355 = vmatpush.msra.mxu0 %v278
    %356 = vmatpush.msra.mxu0 %v274
    %357 = vmatpush.msra.mxu0 %v270
    %358 = vmatpush.msra.mxu0 %v266
    %359 = vmatpush.msra.mxu0 %v262
    %360 = vmatpush.msra.mxu0 %v258
    %361 = vmatpush.msra.mxu0 %v254
    %362 = vmatmul.f32.gmra.mxu0 %v241
    %v363 = vpop.f32.mrf.mxu0
    %v364 = vadd.f32 0.0, %v363
    %365 = vmatmul.f32.gmra.mxu0 %v244
    %v366 = vpop.f32.mrf.mxu0
    %v367 = vadd.f32 0.0, %v366
    %368 = vmatmul.f32.gmra.mxu0 %v247
    %v369 = vpop.f32.mrf.mxu0
    %v370 = vadd.f32 0.0, %v369
    %371 = vmatmul.f32.gmra.mxu0 %v250
    %v372 = vpop.f32.mrf.mxu0
    %v373 = vadd.f32 0.0, %v372
    %374 = vdwg.mxu0
    %375 = vmatpush.msra.mxu0 %v315
    %376 = vmatpush.msra.mxu0 %v311
    %377 = vmatpush.msra.mxu0 %v307
    %378 = vmatpush.msra.mxu0 %v303
    %379 = vmatpush.msra.mxu0 %v299
    %380 = vmatpush.msra.mxu0 %v295
    %381 = vmatpush.msra.mxu0 %v291
    %382 = vmatpush.msra.mxu0 %v287
    %383 = vmatpush.msra.mxu0 %v283
    %384 = vmatpush.msra.mxu0 %v279
    %385 = vmatpush.msra.mxu0 %v275
    %386 = vmatpush.msra.mxu0 %v271
    %387 = vmatpush.msra.mxu0 %v267
    %388 = vmatpush.msra.mxu0 %v263
    %389 = vmatpush.msra.mxu0 %v259
    %390 = vmatpush.msra.mxu0 %v255
    %391 = vmatmul.f32.gmra.mxu0 %v241
    %v392 = vpop.f32.mrf.mxu0
    %v393 = vadd.f32 0.0, %v392
    %394 = vmatmul.f32.gmra.mxu0 %v244
    %v395 = vpop.f32.mrf.mxu0
    %v396 = vadd.f32 0.0, %v395
    %397 = vmatmul.f32.gmra.mxu0 %v247
    %v398 = vpop.f32.mrf.mxu0
    %v399 = vadd.f32 0.0, %v398
    %400 = vmatmul.f32.gmra.mxu0 %v250
    %v401 = vpop.f32.mrf.mxu0
    %v402 = vadd.f32 0.0, %v401
    %403 = vdwg.mxu0
    %404 = vmatpush.msra.mxu0 %v316
    %405 = vmatpush.msra.mxu0 %v312
    %406 = vmatpush.msra.mxu0 %v308
    %407 = vmatpush.msra.mxu0 %v304
    %408 = vmatpush.msra.mxu0 %v300
    %409 = vmatpush.msra.mxu0 %v296
    %410 = vmatpush.msra.mxu0 %v292
    %411 = vmatpush.msra.mxu0 %v288
    %412 = vmatpush.msra.mxu0 %v284
    %413 = vmatpush.msra.mxu0 %v280
    %414 = vmatpush.msra.mxu0 %v276
    %415 = vmatpush.msra.mxu0 %v272
    %416 = vmatpush.msra.mxu0 %v268
    %417 = vmatpush.msra.mxu0 %v264
    %418 = vmatpush.msra.mxu0 %v260
    %419 = vmatpush.msra.mxu0 %v256
    %420 = vmatmul.f32.gmra.mxu0 %v241
    %v421 = vpop.f32.mrf.mxu0
    %v422 = vadd.f32 0.0, %v421
    %423 = vmatmul.f32.gmra.mxu0 %v244
    %v424 = vpop.f32.mrf.mxu0
    %v425 = vadd.f32 0.0, %v424
    %426 = vmatmul.f32.gmra.mxu0 %v247
    %v427 = vpop.f32.mrf.mxu0
    %v428 = vadd.f32 0.0, %v427
    %429 = vmatmul.f32.gmra.mxu0 %v250
    %v430 = vpop.f32.mrf.mxu0
    %v431 = vadd.f32 0.0, %v430
    %432 = vdwg.mxu0
    %433 = vmatpush.msra.mxu0 %v202
    %434 = vmatpush.msra.mxu0 %v198
    %435 = vmatpush.msra.mxu0 %v194
    %436 = vmatpush.msra.mxu0 %v190
    %437 = vmatpush.msra.mxu0 %v186
    %438 = vmatpush.msra.mxu0 %v182
    %439 = vmatpush.msra.mxu0 %v178
    %440 = vmatpush.msra.mxu0 %v174
    %441 = vmatpush.msra.mxu0 %v170
    %442 = vmatpush.msra.mxu0 %v166
    %443 = vmatpush.msra.mxu0 %v162
    %444 = vmatpush.msra.mxu0 %v158
    %445 = vmatpush.msra.mxu0 %v154
    %446 = vmatpush.msra.mxu0 %v150
    %447 = vmatpush.msra.mxu0 %v146
    %448 = vmatpush.msra.mxu0 %v142
    %449 = vmatmul.f32.gmra.mxu0 %v131
    %v450 = vpop.f32.mrf.mxu0
    %v451 = vadd.f32 %v335, %v450
    %452 = vmatmul.f32.gmra.mxu0 %v134
    %v453 = vpop.f32.mrf.mxu0
    %v454 = vadd.f32 %v338, %v453
    %455 = vmatmul.f32.gmra.mxu0 %v137
    %v456 = vpop.f32.mrf.mxu0
    %v457 = vadd.f32 %v341, %v456
    %458 = vmatmul.f32.gmra.mxu0 %v140
    %v459 = vpop.f32.mrf.mxu0
    %v460 = vadd.f32 %v344, %v459
    %461 = vdwg.mxu0
    %462 = vmatpush.msra.mxu0 %v203
    %463 = vmatpush.msra.mxu0 %v199
    %464 = vmatpush.msra.mxu0 %v195
    %465 = vmatpush.msra.mxu0 %v191
    %466 = vmatpush.msra.mxu0 %v187
    %467 = vmatpush.msra.mxu0 %v183
    %468 = vmatpush.msra.mxu0 %v179
    %469 = vmatpush.msra.mxu0 %v175
    %470 = vmatpush.msra.mxu0 %v171
    %471 = vmatpush.msra.mxu0 %v167
    %472 = vmatpush.msra.mxu0 %v163
    %473 = vmatpush.msra.mxu0 %v159
    %474 = vmatpush.msra.mxu0 %v155
    %475 = vmatpush.msra.mxu0 %v151
    %476 = vmatpush.msra.mxu0 %v147
    %477 = vmatpush.msra.mxu0 %v143
    %478 = vmatmul.f32.gmra.mxu0 %v131
    %v479 = vpop.f32.mrf.mxu0
    %v480 = vadd.f32 %v364, %v479
    %481 = vmatmul.f32.gmra.mxu0 %v134
    %v482 = vpop.f32.mrf.mxu0
    %v483 = vadd.f32 %v367, %v482
    %484 = vmatmul.f32.gmra.mxu0 %v137
    %v485 = vpop.f32.mrf.mxu0
    %v486 = vadd.f32 %v370, %v485
    %487 = vmatmul.f32.gmra.mxu0 %v140
    %v488 = vpop.f32.mrf.mxu0
    %v489 = vadd.f32 %v373, %v488
    %490 = vdwg.mxu0
    %491 = vmatpush.msra.mxu0 %v204
    %492 = vmatpush.msra.mxu0 %v200
    %493 = vmatpush.msra.mxu0 %v196
    %494 = vmatpush.msra.mxu0 %v192
    %495 = vmatpush.msra.mxu0 %v188
    %496 = vmatpush.msra.mxu0 %v184
    %497 = vmatpush.msra.mxu0 %v180
    %498 = vmatpush.msra.mxu0 %v176
    %499 = vmatpush.msra.mxu0 %v172
    %500 = vmatpush.msra.mxu0 %v168
    %501 = vmatpush.msra.mxu0 %v164
    %502 = vmatpush.msra.mxu0 %v160
    %503 = vmatpush.msra.mxu0 %v156
    %504 = vmatpush.msra.mxu0 %v152
    %505 = vmatpush.msra.mxu0 %v148
    %506 = vmatpush.msra.mxu0 %v144
    %507 = vmatmul.f32.gmra.mxu0 %v131
    %v508 = vpop.f32.mrf.mxu0
    %v509 = vadd.f32 %v393, %v508
    %510 = vmatmul.f32.gmra.mxu0 %v134
    %v511 = vpop.f32.mrf.mxu0
    %v512 = vadd.f32 %v396, %v511
    %513 = vmatmul.f32.gmra.mxu0 %v137
    %v514 = vpop.f32.mrf.mxu0
    %v515 = vadd.f32 %v399, %v514
    %516 = vmatmul.f32.gmra.mxu0 %v140
    %v517 = vpop.f32.mrf.mxu0
    %v518 = vadd.f32 %v402, %v517
    %519 = vdwg.mxu0
    %520 = vmatpush.msra.mxu0 %v205
    %521 = vmatpush.msra.mxu0 %v201
    %522 = vmatpush.msra.mxu0 %v197
    %523 = vmatpush.msra.mxu0 %v193
    %524 = vmatpush.msra.mxu0 %v189
    %525 = vmatpush.msra.mxu0 %v185
    %526 = vmatpush.msra.mxu0 %v181
    %527 = vmatpush.msra.mxu0 %v177
    %528 = vmatpush.msra.mxu0 %v173
    %529 = vmatpush.msra.mxu0 %v169
    %530 = vmatpush.msra.mxu0 %v165
    %531 = vmatpush.msra.mxu0 %v161
    %532 = vmatpush.msra.mxu0 %v157
    %533 = vmatpush.msra.mxu0 %v153
    %534 = vmatpush.msra.mxu0 %v149
    %535 = vmatpush.msra.mxu0 %v145
    %536 = vmatmul.f32.gmra.mxu0 %v131
    %v537 = vpop.f32.mrf.mxu0
    %v538 = vadd.f32 %v422, %v537
    %539 = vmatmul.f32.gmra.mxu0 %v134
    %v540 = vpop.f32.mrf.mxu0
    %v541 = vadd.f32 %v425, %v540
    %542 = vmatmul.f32.gmra.mxu0 %v137
    %v543 = vpop.f32.mrf.mxu0
    %v544 = vadd.f32 %v428, %v543
    %545 = vmatmul.f32.gmra.mxu0 %v140
    %v546 = vpop.f32.mrf.mxu0
    %v547 = vadd.f32 %v431, %v546
    %548 = vdwg.mxu0
    %s549 = scalar_lea.vmem %s4, 64
    %v550 = vld [vmem:[%s549] sm:$0xff]
    %v551 = vld [vmem:[%s549 + $0x8] sm:$0xff]
    %v552 = vld [vmem:[%s549 + $0x10] sm:$0xff]
    %v553 = vld [vmem:[%s549 + $0x18] sm:$0x3f]
    %v555 = vsel %vm100, %v550, 0
    %v558 = vsel %vm100, %v551, 0
    %v561 = vsel %vm100, %v552, 0
    %v564 = vsel %vm100, %v553, 0
    %566 = vmatpush.msra.mxu0 0.0
    %567 = vmatpush.msra.mxu0 0.0
    %568 = vmatpush.msra.mxu0 0.0
    %569 = vmatpush.msra.mxu0 0.0
    %570 = vmatpush.msra.mxu0 0.0
    %571 = vmatpush.msra.mxu0 0.0
    %572 = vmatpush.msra.mxu0 0.0
    %573 = vmatpush.msra.mxu0 0.0
    %574 = vmatpush.msra.mxu0 %v95
    %575 = vmatpush.msra.mxu0 %v94
    %576 = vmatpush.msra.mxu0 %v93
    %577 = vmatpush.msra.mxu0 %v92
    %578 = vmatpush.msra.mxu0 %v91
    %579 = vmatpush.msra.mxu0 %v90
    %580 = vmatpush.msra.mxu0 %v89
    %581 = vmatpush.msra.mxu0 %v88
    %582 = vmatmul.f32.gmra.mxu0 %v555
    %v583 = vpop.f32.mrf.mxu0
    %v584 = vadd.f32 0.0, %v583
    %585 = vmatmul.f32.gmra.mxu0 %v558
    %v586 = vpop.f32.mrf.mxu0
    %v587 = vadd.f32 0.0, %v586
    %588 = vmatmul.f32.gmra.mxu0 %v561
    %v589 = vpop.f32.mrf.mxu0
    %v590 = vadd.f32 0.0, %v589
    %591 = vmatmul.f32.gmra.mxu0 %v564
    %v592 = vpop.f32.mrf.mxu0
    %v593 = vadd.f32 0.0, %v592
    %594 = vdwg.mxu0
    %s595 = scalar_lea.vmem %s5, 1024
    %v596 = vld [vmem:[%s595] sm:$0xff]
    %v597 = vld [vmem:[%s595 + $0x8] sm:$0xff]
    %v598 = vld [vmem:[%s595 + $0x10] sm:$0xff]
    %v599 = vld [vmem:[%s595 + $0x18] sm:$0xff]
    %v600 = vld [vmem:[%s595 + $0x20] sm:$0xff]
    %v601 = vld [vmem:[%s595 + $0x28] sm:$0xff]
    %v602 = vld [vmem:[%s595 + $0x30] sm:$0xff]
    %v603 = vld [vmem:[%s595 + $0x38] sm:$0xff]
    %v604 = vld [vmem:[%s595 + $0x40] sm:$0xff]
    %v605 = vld [vmem:[%s595 + $0x48] sm:$0xff]
    %v606 = vld [vmem:[%s595 + $0x50] sm:$0xff]
    %v607 = vld [vmem:[%s595 + $0x58] sm:$0xff]
    %v608 = vld [vmem:[%s595 + $0x60] sm:$0xff]
    %v609 = vld [vmem:[%s595 + $0x68] sm:$0xff]
    %v610 = vld [vmem:[%s595 + $0x70] sm:$0xff]
    %v611 = vld [vmem:[%s595 + $0x78] sm:$0xff]
    %v612 = vld [vmem:[%s595 + $0x80] sm:$0xff]
    %v613 = vld [vmem:[%s595 + $0x88] sm:$0xff]
    %v614 = vld [vmem:[%s595 + $0x90] sm:$0xff]
    %v615 = vld [vmem:[%s595 + $0x98] sm:$0xff]
    %v616 = vld [vmem:[%s595 + $0xa0] sm:$0xff]
    %v617 = vld [vmem:[%s595 + $0xa8] sm:$0xff]
    %v618 = vld [vmem:[%s595 + $0xb0] sm:$0xff]
    %v619 = vld [vmem:[%s595 + $0xb8] sm:$0xff]
    %v620 = vld [vmem:[%s595 + $0xc0] sm:$0xff]
    %v621 = vld [vmem:[%s595 + $0xc8] sm:$0xff]
    %v622 = vld [vmem:[%s595 + $0xd0] sm:$0xff]
    %v623 = vld [vmem:[%s595 + $0xd8] sm:$0xff]
    %v624 = vld [vmem:[%s595 + $0xe0] sm:$0xff]
    %v625 = vld [vmem:[%s595 + $0xe8] sm:$0xff]
    %v626 = vld [vmem:[%s595 + $0xf0] sm:$0xff]
    %v627 = vld [vmem:[%s595 + $0xf8] sm:$0xff]
    %v628 = vld [vmem:[%s595 + $0x100] sm:$0xff]
    %v629 = vld [vmem:[%s595 + $0x108] sm:$0xff]
    %v630 = vld [vmem:[%s595 + $0x110] sm:$0xff]
    %v631 = vld [vmem:[%s595 + $0x118] sm:$0xff]
    %v632 = vld [vmem:[%s595 + $0x120] sm:$0xff]
    %v633 = vld [vmem:[%s595 + $0x128] sm:$0xff]
    %v634 = vld [vmem:[%s595 + $0x130] sm:$0xff]
    %v635 = vld [vmem:[%s595 + $0x138] sm:$0xff]
    %v636 = vld [vmem:[%s595 + $0x140] sm:$0xff]
    %v637 = vld [vmem:[%s595 + $0x148] sm:$0xff]
    %v638 = vld [vmem:[%s595 + $0x150] sm:$0xff]
    %v639 = vld [vmem:[%s595 + $0x158] sm:$0xff]
    %v640 = vld [vmem:[%s595 + $0x160] sm:$0xff]
    %v641 = vld [vmem:[%s595 + $0x168] sm:$0xff]
    %v642 = vld [vmem:[%s595 + $0x170] sm:$0xff]
    %v643 = vld [vmem:[%s595 + $0x178] sm:$0xff]
    %v644 = vld [vmem:[%s595 + $0x180] sm:$0xff]
    %v645 = vld [vmem:[%s595 + $0x188] sm:$0xff]
    %v646 = vld [vmem:[%s595 + $0x190] sm:$0xff]
    %v647 = vld [vmem:[%s595 + $0x198] sm:$0xff]
    %v648 = vld [vmem:[%s595 + $0x1a0] sm:$0xff]
    %v649 = vld [vmem:[%s595 + $0x1a8] sm:$0xff]
    %v650 = vld [vmem:[%s595 + $0x1b0] sm:$0xff]
    %v651 = vld [vmem:[%s595 + $0x1b8] sm:$0xff]
    %v652 = vld [vmem:[%s595 + $0x1c0] sm:$0xff]
    %v653 = vld [vmem:[%s595 + $0x1c8] sm:$0xff]
    %v654 = vld [vmem:[%s595 + $0x1d0] sm:$0xff]
    %v655 = vld [vmem:[%s595 + $0x1d8] sm:$0xff]
    %v656 = vld [vmem:[%s595 + $0x1e0] sm:$0xff]
    %v657 = vld [vmem:[%s595 + $0x1e8] sm:$0xff]
    %v658 = vld [vmem:[%s595 + $0x1f0] sm:$0xff]
    %v659 = vld [vmem:[%s595 + $0x1f8] sm:$0xff]
    %660 = vmatpush.msra.mxu0 %v656
    %661 = vmatpush.msra.mxu0 %v652
    %662 = vmatpush.msra.mxu0 %v648
    %663 = vmatpush.msra.mxu0 %v644
    %664 = vmatpush.msra.mxu0 %v640
    %665 = vmatpush.msra.mxu0 %v636
    %666 = vmatpush.msra.mxu0 %v632
    %667 = vmatpush.msra.mxu0 %v628
    %668 = vmatpush.msra.mxu0 %v624
    %669 = vmatpush.msra.mxu0 %v620
    %670 = vmatpush.msra.mxu0 %v616
    %671 = vmatpush.msra.mxu0 %v612
    %672 = vmatpush.msra.mxu0 %v608
    %673 = vmatpush.msra.mxu0 %v604
    %674 = vmatpush.msra.mxu0 %v600
    %675 = vmatpush.msra.mxu0 %v596
    %676 = vmatmul.f32.gmra.mxu0 %v584
    %v677 = vpop.f32.mrf.mxu0
    %v678 = vadd.f32 0.0, %v677
    %679 = vmatmul.f32.gmra.mxu0 %v587
    %v680 = vpop.f32.mrf.mxu0
    %v681 = vadd.f32 0.0, %v680
    %682 = vmatmul.f32.gmra.mxu0 %v590
    %v683 = vpop.f32.mrf.mxu0
    %v684 = vadd.f32 0.0, %v683
    %685 = vmatmul.f32.gmra.mxu0 %v593
    %v686 = vpop.f32.mrf.mxu0
    %v687 = vadd.f32 0.0, %v686
    %688 = vdwg.mxu0
    %689 = vmatpush.msra.mxu0 %v657
    %690 = vmatpush.msra.mxu0 %v653
    %691 = vmatpush.msra.mxu0 %v649
    %692 = vmatpush.msra.mxu0 %v645
    %693 = vmatpush.msra.mxu0 %v641
    %694 = vmatpush.msra.mxu0 %v637
    %695 = vmatpush.msra.mxu0 %v633
    %696 = vmatpush.msra.mxu0 %v629
    %697 = vmatpush.msra.mxu0 %v625
    %698 = vmatpush.msra.mxu0 %v621
    %699 = vmatpush.msra.mxu0 %v617
    %700 = vmatpush.msra.mxu0 %v613
    %701 = vmatpush.msra.mxu0 %v609
    %702 = vmatpush.msra.mxu0 %v605
    %703 = vmatpush.msra.mxu0 %v601
    %704 = vmatpush.msra.mxu0 %v597
    %705 = vmatmul.f32.gmra.mxu0 %v584
    %v706 = vpop.f32.mrf.mxu0
    %v707 = vadd.f32 0.0, %v706
    %708 = vmatmul.f32.gmra.mxu0 %v587
    %v709 = vpop.f32.mrf.mxu0
    %v710 = vadd.f32 0.0, %v709
    %711 = vmatmul.f32.gmra.mxu0 %v590
    %v712 = vpop.f32.mrf.mxu0
    %v713 = vadd.f32 0.0, %v712
    %714 = vmatmul.f32.gmra.mxu0 %v593
    %v715 = vpop.f32.mrf.mxu0
    %v716 = vadd.f32 0.0, %v715
    %717 = vdwg.mxu0
    %718 = vmatpush.msra.mxu0 %v658
    %719 = vmatpush.msra.mxu0 %v654
    %720 = vmatpush.msra.mxu0 %v650
    %721 = vmatpush.msra.mxu0 %v646
    %722 = vmatpush.msra.mxu0 %v642
    %723 = vmatpush.msra.mxu0 %v638
    %724 = vmatpush.msra.mxu0 %v634
    %725 = vmatpush.msra.mxu0 %v630
    %726 = vmatpush.msra.mxu0 %v626
    %727 = vmatpush.msra.mxu0 %v622
    %728 = vmatpush.msra.mxu0 %v618
    %729 = vmatpush.msra.mxu0 %v614
    %730 = vmatpush.msra.mxu0 %v610
    %731 = vmatpush.msra.mxu0 %v606
    %732 = vmatpush.msra.mxu0 %v602
    %733 = vmatpush.msra.mxu0 %v598
    %734 = vmatmul.f32.gmra.mxu0 %v584
    %v735 = vpop.f32.mrf.mxu0
    %v736 = vadd.f32 0.0, %v735
    %737 = vmatmul.f32.gmra.mxu0 %v587
    %v738 = vpop.f32.mrf.mxu0
    %v739 = vadd.f32 0.0, %v738
    %740 = vmatmul.f32.gmra.mxu0 %v590
    %v741 = vpop.f32.mrf.mxu0
    %v742 = vadd.f32 0.0, %v741
    %743 = vmatmul.f32.gmra.mxu0 %v593
    %v744 = vpop.f32.mrf.mxu0
    %v745 = vadd.f32 0.0, %v744
    %746 = vdwg.mxu0
    %747 = vmatpush.msra.mxu0 %v659
    %748 = vmatpush.msra.mxu0 %v655
    %749 = vmatpush.msra.mxu0 %v651
    %750 = vmatpush.msra.mxu0 %v647
    %751 = vmatpush.msra.mxu0 %v643
    %752 = vmatpush.msra.mxu0 %v639
    %753 = vmatpush.msra.mxu0 %v635
    %754 = vmatpush.msra.mxu0 %v631
    %755 = vmatpush.msra.mxu0 %v627
    %756 = vmatpush.msra.mxu0 %v623
    %757 = vmatpush.msra.mxu0 %v619
    %758 = vmatpush.msra.mxu0 %v615
    %759 = vmatpush.msra.mxu0 %v611
    %760 = vmatpush.msra.mxu0 %v607
    %761 = vmatpush.msra.mxu0 %v603
    %762 = vmatpush.msra.mxu0 %v599
    %763 = vmatmul.f32.gmra.mxu0 %v584
    %v764 = vpop.f32.mrf.mxu0
    %v765 = vadd.f32 0.0, %v764
    %766 = vmatmul.f32.gmra.mxu0 %v587
    %v767 = vpop.f32.mrf.mxu0
    %v768 = vadd.f32 0.0, %v767
    %769 = vmatmul.f32.gmra.mxu0 %v590
    %v770 = vpop.f32.mrf.mxu0
    %v771 = vadd.f32 0.0, %v770
    %772 = vmatmul.f32.gmra.mxu0 %v593
    %v773 = vpop.f32.mrf.mxu0
    %v774 = vadd.f32 0.0, %v773
    %775 = vdwg.mxu0
    %v776 = vadd.f32 %v451, %v678
    %v777 = vadd.f32 %v480, %v707
    %v778 = vadd.f32 %v509, %v736
    %v779 = vadd.f32 %v538, %v765
    %v780 = vadd.f32 %v454, %v681
    %v781 = vadd.f32 %v483, %v710
    %v782 = vadd.f32 %v512, %v739
    %v783 = vadd.f32 %v541, %v768
    %v784 = vadd.f32 %v457, %v684
    %v785 = vadd.f32 %v486, %v713
    %v786 = vadd.f32 %v515, %v742
    %v787 = vadd.f32 %v544, %v771
    %v788 = vadd.f32 %v460, %v687
    %v789 = vadd.f32 %v489, %v716
    %v790 = vadd.f32 %v518, %v745
    %v791 = vadd.f32 %v547, %v774
    %v792 = vld [vmem:[%s6] sm:$0xf]
    %v794 = vperm.slane %v792, 0
    %v795 = vperm.slane %v792, 1
    %v796 = vperm.slane %v792, 2
    %v797 = vperm.slane %v792, 3
    %v802 = vadd.f32 %v776, %v794
    %v803 = vadd.f32 %v777, %v795
    %v804 = vadd.f32 %v778, %v796
    %v805 = vadd.f32 %v779, %v797
    %v806 = vadd.f32 %v780, %v794
    %v807 = vadd.f32 %v781, %v795
    %v808 = vadd.f32 %v782, %v796
    %v809 = vadd.f32 %v783, %v797
    %v810 = vadd.f32 %v784, %v794
    %v811 = vadd.f32 %v785, %v795
    %v812 = vadd.f32 %v786, %v796
    %v813 = vadd.f32 %v787, %v797
    %v814 = vadd.f32 %v788, %v794
    %v815 = vadd.f32 %v789, %v795
    %v816 = vadd.f32 %v790, %v796
    %v817 = vadd.f32 %v791, %v797
    %v818 = vmax.f32 %v802, 0.0
    %v819 = vmax.f32 %v803, 0.0
    %v820 = vmax.f32 %v804, 0.0
    %v821 = vmax.f32 %v805, 0.0
    %v822 = vmax.f32 %v806, 0.0
    %v823 = vmax.f32 %v807, 0.0
    %v824 = vmax.f32 %v808, 0.0
    %v825 = vmax.f32 %v809, 0.0
    %v826 = vmax.f32 %v810, 0.0
    %v827 = vmax.f32 %v811, 0.0
    %v828 = vmax.f32 %v812, 0.0
    %v829 = vmax.f32 %v813, 0.0
    %v830 = vmax.f32 %v814, 0.0
    %v831 = vmax.f32 %v815, 0.0
    %v832 = vmax.f32 %v816, 0.0
    %v833 = vmax.f32 %v817, 0.0
    %v834 = vld [vmem:[%s7] sm:$0xff]
    %v835 = vld [vmem:[%s7 + $0x8] sm:$0x3f]
    %vm836 = vcmask 244736
    %v838 = vsel %vm836, %v834, 0
    %v841 = vsel %vm836, %v835, 0
    %vm843 = vcmask 1045504
    %v845 = vsel %vm843, %v830, 0
    %v848 = vsel %vm843, %v831, 0
    %v851 = vsel %vm843, %v832, 0
    %v854 = vsel %vm843, %v833, 0
    %856 = vmatpush.msra.mxu0 0.0
    %857 = vmatpush.msra.mxu0 0.0
    %858 = vmatpush.msra.mxu0 0.0
    %859 = vmatpush.msra.mxu0 0.0
    %860 = vmatpush.msra.mxu0 0.0
    %861 = vmatpush.msra.mxu0 0.0
    %862 = vmatpush.msra.mxu0 0.0
    %863 = vmatpush.msra.mxu0 0.0
    %864 = vmatpush.msra.mxu0 0.0
    %865 = vmatpush.msra.mxu0 0.0
    %866 = vmatpush.msra.mxu0 0.0
    %867 = vmatpush.msra.mxu0 0.0
    %868 = vmatpush.msra.mxu0 %v845
    %869 = vmatpush.msra.mxu0 %v826
    %870 = vmatpush.msra.mxu0 %v822
    %871 = vmatpush.msra.mxu0 %v818
    %872 = vmatmul.f32.gmra.mxu0 %v838
    %v873 = vpop.f32.mrf.mxu0
    %v874 = vadd.f32 0.0, %v873
    %875 = vmatmul.f32.gmra.mxu0 %v841
    %v876 = vpop.f32.mrf.mxu0
    %v877 = vadd.f32 0.0, %v876
    %878 = vdwg.mxu0
    %879 = vmatpush.msra.mxu0 0.0
    %880 = vmatpush.msra.mxu0 0.0
    %881 = vmatpush.msra.mxu0 0.0
    %882 = vmatpush.msra.mxu0 0.0
    %883 = vmatpush.msra.mxu0 0.0
    %884 = vmatpush.msra.mxu0 0.0
    %885 = vmatpush.msra.mxu0 0.0
    %886 = vmatpush.msra.mxu0 0.0
    %887 = vmatpush.msra.mxu0 0.0
    %888 = vmatpush.msra.mxu0 0.0
    %889 = vmatpush.msra.mxu0 0.0
    %890 = vmatpush.msra.mxu0 0.0
    %891 = vmatpush.msra.mxu0 %v848
    %892 = vmatpush.msra.mxu0 %v827
    %893 = vmatpush.msra.mxu0 %v823
    %894 = vmatpush.msra.mxu0 %v819
    %895 = vmatmul.f32.gmra.mxu0 %v838
    %v896 = vpop.f32.mrf.mxu0
    %v897 = vadd.f32 0.0, %v896
    %898 = vmatmul.f32.gmra.mxu0 %v841
    %v899 = vpop.f32.mrf.mxu0
    %v900 = vadd.f32 0.0, %v899
    %901 = vdwg.mxu0
    %902 = vmatpush.msra.mxu0 0.0
    %903 = vmatpush.msra.mxu0 0.0
    %904 = vmatpush.msra.mxu0 0.0
    %905 = vmatpush.msra.mxu0 0.0
    %906 = vmatpush.msra.mxu0 0.0
    %907 = vmatpush.msra.mxu0 0.0
    %908 = vmatpush.msra.mxu0 0.0
    %909 = vmatpush.msra.mxu0 0.0
    %910 = vmatpush.msra.mxu0 0.0
    %911 = vmatpush.msra.mxu0 0.0
    %912 = vmatpush.msra.mxu0 0.0
    %913 = vmatpush.msra.mxu0 0.0
    %914 = vmatpush.msra.mxu0 %v851
    %915 = vmatpush.msra.mxu0 %v828
    %916 = vmatpush.msra.mxu0 %v824
    %917 = vmatpush.msra.mxu0 %v820
    %918 = vmatmul.f32.gmra.mxu0 %v838
    %v919 = vpop.f32.mrf.mxu0
    %v920 = vadd.f32 0.0, %v919
    %921 = vmatmul.f32.gmra.mxu0 %v841
    %v922 = vpop.f32.mrf.mxu0
    %v923 = vadd.f32 0.0, %v922
    %924 = vdwg.mxu0
    %925 = vmatpush.msra.mxu0 0.0
    %926 = vmatpush.msra.mxu0 0.0
    %927 = vmatpush.msra.mxu0 0.0
    %928 = vmatpush.msra.mxu0 0.0
    %929 = vmatpush.msra.mxu0 0.0
    %930 = vmatpush.msra.mxu0 0.0
    %931 = vmatpush.msra.mxu0 0.0
    %932 = vmatpush.msra.mxu0 0.0
    %933 = vmatpush.msra.mxu0 0.0
    %934 = vmatpush.msra.mxu0 0.0
    %935 = vmatpush.msra.mxu0 0.0
    %936 = vmatpush.msra.mxu0 0.0
    %937 = vmatpush.msra.mxu0 %v854
    %938 = vmatpush.msra.mxu0 %v829
    %939 = vmatpush.msra.mxu0 %v825
    %940 = vmatpush.msra.mxu0 %v821
    %941 = vmatmul.f32.gmra.mxu0 %v838
    %v942 = vpop.f32.mrf.mxu0
    %v943 = vadd.f32 0.0, %v942
    %944 = vmatmul.f32.gmra.mxu0 %v841
    %v945 = vpop.f32.mrf.mxu0
    %v946 = vadd.f32 0.0, %v945
    %947 = vdwg.mxu0
    %v948 = vld [vmem:[%s8] sm:$0xff]
    %v949 = vld [vmem:[%s8 + $0x8] sm:$0xff]
    %v950 = vld [vmem:[%s8 + $0x10] sm:$0xff]
    %v951 = vld [vmem:[%s8 + $0x18] sm:$0xff]
    %v952 = vld [vmem:[%s8 + $0x20] sm:$0xff]
    %v953 = vld [vmem:[%s8 + $0x28] sm:$0xff]
    %v954 = vld [vmem:[%s8 + $0x30] sm:$0xff]
    %v955 = vld [vmem:[%s8 + $0x38] sm:$0xff]
    %v956 = vld [vmem:[%s8 + $0x40] sm:$0xff]
    %v957 = vld [vmem:[%s8 + $0x48] sm:$0xff]
    %v958 = vld [vmem:[%s8 + $0x50] sm:$0xff]
    %v959 = vld [vmem:[%s8 + $0x58] sm:$0xff]
    %v960 = vld [vmem:[%s8 + $0x60] sm:$0xff]
    %v961 = vld [vmem:[%s8 + $0x68] sm:$0xff]
    %v962 = vld [vmem:[%s8 + $0x70] sm:$0xff]
    %v963 = vld [vmem:[%s8 + $0x78] sm:$0xff]
    %v964 = vld [vmem:[%s8 + $0x80] sm:$0xff]
    %v965 = vld [vmem:[%s8 + $0x88] sm:$0xff]
    %v966 = vld [vmem:[%s8 + $0x90] sm:$0xff]
    %v967 = vld [vmem:[%s8 + $0x98] sm:$0xff]
    %v968 = vld [vmem:[%s8 + $0xa0] sm:$0xff]
    %v969 = vld [vmem:[%s8 + $0xa8] sm:$0xff]
    %v970 = vld [vmem:[%s8 + $0xb0] sm:$0xff]
    %v971 = vld [vmem:[%s8 + $0xb8] sm:$0xff]
    %v972 = vld [vmem:[%s8 + $0xc0] sm:$0xff]
    %v973 = vld [vmem:[%s8 + $0xc8] sm:$0xff]
    %v974 = vld [vmem:[%s8 + $0xd0] sm:$0xff]
    %v975 = vld [vmem:[%s8 + $0xd8] sm:$0xff]
    %v976 = vld [vmem:[%s8 + $0xe0] sm:$0xff]
    %v977 = vld [vmem:[%s8 + $0xe8] sm:$0xff]
    %v978 = vld [vmem:[%s8 + $0xf0] sm:$0xff]
    %v979 = vld [vmem:[%s8 + $0xf8] sm:$0xff]
    %v980 = vld [vmem:[%s8 + $0x100] sm:$0xff]
    %v981 = vld [vmem:[%s8 + $0x108] sm:$0xff]
    %v982 = vld [vmem:[%s8 + $0x110] sm:$0xff]
    %v983 = vld [vmem:[%s8 + $0x118] sm:$0xff]
    %v984 = vld [vmem:[%s8 + $0x120] sm:$0xff]
    %v985 = vld [vmem:[%s8 + $0x128] sm:$0xff]
    %v986 = vld [vmem:[%s8 + $0x130] sm:$0xff]
    %v987 = vld [vmem:[%s8 + $0x138] sm:$0xff]
    %v988 = vld [vmem:[%s8 + $0x140] sm:$0xff]
    %v989 = vld [vmem:[%s8 + $0x148] sm:$0xff]
    %v990 = vld [vmem:[%s8 + $0x150] sm:$0xff]
    %v991 = vld [vmem:[%s8 + $0x158] sm:$0xff]
    %v992 = vld [vmem:[%s8 + $0x160] sm:$0xff]
    %v993 = vld [vmem:[%s8 + $0x168] sm:$0xff]
    %v994 = vld [vmem:[%s8 + $0x170] sm:$0xff]
    %v995 = vld [vmem:[%s8 + $0x178] sm:$0xff]
    %v996 = vld [vmem:[%s8 + $0x180] sm:$0xff]
    %v997 = vld [vmem:[%s8 + $0x188] sm:$0xff]
    %v998 = vld [vmem:[%s8 + $0x190] sm:$0xff]
    %v999 = vld [vmem:[%s8 + $0x198] sm:$0xff]
    %v1000 = vld [vmem:[%s8 + $0x1a0] sm:$0xff]
    %v1001 = vld [vmem:[%s8 + $0x1a8] sm:$0xff]
    %v1002 = vld [vmem:[%s8 + $0x1b0] sm:$0xff]
    %v1003 = vld [vmem:[%s8 + $0x1b8] sm:$0xff]
    %v1004 = vld [vmem:[%s8 + $0x1c0] sm:$0xff]
    %v1005 = vld [vmem:[%s8 + $0x1c8] sm:$0xff]
    %v1006 = vld [vmem:[%s8 + $0x1d0] sm:$0xff]
    %v1007 = vld [vmem:[%s8 + $0x1d8] sm:$0xff]
    %v1008 = vld [vmem:[%s8 + $0x1e0] sm:$0xff]
    %v1009 = vld [vmem:[%s8 + $0x1e8] sm:$0xff]
    %v1010 = vld [vmem:[%s8 + $0x1f0] sm:$0xff]
    %v1011 = vld [vmem:[%s8 + $0x1f8] sm:$0xff]
    %v1012 = vld [vmem:[%s8 + $0x200] sm:$0xff]
    %v1013 = vld [vmem:[%s8 + $0x208] sm:$0xff]
    %v1014 = vld [vmem:[%s8 + $0x210] sm:$0xff]
    %v1015 = vld [vmem:[%s8 + $0x218] sm:$0xff]
    %v1016 = vld [vmem:[%s8 + $0x220] sm:$0xff]
    %v1017 = vld [vmem:[%s8 + $0x228] sm:$0xff]
    %v1018 = vld [vmem:[%s8 + $0x230] sm:$0xff]
    %v1019 = vld [vmem:[%s8 + $0x238] sm:$0xff]
    %v1020 = vld [vmem:[%s8 + $0x240] sm:$0xff]
    %v1021 = vld [vmem:[%s8 + $0x248] sm:$0xff]
    %v1022 = vld [vmem:[%s8 + $0x250] sm:$0xff]
    %v1023 = vld [vmem:[%s8 + $0x258] sm:$0xff]
    %v1024 = vld [vmem:[%s8 + $0x260] sm:$0xff]
    %v1025 = vld [vmem:[%s8 + $0x268] sm:$0xff]
    %v1026 = vld [vmem:[%s8 + $0x270] sm:$0xff]
    %v1027 = vld [vmem:[%s8 + $0x278] sm:$0xff]
    %v1028 = vld [vmem:[%s8 + $0x280] sm:$0xff]
    %v1029 = vld [vmem:[%s8 + $0x288] sm:$0xff]
    %v1030 = vld [vmem:[%s8 + $0x290] sm:$0xff]
    %v1031 = vld [vmem:[%s8 + $0x298] sm:$0xff]
    %v1032 = vld [vmem:[%s8 + $0x2a0] sm:$0xff]
    %v1033 = vld [vmem:[%s8 + $0x2a8] sm:$0xff]
    %v1034 = vld [vmem:[%s8 + $0x2b0] sm:$0xff]
    %v1035 = vld [vmem:[%s8 + $0x2b8] sm:$0xff]
    %v1036 = vld [vmem:[%s8 + $0x2c0] sm:$0xff]
    %v1037 = vld [vmem:[%s8 + $0x2c8] sm:$0xff]
    %v1038 = vld [vmem:[%s8 + $0x2d0] sm:$0xff]
    %v1039 = vld [vmem:[%s8 + $0x2d8] sm:$0xff]
    %v1040 = vld [vmem:[%s8 + $0x2e0] sm:$0xff]
    %v1041 = vld [vmem:[%s8 + $0x2e8] sm:$0xff]
    %v1042 = vld [vmem:[%s8 + $0x2f0] sm:$0xff]
    %v1043 = vld [vmem:[%s8 + $0x2f8] sm:$0xff]
    %v1044 = vld [vmem:[%s8 + $0x300] sm:$0xff]
    %v1045 = vld [vmem:[%s8 + $0x308] sm:$0xff]
    %v1046 = vld [vmem:[%s8 + $0x310] sm:$0xff]
    %v1047 = vld [vmem:[%s8 + $0x318] sm:$0xff]
    %v1048 = vld [vmem:[%s8 + $0x320] sm:$0xff]
    %v1049 = vld [vmem:[%s8 + $0x328] sm:$0xff]
    %v1050 = vld [vmem:[%s8 + $0x330] sm:$0xff]
    %v1051 = vld [vmem:[%s8 + $0x338] sm:$0xff]
    %v1052 = vld [vmem:[%s8 + $0x340] sm:$0xff]
    %v1053 = vld [vmem:[%s8 + $0x348] sm:$0xff]
    %v1054 = vld [vmem:[%s8 + $0x350] sm:$0xff]
    %v1055 = vld [vmem:[%s8 + $0x358] sm:$0xff]
    %v1056 = vld [vmem:[%s8 + $0x360] sm:$0xff]
    %v1057 = vld [vmem:[%s8 + $0x368] sm:$0xff]
    %v1058 = vld [vmem:[%s8 + $0x370] sm:$0xff]
    %v1059 = vld [vmem:[%s8 + $0x378] sm:$0xff]
    %v1060 = vld [vmem:[%s8 + $0x380] sm:$0xff]
    %v1061 = vld [vmem:[%s8 + $0x388] sm:$0xff]
    %v1062 = vld [vmem:[%s8 + $0x390] sm:$0xff]
    %v1063 = vld [vmem:[%s8 + $0x398] sm:$0xff]
    %v1064 = vld [vmem:[%s8 + $0x3a0] sm:$0xff]
    %v1065 = vld [vmem:[%s8 + $0x3a8] sm:$0xff]
    %v1066 = vld [vmem:[%s8 + $0x3b0] sm:$0xff]
    %v1067 = vld [vmem:[%s8 + $0x3b8] sm:$0xff]
    %s1068 = scalar_lea.vmem %s7, 16
    %v1069 = vld [vmem:[%s1068] sm:$0xff]
    %v1070 = vld [vmem:[%s1068 + $0x8] sm:$0x3f]
    %v1072 = vsel %vm836, %v1069, 0
    %v1075 = vsel %vm836, %v1070, 0
    %1077 = vmatpush.msra.mxu0 0.0
    %1078 = vmatpush.msra.mxu0 0.0
    %1079 = vmatpush.msra.mxu0 0.0
    %1080 = vmatpush.msra.mxu0 0.0
    %1081 = vmatpush.msra.mxu0 0.0
    %1082 = vmatpush.msra.mxu0 0.0
    %1083 = vmatpush.msra.mxu0 0.0
    %1084 = vmatpush.msra.mxu0 0.0
    %1085 = vmatpush.msra.mxu0 0.0
    %1086 = vmatpush.msra.mxu0 0.0
    %1087 = vmatpush.msra.mxu0 0.0
    %1088 = vmatpush.msra.mxu0 0.0
    %1089 = vmatpush.msra.mxu0 %v845
    %1090 = vmatpush.msra.mxu0 %v826
    %1091 = vmatpush.msra.mxu0 %v822
    %1092 = vmatpush.msra.mxu0 %v818
    %1093 = vmatmul.f32.gmra.mxu0 %v1072
    %v1094 = vpop.f32.mrf.mxu0
    %v1095 = vadd.f32 0.0, %v1094
    %1096 = vmatmul.f32.gmra.mxu0 %v1075
    %v1097 = vpop.f32.mrf.mxu0
    %v1098 = vadd.f32 0.0, %v1097
    %1099 = vdwg.mxu0
    %1100 = vmatpush.msra.mxu0 0.0
    %1101 = vmatpush.msra.mxu0 0.0
    %1102 = vmatpush.msra.mxu0 0.0
    %1103 = vmatpush.msra.mxu0 0.0
    %1104 = vmatpush.msra.mxu0 0.0
    %1105 = vmatpush.msra.mxu0 0.0
    %1106 = vmatpush.msra.mxu0 0.0
    %1107 = vmatpush.msra.mxu0 0.0
    %1108 = vmatpush.msra.mxu0 0.0
    %1109 = vmatpush.msra.mxu0 0.0
    %1110 = vmatpush.msra.mxu0 0.0
    %1111 = vmatpush.msra.mxu0 0.0
    %1112 = vmatpush.msra.mxu0 %v848
    %1113 = vmatpush.msra.mxu0 %v827
    %1114 = vmatpush.msra.mxu0 %v823
    %1115 = vmatpush.msra.mxu0 %v819
    %1116 = vmatmul.f32.gmra.mxu0 %v1072
    %v1117 = vpop.f32.mrf.mxu0
    %v1118 = vadd.f32 0.0, %v1117
    %1119 = vmatmul.f32.gmra.mxu0 %v1075
    %v1120 = vpop.f32.mrf.mxu0
    %v1121 = vadd.f32 0.0, %v1120
    %1122 = vdwg.mxu0
    %1123 = vmatpush.msra.mxu0 0.0
    %1124 = vmatpush.msra.mxu0 0.0
    %1125 = vmatpush.msra.mxu0 0.0
    %1126 = vmatpush.msra.mxu0 0.0
    %1127 = vmatpush.msra.mxu0 0.0
    %1128 = vmatpush.msra.mxu0 0.0
    %1129 = vmatpush.msra.mxu0 0.0
    %1130 = vmatpush.msra.mxu0 0.0
    %1131 = vmatpush.msra.mxu0 0.0
    %1132 = vmatpush.msra.mxu0 0.0
    %1133 = vmatpush.msra.mxu0 0.0
    %1134 = vmatpush.msra.mxu0 0.0
    %1135 = vmatpush.msra.mxu0 %v851
    %1136 = vmatpush.msra.mxu0 %v828
    %1137 = vmatpush.msra.mxu0 %v824
    %1138 = vmatpush.msra.mxu0 %v820
    %1139 = vmatmul.f32.gmra.mxu0 %v1072
    %v1140 = vpop.f32.mrf.mxu0
    %v1141 = vadd.f32 0.0, %v1140
    %1142 = vmatmul.f32.gmra.mxu0 %v1075
    %v1143 = vpop.f32.mrf.mxu0
    %v1144 = vadd.f32 0.0, %v1143
    %1145 = vdwg.mxu0
    %1146 = vmatpush.msra.mxu0 0.0
    %1147 = vmatpush.msra.mxu0 0.0
    %1148 = vmatpush.msra.mxu0 0.0
    %1149 = vmatpush.msra.mxu0 0.0
    %1150 = vmatpush.msra.mxu0 0.0
    %1151 = vmatpush.msra.mxu0 0.0
    %1152 = vmatpush.msra.mxu0 0.0
    %1153 = vmatpush.msra.mxu0 0.0
    %1154 = vmatpush.msra.mxu0 0.0
    %1155 = vmatpush.msra.mxu0 0.0
    %1156 = vmatpush.msra.mxu0 0.0
    %1157 = vmatpush.msra.mxu0 0.0
    %1158 = vmatpush.msra.mxu0 %v854
    %1159 = vmatpush.msra.mxu0 %v829
    %1160 = vmatpush.msra.mxu0 %v825
    %1161 = vmatpush.msra.mxu0 %v821
    %1162 = vmatmul.f32.gmra.mxu0 %v1072
    %v1163 = vpop.f32.mrf.mxu0
    %v1164 = vadd.f32 0.0, %v1163
    %1165 = vmatmul.f32.gmra.mxu0 %v1075
    %v1166 = vpop.f32.mrf.mxu0
    %v1167 = vadd.f32 0.0, %v1166
    %1168 = vdwg.mxu0
    %s1169 = scalar_lea.vmem %s8, 960
    %v1170 = vld [vmem:[%s1169] sm:$0xff]
    %v1171 = vld [vmem:[%s1169 + $0x8] sm:$0xff]
    %v1172 = vld [vmem:[%s1169 + $0x10] sm:$0xff]
    %v1173 = vld [vmem:[%s1169 + $0x18] sm:$0xff]
    %v1174 = vld [vmem:[%s1169 + $0x20] sm:$0xff]
    %v1175 = vld [vmem:[%s1169 + $0x28] sm:$0xff]
    %v1176 = vld [vmem:[%s1169 + $0x30] sm:$0xff]
    %v1177 = vld [vmem:[%s1169 + $0x38] sm:$0xff]
    %v1178 = vld [vmem:[%s1169 + $0x40] sm:$0xff]
    %v1179 = vld [vmem:[%s1169 + $0x48] sm:$0xff]
    %v1180 = vld [vmem:[%s1169 + $0x50] sm:$0xff]
    %v1181 = vld [vmem:[%s1169 + $0x58] sm:$0xff]
    %v1182 = vld [vmem:[%s1169 + $0x60] sm:$0xff]
    %v1183 = vld [vmem:[%s1169 + $0x68] sm:$0xff]
    %v1184 = vld [vmem:[%s1169 + $0x70] sm:$0xff]
    %v1185 = vld [vmem:[%s1169 + $0x78] sm:$0xff]
    %v1186 = vld [vmem:[%s1169 + $0x80] sm:$0xff]
    %v1187 = vld [vmem:[%s1169 + $0x88] sm:$0xff]
    %v1188 = vld [vmem:[%s1169 + $0x90] sm:$0xff]
    %v1189 = vld [vmem:[%s1169 + $0x98] sm:$0xff]
    %v1190 = vld [vmem:[%s1169 + $0xa0] sm:$0xff]
    %v1191 = vld [vmem:[%s1169 + $0xa8] sm:$0xff]
    %v1192 = vld [vmem:[%s1169 + $0xb0] sm:$0xff]
    %v1193 = vld [vmem:[%s1169 + $0xb8] sm:$0xff]
    %v1194 = vld [vmem:[%s1169 + $0xc0] sm:$0xff]
    %v1195 = vld [vmem:[%s1169 + $0xc8] sm:$0xff]
    %v1196 = vld [vmem:[%s1169 + $0xd0] sm:$0xff]
    %v1197 = vld [vmem:[%s1169 + $0xd8] sm:$0xff]
    %v1198 = vld [vmem:[%s1169 + $0xe0] sm:$0xff]
    %v1199 = vld [vmem:[%s1169 + $0xe8] sm:$0xff]
    %v1200 = vld [vmem:[%s1169 + $0xf0] sm:$0xff]
    %v1201 = vld [vmem:[%s1169 + $0xf8] sm:$0xff]
    %v1202 = vld [vmem:[%s1169 + $0x100] sm:$0xff]
    %v1203 = vld [vmem:[%s1169 + $0x108] sm:$0xff]
    %v1204 = vld [vmem:[%s1169 + $0x110] sm:$0xff]
    %v1205 = vld [vmem:[%s1169 + $0x118] sm:$0xff]
    %v1206 = vld [vmem:[%s1169 + $0x120] sm:$0xff]
    %v1207 = vld [vmem:[%s1169 + $0x128] sm:$0xff]
    %v1208 = vld [vmem:[%s1169 + $0x130] sm:$0xff]
    %v1209 = vld [vmem:[%s1169 + $0x138] sm:$0xff]
    %v1210 = vld [vmem:[%s1169 + $0x140] sm:$0xff]
    %v1211 = vld [vmem:[%s1169 + $0x148] sm:$0xff]
    %v1212 = vld [vmem:[%s1169 + $0x150] sm:$0xff]
    %v1213 = vld [vmem:[%s1169 + $0x158] sm:$0xff]
    %v1214 = vld [vmem:[%s1169 + $0x160] sm:$0xff]
    %v1215 = vld [vmem:[%s1169 + $0x168] sm:$0xff]
    %v1216 = vld [vmem:[%s1169 + $0x170] sm:$0xff]
    %v1217 = vld [vmem:[%s1169 + $0x178] sm:$0xff]
    %v1218 = vld [vmem:[%s1169 + $0x180] sm:$0xff]
    %v1219 = vld [vmem:[%s1169 + $0x188] sm:$0xff]
    %v1220 = vld [vmem:[%s1169 + $0x190] sm:$0xff]
    %v1221 = vld [vmem:[%s1169 + $0x198] sm:$0xff]
    %v1222 = vld [vmem:[%s1169 + $0x1a0] sm:$0xff]
    %v1223 = vld [vmem:[%s1169 + $0x1a8] sm:$0xff]
    %v1224 = vld [vmem:[%s1169 + $0x1b0] sm:$0xff]
    %v1225 = vld [vmem:[%s1169 + $0x1b8] sm:$0xff]
    %v1226 = vld [vmem:[%s1169 + $0x1c0] sm:$0xff]
    %v1227 = vld [vmem:[%s1169 + $0x1c8] sm:$0xff]
    %v1228 = vld [vmem:[%s1169 + $0x1d0] sm:$0xff]
    %v1229 = vld [vmem:[%s1169 + $0x1d8] sm:$0xff]
    %v1230 = vld [vmem:[%s1169 + $0x1e0] sm:$0xff]
    %v1231 = vld [vmem:[%s1169 + $0x1e8] sm:$0xff]
    %v1232 = vld [vmem:[%s1169 + $0x1f0] sm:$0xff]
    %v1233 = vld [vmem:[%s1169 + $0x1f8] sm:$0xff]
    %v1234 = vld [vmem:[%s1169 + $0x200] sm:$0xff]
    %v1235 = vld [vmem:[%s1169 + $0x208] sm:$0xff]
    %v1236 = vld [vmem:[%s1169 + $0x210] sm:$0xff]
    %v1237 = vld [vmem:[%s1169 + $0x218] sm:$0xff]
    %v1238 = vld [vmem:[%s1169 + $0x220] sm:$0xff]
    %v1239 = vld [vmem:[%s1169 + $0x228] sm:$0xff]
    %v1240 = vld [vmem:[%s1169 + $0x230] sm:$0xff]
    %v1241 = vld [vmem:[%s1169 + $0x238] sm:$0xff]
    %v1242 = vld [vmem:[%s1169 + $0x240] sm:$0xff]
    %v1243 = vld [vmem:[%s1169 + $0x248] sm:$0xff]
    %v1244 = vld [vmem:[%s1169 + $0x250] sm:$0xff]
    %v1245 = vld [vmem:[%s1169 + $0x258] sm:$0xff]
    %v1246 = vld [vmem:[%s1169 + $0x260] sm:$0xff]
    %v1247 = vld [vmem:[%s1169 + $0x268] sm:$0xff]
    %v1248 = vld [vmem:[%s1169 + $0x270] sm:$0xff]
    %v1249 = vld [vmem:[%s1169 + $0x278] sm:$0xff]
    %v1250 = vld [vmem:[%s1169 + $0x280] sm:$0xff]
    %v1251 = vld [vmem:[%s1169 + $0x288] sm:$0xff]
    %v1252 = vld [vmem:[%s1169 + $0x290] sm:$0xff]
    %v1253 = vld [vmem:[%s1169 + $0x298] sm:$0xff]
    %v1254 = vld [vmem:[%s1169 + $0x2a0] sm:$0xff]
    %v1255 = vld [vmem:[%s1169 + $0x2a8] sm:$0xff]
    %v1256 = vld [vmem:[%s1169 + $0x2b0] sm:$0xff]
    %v1257 = vld [vmem:[%s1169 + $0x2b8] sm:$0xff]
    %v1258 = vld [vmem:[%s1169 + $0x2c0] sm:$0xff]
    %v1259 = vld [vmem:[%s1169 + $0x2c8] sm:$0xff]
    %v1260 = vld [vmem:[%s1169 + $0x2d0] sm:$0xff]
    %v1261 = vld [vmem:[%s1169 + $0x2d8] sm:$0xff]
    %v1262 = vld [vmem:[%s1169 + $0x2e0] sm:$0xff]
    %v1263 = vld [vmem:[%s1169 + $0x2e8] sm:$0xff]
    %v1264 = vld [vmem:[%s1169 + $0x2f0] sm:$0xff]
    %v1265 = vld [vmem:[%s1169 + $0x2f8] sm:$0xff]
    %v1266 = vld [vmem:[%s1169 + $0x300] sm:$0xff]
    %v1267 = vld [vmem:[%s1169 + $0x308] sm:$0xff]
    %v1268 = vld [vmem:[%s1169 + $0x310] sm:$0xff]
    %v1269 = vld [vmem:[%s1169 + $0x318] sm:$0xff]
    %v1270 = vld [vmem:[%s1169 + $0x320] sm:$0xff]
    %v1271 = vld [vmem:[%s1169 + $0x328] sm:$0xff]
    %v1272 = vld [vmem:[%s1169 + $0x330] sm:$0xff]
    %v1273 = vld [vmem:[%s1169 + $0x338] sm:$0xff]
    %v1274 = vld [vmem:[%s1169 + $0x340] sm:$0xff]
    %v1275 = vld [vmem:[%s1169 + $0x348] sm:$0xff]
    %v1276 = vld [vmem:[%s1169 + $0x350] sm:$0xff]
    %v1277 = vld [vmem:[%s1169 + $0x358] sm:$0xff]
    %v1278 = vld [vmem:[%s1169 + $0x360] sm:$0xff]
    %v1279 = vld [vmem:[%s1169 + $0x368] sm:$0xff]
    %v1280 = vld [vmem:[%s1169 + $0x370] sm:$0xff]
    %v1281 = vld [vmem:[%s1169 + $0x378] sm:$0xff]
    %v1282 = vld [vmem:[%s1169 + $0x380] sm:$0xff]
    %v1283 = vld [vmem:[%s1169 + $0x388] sm:$0xff]
    %v1284 = vld [vmem:[%s1169 + $0x390] sm:$0xff]
    %v1285 = vld [vmem:[%s1169 + $0x398] sm:$0xff]
    %v1286 = vld [vmem:[%s1169 + $0x3a0] sm:$0xff]
    %v1287 = vld [vmem:[%s1169 + $0x3a8] sm:$0xff]
    %v1288 = vld [vmem:[%s1169 + $0x3b0] sm:$0xff]
    %v1289 = vld [vmem:[%s1169 + $0x3b8] sm:$0xff]
    %vm1290 = vcmask 785408
    %v1292 = vsel %vm1290, %v1164, 0
    %v1295 = vsel %vm1290, %v1167, 0
    %1297 = vmatpush.msra.mxu0 %v1200
    %1298 = vmatpush.msra.mxu0 %v1198
    %1299 = vmatpush.msra.mxu0 %v1196
    %1300 = vmatpush.msra.mxu0 %v1194
    %1301 = vmatpush.msra.mxu0 %v1192
    %1302 = vmatpush.msra.mxu0 %v1190
    %1303 = vmatpush.msra.mxu0 %v1188
    %1304 = vmatpush.msra.mxu0 %v1186
    %1305 = vmatpush.msra.mxu0 %v1184
    %1306 = vmatpush.msra.mxu0 %v1182
    %1307 = vmatpush.msra.mxu0 %v1180
    %1308 = vmatpush.msra.mxu0 %v1178
    %1309 = vmatpush.msra.mxu0 %v1176
    %1310 = vmatpush.msra.mxu0 %v1174
    %1311 = vmatpush.msra.mxu0 %v1172
    %1312 = vmatpush.msra.mxu0 %v1170
    %1313 = vmatmul.f32.gmra.mxu0 %v1095
    %v1314 = vpop.f32.mrf.mxu0
    %v1315 = vadd.f32 0.0, %v1314
    %1316 = vmatmul.f32.gmra.mxu0 %v1098
    %v1317 = vpop.f32.mrf.mxu0
    %v1318 = vadd.f32 0.0, %v1317
    %1319 = vdwg.mxu0
    %1320 = vmatpush.msra.mxu0 %v1232
    %1321 = vmatpush.msra.mxu0 %v1230
    %1322 = vmatpush.msra.mxu0 %v1228
    %1323 = vmatpush.msra.mxu0 %v1226
    %1324 = vmatpush.msra.mxu0 %v1224
    %1325 = vmatpush.msra.mxu0 %v1222
    %1326 = vmatpush.msra.mxu0 %v1220
    %1327 = vmatpush.msra.mxu0 %v1218
    %1328 = vmatpush.msra.mxu0 %v1216
    %1329 = vmatpush.msra.mxu0 %v1214
    %1330 = vmatpush.msra.mxu0 %v1212
    %1331 = vmatpush.msra.mxu0 %v1210
    %1332 = vmatpush.msra.mxu0 %v1208
    %1333 = vmatpush.msra.mxu0 %v1206
    %1334 = vmatpush.msra.mxu0 %v1204
    %1335 = vmatpush.msra.mxu0 %v1202
    %1336 = vmatmul.f32.gmra.mxu0 %v1118
    %v1337 = vpop.f32.mrf.mxu0
    %v1338 = vadd.f32 %v1315, %v1337
    %1339 = vmatmul.f32.gmra.mxu0 %v1121
    %v1340 = vpop.f32.mrf.mxu0
    %v1341 = vadd.f32 %v1318, %v1340
    %1342 = vdwg.mxu0
    %1343 = vmatpush.msra.mxu0 %v1264
    %1344 = vmatpush.msra.mxu0 %v1262
    %1345 = vmatpush.msra.mxu0 %v1260
    %1346 = vmatpush.msra.mxu0 %v1258
    %1347 = vmatpush.msra.mxu0 %v1256
    %1348 = vmatpush.msra.mxu0 %v1254
    %1349 = vmatpush.msra.mxu0 %v1252
    %1350 = vmatpush.msra.mxu0 %v1250
    %1351 = vmatpush.msra.mxu0 %v1248
    %1352 = vmatpush.msra.mxu0 %v1246
    %1353 = vmatpush.msra.mxu0 %v1244
    %1354 = vmatpush.msra.mxu0 %v1242
    %1355 = vmatpush.msra.mxu0 %v1240
    %1356 = vmatpush.msra.mxu0 %v1238
    %1357 = vmatpush.msra.mxu0 %v1236
    %1358 = vmatpush.msra.mxu0 %v1234
    %1359 = vmatmul.f32.gmra.mxu0 %v1141
    %v1360 = vpop.f32.mrf.mxu0
    %v1361 = vadd.f32 %v1338, %v1360
    %1362 = vmatmul.f32.gmra.mxu0 %v1144
    %v1363 = vpop.f32.mrf.mxu0
    %v1364 = vadd.f32 %v1341, %v1363
    %1365 = vdwg.mxu0
    %1366 = vmatpush.msra.mxu0 0.0
    %1367 = vmatpush.msra.mxu0 0.0
    %1368 = vmatpush.msra.mxu0 0.0
    %1369 = vmatpush.msra.mxu0 0.0
    %1370 = vmatpush.msra.mxu0 %v1288
    %1371 = vmatpush.msra.mxu0 %v1286
    %1372 = vmatpush.msra.mxu0 %v1284
    %1373 = vmatpush.msra.mxu0 %v1282
    %1374 = vmatpush.msra.mxu0 %v1280
    %1375 = vmatpush.msra.mxu0 %v1278
    %1376 = vmatpush.msra.mxu0 %v1276
    %1377 = vmatpush.msra.mxu0 %v1274
    %1378 = vmatpush.msra.mxu0 %v1272
    %1379 = vmatpush.msra.mxu0 %v1270
    %1380 = vmatpush.msra.mxu0 %v1268
    %1381 = vmatpush.msra.mxu0 %v1266
    %1382 = vmatmul.f32.gmra.mxu0 %v1292
    %v1383 = vpop.f32.mrf.mxu0
    %v1384 = vadd.f32 %v1361, %v1383
    %1385 = vmatmul.f32.gmra.mxu0 %v1295
    %v1386 = vpop.f32.mrf.mxu0
    %v1387 = vadd.f32 %v1364, %v1386
    %1388 = vdwg.mxu0
    %1389 = vmatpush.msra.mxu0 %v1201
    %1390 = vmatpush.msra.mxu0 %v1199
    %1391 = vmatpush.msra.mxu0 %v1197
    %1392 = vmatpush.msra.mxu0 %v1195
    %1393 = vmatpush.msra.mxu0 %v1193
    %1394 = vmatpush.msra.mxu0 %v1191
    %1395 = vmatpush.msra.mxu0 %v1189
    %1396 = vmatpush.msra.mxu0 %v1187
    %1397 = vmatpush.msra.mxu0 %v1185
    %1398 = vmatpush.msra.mxu0 %v1183
    %1399 = vmatpush.msra.mxu0 %v1181
    %1400 = vmatpush.msra.mxu0 %v1179
    %1401 = vmatpush.msra.mxu0 %v1177
    %1402 = vmatpush.msra.mxu0 %v1175
    %1403 = vmatpush.msra.mxu0 %v1173
    %1404 = vmatpush.msra.mxu0 %v1171
    %1405 = vmatmul.f32.gmra.mxu0 %v1095
    %v1406 = vpop.f32.mrf.mxu0
    %v1407 = vadd.f32 0.0, %v1406
    %1408 = vmatmul.f32.gmra.mxu0 %v1098
    %v1409 = vpop.f32.mrf.mxu0
    %v1410 = vadd.f32 0.0, %v1409
    %1411 = vdwg.mxu0
    %1412 = vmatpush.msra.mxu0 %v1233
    %1413 = vmatpush.msra.mxu0 %v1231
    %1414 = vmatpush.msra.mxu0 %v1229
    %1415 = vmatpush.msra.mxu0 %v1227
    %1416 = vmatpush.msra.mxu0 %v1225
    %1417 = vmatpush.msra.mxu0 %v1223
    %1418 = vmatpush.msra.mxu0 %v1221
    %1419 = vmatpush.msra.mxu0 %v1219
    %1420 = vmatpush.msra.mxu0 %v1217
    %1421 = vmatpush.msra.mxu0 %v1215
    %1422 = vmatpush.msra.mxu0 %v1213
    %1423 = vmatpush.msra.mxu0 %v1211
    %1424 = vmatpush.msra.mxu0 %v1209
    %1425 = vmatpush.msra.mxu0 %v1207
    %1426 = vmatpush.msra.mxu0 %v1205
    %1427 = vmatpush.msra.mxu0 %v1203
    %1428 = vmatmul.f32.gmra.mxu0 %v1118
    %v1429 = vpop.f32.mrf.mxu0
    %v1430 = vadd.f32 %v1407, %v1429
    %1431 = vmatmul.f32.gmra.mxu0 %v1121
    %v1432 = vpop.f32.mrf.mxu0
    %v1433 = vadd.f32 %v1410, %v1432
    %1434 = vdwg.mxu0
    %1435 = vmatpush.msra.mxu0 %v1265
    %1436 = vmatpush.msra.mxu0 %v1263
    %1437 = vmatpush.msra.mxu0 %v1261
    %1438 = vmatpush.msra.mxu0 %v1259
    %1439 = vmatpush.msra.mxu0 %v1257
    %1440 = vmatpush.msra.mxu0 %v1255
    %1441 = vmatpush.msra.mxu0 %v1253
    %1442 = vmatpush.msra.mxu0 %v1251
    %1443 = vmatpush.msra.mxu0 %v1249
    %1444 = vmatpush.msra.mxu0 %v1247
    %1445 = vmatpush.msra.mxu0 %v1245
    %1446 = vmatpush.msra.mxu0 %v1243
    %1447 = vmatpush.msra.mxu0 %v1241
    %1448 = vmatpush.msra.mxu0 %v1239
    %1449 = vmatpush.msra.mxu0 %v1237
    %1450 = vmatpush.msra.mxu0 %v1235
    %1451 = vmatmul.f32.gmra.mxu0 %v1141
    %v1452 = vpop.f32.mrf.mxu0
    %v1453 = vadd.f32 %v1430, %v1452
    %1454 = vmatmul.f32.gmra.mxu0 %v1144
    %v1455 = vpop.f32.mrf.mxu0
    %v1456 = vadd.f32 %v1433, %v1455
    %1457 = vdwg.mxu0
    %1458 = vmatpush.msra.mxu0 0.0
    %1459 = vmatpush.msra.mxu0 0.0
    %1460 = vmatpush.msra.mxu0 0.0
    %1461 = vmatpush.msra.mxu0 0.0
    %1462 = vmatpush.msra.mxu0 %v1289
    %1463 = vmatpush.msra.mxu0 %v1287
    %1464 = vmatpush.msra.mxu0 %v1285
    %1465 = vmatpush.msra.mxu0 %v1283
    %1466 = vmatpush.msra.mxu0 %v1281
    %1467 = vmatpush.msra.mxu0 %v1279
    %1468 = vmatpush.msra.mxu0 %v1277
    %1469 = vmatpush.msra.mxu0 %v1275
    %1470 = vmatpush.msra.mxu0 %v1273
    %1471 = vmatpush.msra.mxu0 %v1271
    %1472 = vmatpush.msra.mxu0 %v1269
    %1473 = vmatpush.msra.mxu0 %v1267
    %1474 = vmatmul.f32.gmra.mxu0 %v1292
    %v1475 = vpop.f32.mrf.mxu0
    %v1476 = vadd.f32 %v1453, %v1475
    %1477 = vmatmul.f32.gmra.mxu0 %v1295
    %v1478 = vpop.f32.mrf.mxu0
    %v1479 = vadd.f32 %v1456, %v1478
    %1480 = vdwg.mxu0
    %v1482 = vsel %vm1290, %v943, 0
    %v1485 = vsel %vm1290, %v946, 0
    %1487 = vmatpush.msra.mxu0 %v978
    %1488 = vmatpush.msra.mxu0 %v976
    %1489 = vmatpush.msra.mxu0 %v974
    %1490 = vmatpush.msra.mxu0 %v972
    %1491 = vmatpush.msra.mxu0 %v970
    %1492 = vmatpush.msra.mxu0 %v968
    %1493 = vmatpush.msra.mxu0 %v966
    %1494 = vmatpush.msra.mxu0 %v964
    %1495 = vmatpush.msra.mxu0 %v962
    %1496 = vmatpush.msra.mxu0 %v960
    %1497 = vmatpush.msra.mxu0 %v958
    %1498 = vmatpush.msra.mxu0 %v956
    %1499 = vmatpush.msra.mxu0 %v954
    %1500 = vmatpush.msra.mxu0 %v952
    %1501 = vmatpush.msra.mxu0 %v950
    %1502 = vmatpush.msra.mxu0 %v948
    %1503 = vmatmul.f32.gmra.mxu0 %v874
    %v1504 = vpop.f32.mrf.mxu0
    %v1505 = vadd.f32 %v1384, %v1504
    %1506 = vmatmul.f32.gmra.mxu0 %v877
    %v1507 = vpop.f32.mrf.mxu0
    %v1508 = vadd.f32 %v1387, %v1507
    %1509 = vdwg.mxu0
    %1510 = vmatpush.msra.mxu0 %v1010
    %1511 = vmatpush.msra.mxu0 %v1008
    %1512 = vmatpush.msra.mxu0 %v1006
    %1513 = vmatpush.msra.mxu0 %v1004
    %1514 = vmatpush.msra.mxu0 %v1002
    %1515 = vmatpush.msra.mxu0 %v1000
    %1516 = vmatpush.msra.mxu0 %v998
    %1517 = vmatpush.msra.mxu0 %v996
    %1518 = vmatpush.msra.mxu0 %v994
    %1519 = vmatpush.msra.mxu0 %v992
    %1520 = vmatpush.msra.mxu0 %v990
    %1521 = vmatpush.msra.mxu0 %v988
    %1522 = vmatpush.msra.mxu0 %v986
    %1523 = vmatpush.msra.mxu0 %v984
    %1524 = vmatpush.msra.mxu0 %v982
    %1525 = vmatpush.msra.mxu0 %v980
    %1526 = vmatmul.f32.gmra.mxu0 %v897
    %v1527 = vpop.f32.mrf.mxu0
    %v1528 = vadd.f32 %v1505, %v1527
    %1529 = vmatmul.f32.gmra.mxu0 %v900
    %v1530 = vpop.f32.mrf.mxu0
    %v1531 = vadd.f32 %v1508, %v1530
    %1532 = vdwg.mxu0
    %1533 = vmatpush.msra.mxu0 %v1042
    %1534 = vmatpush.msra.mxu0 %v1040
    %1535 = vmatpush.msra.mxu0 %v1038
    %1536 = vmatpush.msra.mxu0 %v1036
    %1537 = vmatpush.msra.mxu0 %v1034
    %1538 = vmatpush.msra.mxu0 %v1032
    %1539 = vmatpush.msra.mxu0 %v1030
    %1540 = vmatpush.msra.mxu0 %v1028
    %1541 = vmatpush.msra.mxu0 %v1026
    %1542 = vmatpush.msra.mxu0 %v1024
    %1543 = vmatpush.msra.mxu0 %v1022
    %1544 = vmatpush.msra.mxu0 %v1020
    %1545 = vmatpush.msra.mxu0 %v1018
    %1546 = vmatpush.msra.mxu0 %v1016
    %1547 = vmatpush.msra.mxu0 %v1014
    %1548 = vmatpush.msra.mxu0 %v1012
    %1549 = vmatmul.f32.gmra.mxu0 %v920
    %v1550 = vpop.f32.mrf.mxu0
    %v1551 = vadd.f32 %v1528, %v1550
    %1552 = vmatmul.f32.gmra.mxu0 %v923
    %v1553 = vpop.f32.mrf.mxu0
    %v1554 = vadd.f32 %v1531, %v1553
    %1555 = vdwg.mxu0
    %1556 = vmatpush.msra.mxu0 0.0
    %1557 = vmatpush.msra.mxu0 0.0
    %1558 = vmatpush.msra.mxu0 0.0
    %1559 = vmatpush.msra.mxu0 0.0
    %1560 = vmatpush.msra.mxu0 %v1066
    %1561 = vmatpush.msra.mxu0 %v1064
    %1562 = vmatpush.msra.mxu0 %v1062
    %1563 = vmatpush.msra.mxu0 %v1060
    %1564 = vmatpush.msra.mxu0 %v1058
    %1565 = vmatpush.msra.mxu0 %v1056
    %1566 = vmatpush.msra.mxu0 %v1054
    %1567 = vmatpush.msra.mxu0 %v1052
    %1568 = vmatpush.msra.mxu0 %v1050
    %1569 = vmatpush.msra.mxu0 %v1048
    %1570 = vmatpush.msra.mxu0 %v1046
    %1571 = vmatpush.msra.mxu0 %v1044
    %1572 = vmatmul.f32.gmra.mxu0 %v1482
    %v1573 = vpop.f32.mrf.mxu0
    %v1574 = vadd.f32 %v1551, %v1573
    %1575 = vmatmul.f32.gmra.mxu0 %v1485
    %v1576 = vpop.f32.mrf.mxu0
    %v1577 = vadd.f32 %v1554, %v1576
    %1578 = vdwg.mxu0
    %1579 = vmatpush.msra.mxu0 %v979
    %1580 = vmatpush.msra.mxu0 %v977
    %1581 = vmatpush.msra.mxu0 %v975
    %1582 = vmatpush.msra.mxu0 %v973
    %1583 = vmatpush.msra.mxu0 %v971
    %1584 = vmatpush.msra.mxu0 %v969
    %1585 = vmatpush.msra.mxu0 %v967
    %1586 = vmatpush.msra.mxu0 %v965
    %1587 = vmatpush.msra.mxu0 %v963
    %1588 = vmatpush.msra.mxu0 %v961
    %1589 = vmatpush.msra.mxu0 %v959
    %1590 = vmatpush.msra.mxu0 %v957
    %1591 = vmatpush.msra.mxu0 %v955
    %1592 = vmatpush.msra.mxu0 %v953
    %1593 = vmatpush.msra.mxu0 %v951
    %1594 = vmatpush.msra.mxu0 %v949
    %1595 = vmatmul.f32.gmra.mxu0 %v874
    %v1596 = vpop.f32.mrf.mxu0
    %v1597 = vadd.f32 %v1476, %v1596
    %1598 = vmatmul.f32.gmra.mxu0 %v877
    %v1599 = vpop.f32.mrf.mxu0
    %v1600 = vadd.f32 %v1479, %v1599
    %1601 = vdwg.mxu0
    %1602 = vmatpush.msra.mxu0 %v1011
    %1603 = vmatpush.msra.mxu0 %v1009
    %1604 = vmatpush.msra.mxu0 %v1007
    %1605 = vmatpush.msra.mxu0 %v1005
    %1606 = vmatpush.msra.mxu0 %v1003
    %1607 = vmatpush.msra.mxu0 %v1001
    %1608 = vmatpush.msra.mxu0 %v999
    %1609 = vmatpush.msra.mxu0 %v997
    %1610 = vmatpush.msra.mxu0 %v995
    %1611 = vmatpush.msra.mxu0 %v993
    %1612 = vmatpush.msra.mxu0 %v991
    %1613 = vmatpush.msra.mxu0 %v989
    %1614 = vmatpush.msra.mxu0 %v987
    %1615 = vmatpush.msra.mxu0 %v985
    %1616 = vmatpush.msra.mxu0 %v983
    %1617 = vmatpush.msra.mxu0 %v981
    %1618 = vmatmul.f32.gmra.mxu0 %v897
    %v1619 = vpop.f32.mrf.mxu0
    %v1620 = vadd.f32 %v1597, %v1619
    %1621 = vmatmul.f32.gmra.mxu0 %v900
    %v1622 = vpop.f32.mrf.mxu0
    %v1623 = vadd.f32 %v1600, %v1622
    %1624 = vdwg.mxu0
    %1625 = vmatpush.msra.mxu0 %v1043
    %1626 = vmatpush.msra.mxu0 %v1041
    %1627 = vmatpush.msra.mxu0 %v1039
    %1628 = vmatpush.msra.mxu0 %v1037
    %1629 = vmatpush.msra.mxu0 %v1035
    %1630 = vmatpush.msra.mxu0 %v1033
    %1631 = vmatpush.msra.mxu0 %v1031
    %1632 = vmatpush.msra.mxu0 %v1029
    %1633 = vmatpush.msra.mxu0 %v1027
    %1634 = vmatpush.msra.mxu0 %v1025
    %1635 = vmatpush.msra.mxu0 %v1023
    %1636 = vmatpush.msra.mxu0 %v1021
    %1637 = vmatpush.msra.mxu0 %v1019
    %1638 = vmatpush.msra.mxu0 %v1017
    %1639 = vmatpush.msra.mxu0 %v1015
    %1640 = vmatpush.msra.mxu0 %v1013
    %1641 = vmatmul.f32.gmra.mxu0 %v920
    %v1642 = vpop.f32.mrf.mxu0
    %v1643 = vadd.f32 %v1620, %v1642
    %1644 = vmatmul.f32.gmra.mxu0 %v923
    %v1645 = vpop.f32.mrf.mxu0
    %v1646 = vadd.f32 %v1623, %v1645
    %1647 = vdwg.mxu0
    %1648 = vmatpush.msra.mxu0 0.0
    %1649 = vmatpush.msra.mxu0 0.0
    %1650 = vmatpush.msra.mxu0 0.0
    %1651 = vmatpush.msra.mxu0 0.0
    %1652 = vmatpush.msra.mxu0 %v1067
    %1653 = vmatpush.msra.mxu0 %v1065
    %1654 = vmatpush.msra.mxu0 %v1063
    %1655 = vmatpush.msra.mxu0 %v1061
    %1656 = vmatpush.msra.mxu0 %v1059
    %1657 = vmatpush.msra.mxu0 %v1057
    %1658 = vmatpush.msra.mxu0 %v1055
    %1659 = vmatpush.msra.mxu0 %v1053
    %1660 = vmatpush.msra.mxu0 %v1051
    %1661 = vmatpush.msra.mxu0 %v1049
    %1662 = vmatpush.msra.mxu0 %v1047
    %1663 = vmatpush.msra.mxu0 %v1045
    %1664 = vmatmul.f32.gmra.mxu0 %v1482
    %v1665 = vpop.f32.mrf.mxu0
    %v1666 = vadd.f32 %v1643, %v1665
    %1667 = vmatmul.f32.gmra.mxu0 %v1485
    %v1668 = vpop.f32.mrf.mxu0
    %v1669 = vadd.f32 %v1646, %v1668
    %1670 = vdwg.mxu0
    %s1671 = scalar_lea.vmem %s7, 32
    %v1672 = vld [vmem:[%s1671] sm:$0xff]
    %v1673 = vld [vmem:[%s1671 + $0x8] sm:$0x3f]
    %v1675 = vsel %vm836, %v1672, 0
    %v1678 = vsel %vm836, %v1673, 0
    %1680 = vmatpush.msra.mxu0 0.0
    %1681 = vmatpush.msra.mxu0 0.0
    %1682 = vmatpush.msra.mxu0 0.0
    %1683 = vmatpush.msra.mxu0 0.0
    %1684 = vmatpush.msra.mxu0 0.0
    %1685 = vmatpush.msra.mxu0 0.0
    %1686 = vmatpush.msra.mxu0 0.0
    %1687 = vmatpush.msra.mxu0 0.0
    %1688 = vmatpush.msra.mxu0 0.0
    %1689 = vmatpush.msra.mxu0 0.0
    %1690 = vmatpush.msra.mxu0 0.0
    %1691 = vmatpush.msra.mxu0 0.0
    %1692 = vmatpush.msra.mxu0 %v845
    %1693 = vmatpush.msra.mxu0 %v826
    %1694 = vmatpush.msra.mxu0 %v822
    %1695 = vmatpush.msra.mxu0 %v818
    %1696 = vmatmul.f32.gmra.mxu0 %v1675
    %v1697 = vpop.f32.mrf.mxu0
    %v1698 = vadd.f32 0.0, %v1697
    %1699 = vmatmul.f32.gmra.mxu0 %v1678
    %v1700 = vpop.f32.mrf.mxu0
    %v1701 = vadd.f32 0.0, %v1700
    %1702 = vdwg.mxu0
    %1703 = vmatpush.msra.mxu0 0.0
    %1704 = vmatpush.msra.mxu0 0.0
    %1705 = vmatpush.msra.mxu0 0.0
    %1706 = vmatpush.msra.mxu0 0.0
    %1707 = vmatpush.msra.mxu0 0.0
    %1708 = vmatpush.msra.mxu0 0.0
    %1709 = vmatpush.msra.mxu0 0.0
    %1710 = vmatpush.msra.mxu0 0.0
    %1711 = vmatpush.msra.mxu0 0.0
    %1712 = vmatpush.msra.mxu0 0.0
    %1713 = vmatpush.msra.mxu0 0.0
    %1714 = vmatpush.msra.mxu0 0.0
    %1715 = vmatpush.msra.mxu0 %v848
    %1716 = vmatpush.msra.mxu0 %v827
    %1717 = vmatpush.msra.mxu0 %v823
    %1718 = vmatpush.msra.mxu0 %v819
    %1719 = vmatmul.f32.gmra.mxu0 %v1675
    %v1720 = vpop.f32.mrf.mxu0
    %v1721 = vadd.f32 0.0, %v1720
    %1722 = vmatmul.f32.gmra.mxu0 %v1678
    %v1723 = vpop.f32.mrf.mxu0
    %v1724 = vadd.f32 0.0, %v1723
    %1725 = vdwg.mxu0
    %1726 = vmatpush.msra.mxu0 0.0
    %1727 = vmatpush.msra.mxu0 0.0
    %1728 = vmatpush.msra.mxu0 0.0
    %1729 = vmatpush.msra.mxu0 0.0
    %1730 = vmatpush.msra.mxu0 0.0
    %1731 = vmatpush.msra.mxu0 0.0
    %1732 = vmatpush.msra.mxu0 0.0
    %1733 = vmatpush.msra.mxu0 0.0
    %1734 = vmatpush.msra.mxu0 0.0
    %1735 = vmatpush.msra.mxu0 0.0
    %1736 = vmatpush.msra.mxu0 0.0
    %1737 = vmatpush.msra.mxu0 0.0
    %1738 = vmatpush.msra.mxu0 %v851
    %1739 = vmatpush.msra.mxu0 %v828
    %1740 = vmatpush.msra.mxu0 %v824
    %1741 = vmatpush.msra.mxu0 %v820
    %1742 = vmatmul.f32.gmra.mxu0 %v1675
    %v1743 = vpop.f32.mrf.mxu0
    %v1744 = vadd.f32 0.0, %v1743
    %1745 = vmatmul.f32.gmra.mxu0 %v1678
    %v1746 = vpop.f32.mrf.mxu0
    %v1747 = vadd.f32 0.0, %v1746
    %1748 = vdwg.mxu0
    %1749 = vmatpush.msra.mxu0 0.0
    %1750 = vmatpush.msra.mxu0 0.0
    %1751 = vmatpush.msra.mxu0 0.0
    %1752 = vmatpush.msra.mxu0 0.0
    %1753 = vmatpush.msra.mxu0 0.0
    %1754 = vmatpush.msra.mxu0 0.0
    %1755 = vmatpush.msra.mxu0 0.0
    %1756 = vmatpush.msra.mxu0 0.0
    %1757 = vmatpush.msra.mxu0 0.0
    %1758 = vmatpush.msra.mxu0 0.0
    %1759 = vmatpush.msra.mxu0 0.0
    %1760 = vmatpush.msra.mxu0 0.0
    %1761 = vmatpush.msra.mxu0 %v854
    %1762 = vmatpush.msra.mxu0 %v829
    %1763 = vmatpush.msra.mxu0 %v825
    %1764 = vmatpush.msra.mxu0 %v821
    %1765 = vmatmul.f32.gmra.mxu0 %v1675
    %v1766 = vpop.f32.mrf.mxu0
    %v1767 = vadd.f32 0.0, %v1766
    %1768 = vmatmul.f32.gmra.mxu0 %v1678
    %v1769 = vpop.f32.mrf.mxu0
    %v1770 = vadd.f32 0.0, %v1769
    %1771 = vdwg.mxu0
    %s1772 = scalar_lea.vmem %s8, 1920
    %v1773 = vld [vmem:[%s1772] sm:$0xff]
    %v1774 = vld [vmem:[%s1772 + $0x8] sm:$0xff]
    %v1775 = vld [vmem:[%s1772 + $0x10] sm:$0xff]
    %v1776 = vld [vmem:[%s1772 + $0x18] sm:$0xff]
    %v1777 = vld [vmem:[%s1772 + $0x20] sm:$0xff]
    %v1778 = vld [vmem:[%s1772 + $0x28] sm:$0xff]
    %v1779 = vld [vmem:[%s1772 + $0x30] sm:$0xff]
    %v1780 = vld [vmem:[%s1772 + $0x38] sm:$0xff]
    %v1781 = vld [vmem:[%s1772 + $0x40] sm:$0xff]
    %v1782 = vld [vmem:[%s1772 + $0x48] sm:$0xff]
    %v1783 = vld [vmem:[%s1772 + $0x50] sm:$0xff]
    %v1784 = vld [vmem:[%s1772 + $0x58] sm:$0xff]
    %v1785 = vld [vmem:[%s1772 + $0x60] sm:$0xff]
    %v1786 = vld [vmem:[%s1772 + $0x68] sm:$0xff]
    %v1787 = vld [vmem:[%s1772 + $0x70] sm:$0xff]
    %v1788 = vld [vmem:[%s1772 + $0x78] sm:$0xff]
    %v1789 = vld [vmem:[%s1772 + $0x80] sm:$0xff]
    %v1790 = vld [vmem:[%s1772 + $0x88] sm:$0xff]
    %v1791 = vld [vmem:[%s1772 + $0x90] sm:$0xff]
    %v1792 = vld [vmem:[%s1772 + $0x98] sm:$0xff]
    %v1793 = vld [vmem:[%s1772 + $0xa0] sm:$0xff]
    %v1794 = vld [vmem:[%s1772 + $0xa8] sm:$0xff]
    %v1795 = vld [vmem:[%s1772 + $0xb0] sm:$0xff]
    %v1796 = vld [vmem:[%s1772 + $0xb8] sm:$0xff]
    %v1797 = vld [vmem:[%s1772 + $0xc0] sm:$0xff]
    %v1798 = vld [vmem:[%s1772 + $0xc8] sm:$0xff]
    %v1799 = vld [vmem:[%s1772 + $0xd0] sm:$0xff]
    %v1800 = vld [vmem:[%s1772 + $0xd8] sm:$0xff]
    %v1801 = vld [vmem:[%s1772 + $0xe0] sm:$0xff]
    %v1802 = vld [vmem:[%s1772 + $0xe8] sm:$0xff]
    %v1803 = vld [vmem:[%s1772 + $0xf0] sm:$0xff]
    %v1804 = vld [vmem:[%s1772 + $0xf8] sm:$0xff]
    %v1805 = vld [vmem:[%s1772 + $0x100] sm:$0xff]
    %v1806 = vld [vmem:[%s1772 + $0x108] sm:$0xff]
    %v1807 = vld [vmem:[%s1772 + $0x110] sm:$0xff]
    %v1808 = vld [vmem:[%s1772 + $0x118] sm:$0xff]
    %v1809 = vld [vmem:[%s1772 + $0x120] sm:$0xff]
    %v1810 = vld [vmem:[%s1772 + $0x128] sm:$0xff]
    %v1811 = vld [vmem:[%s1772 + $0x130] sm:$0xff]
    %v1812 = vld [vmem:[%s1772 + $0x138] sm:$0xff]
    %v1813 = vld [vmem:[%s1772 + $0x140] sm:$0xff]
    %v1814 = vld [vmem:[%s1772 + $0x148] sm:$0xff]
    %v1815 = vld [vmem:[%s1772 + $0x150] sm:$0xff]
    %v1816 = vld [vmem:[%s1772 + $0x158] sm:$0xff]
    %v1817 = vld [vmem:[%s1772 + $0x160] sm:$0xff]
    %v1818 = vld [vmem:[%s1772 + $0x168] sm:$0xff]
    %v1819 = vld [vmem:[%s1772 + $0x170] sm:$0xff]
    %v1820 = vld [vmem:[%s1772 + $0x178] sm:$0xff]
    %v1821 = vld [vmem:[%s1772 + $0x180] sm:$0xff]
    %v1822 = vld [vmem:[%s1772 + $0x188] sm:$0xff]
    %v1823 = vld [vmem:[%s1772 + $0x190] sm:$0xff]
    %v1824 = vld [vmem:[%s1772 + $0x198] sm:$0xff]
    %v1825 = vld [vmem:[%s1772 + $0x1a0] sm:$0xff]
    %v1826 = vld [vmem:[%s1772 + $0x1a8] sm:$0xff]
    %v1827 = vld [vmem:[%s1772 + $0x1b0] sm:$0xff]
    %v1828 = vld [vmem:[%s1772 + $0x1b8] sm:$0xff]
    %v1829 = vld [vmem:[%s1772 + $0x1c0] sm:$0xff]
    %v1830 = vld [vmem:[%s1772 + $0x1c8] sm:$0xff]
    %v1831 = vld [vmem:[%s1772 + $0x1d0] sm:$0xff]
    %v1832 = vld [vmem:[%s1772 + $0x1d8] sm:$0xff]
    %v1833 = vld [vmem:[%s1772 + $0x1e0] sm:$0xff]
    %v1834 = vld [vmem:[%s1772 + $0x1e8] sm:$0xff]
    %v1835 = vld [vmem:[%s1772 + $0x1f0] sm:$0xff]
    %v1836 = vld [vmem:[%s1772 + $0x1f8] sm:$0xff]
    %v1837 = vld [vmem:[%s1772 + $0x200] sm:$0xff]
    %v1838 = vld [vmem:[%s1772 + $0x208] sm:$0xff]
    %v1839 = vld [vmem:[%s1772 + $0x210] sm:$0xff]
    %v1840 = vld [vmem:[%s1772 + $0x218] sm:$0xff]
    %v1841 = vld [vmem:[%s1772 + $0x220] sm:$0xff]
    %v1842 = vld [vmem:[%s1772 + $0x228] sm:$0xff]
    %v1843 = vld [vmem:[%s1772 + $0x230] sm:$0xff]
    %v1844 = vld [vmem:[%s1772 + $0x238] sm:$0xff]
    %v1845 = vld [vmem:[%s1772 + $0x240] sm:$0xff]
    %v1846 = vld [vmem:[%s1772 + $0x248] sm:$0xff]
    %v1847 = vld [vmem:[%s1772 + $0x250] sm:$0xff]
    %v1848 = vld [vmem:[%s1772 + $0x258] sm:$0xff]
    %v1849 = vld [vmem:[%s1772 + $0x260] sm:$0xff]
    %v1850 = vld [vmem:[%s1772 + $0x268] sm:$0xff]
    %v1851 = vld [vmem:[%s1772 + $0x270] sm:$0xff]
    %v1852 = vld [vmem:[%s1772 + $0x278] sm:$0xff]
    %v1853 = vld [vmem:[%s1772 + $0x280] sm:$0xff]
    %v1854 = vld [vmem:[%s1772 + $0x288] sm:$0xff]
    %v1855 = vld [vmem:[%s1772 + $0x290] sm:$0xff]
    %v1856 = vld [vmem:[%s1772 + $0x298] sm:$0xff]
    %v1857 = vld [vmem:[%s1772 + $0x2a0] sm:$0xff]
    %v1858 = vld [vmem:[%s1772 + $0x2a8] sm:$0xff]
    %v1859 = vld [vmem:[%s1772 + $0x2b0] sm:$0xff]
    %v1860 = vld [vmem:[%s1772 + $0x2b8] sm:$0xff]
    %v1861 = vld [vmem:[%s1772 + $0x2c0] sm:$0xff]
    %v1862 = vld [vmem:[%s1772 + $0x2c8] sm:$0xff]
    %v1863 = vld [vmem:[%s1772 + $0x2d0] sm:$0xff]
    %v1864 = vld [vmem:[%s1772 + $0x2d8] sm:$0xff]
    %v1865 = vld [vmem:[%s1772 + $0x2e0] sm:$0xff]
    %v1866 = vld [vmem:[%s1772 + $0x2e8] sm:$0xff]
    %v1867 = vld [vmem:[%s1772 + $0x2f0] sm:$0xff]
    %v1868 = vld [vmem:[%s1772 + $0x2f8] sm:$0xff]
    %v1869 = vld [vmem:[%s1772 + $0x300] sm:$0xff]
    %v1870 = vld [vmem:[%s1772 + $0x308] sm:$0xff]
    %v1871 = vld [vmem:[%s1772 + $0x310] sm:$0xff]
    %v1872 = vld [vmem:[%s1772 + $0x318] sm:$0xff]
    %v1873 = vld [vmem:[%s1772 + $0x320] sm:$0xff]
    %v1874 = vld [vmem:[%s1772 + $0x328] sm:$0xff]
    %v1875 = vld [vmem:[%s1772 + $0x330] sm:$0xff]
    %v1876 = vld [vmem:[%s1772 + $0x338] sm:$0xff]
    %v1877 = vld [vmem:[%s1772 + $0x340] sm:$0xff]
    %v1878 = vld [vmem:[%s1772 + $0x348] sm:$0xff]
    %v1879 = vld [vmem:[%s1772 + $0x350] sm:$0xff]
    %v1880 = vld [vmem:[%s1772 + $0x358] sm:$0xff]
    %v1881 = vld [vmem:[%s1772 + $0x360] sm:$0xff]
    %v1882 = vld [vmem:[%s1772 + $0x368] sm:$0xff]
    %v1883 = vld [vmem:[%s1772 + $0x370] sm:$0xff]
    %v1884 = vld [vmem:[%s1772 + $0x378] sm:$0xff]
    %v1885 = vld [vmem:[%s1772 + $0x380] sm:$0xff]
    %v1886 = vld [vmem:[%s1772 + $0x388] sm:$0xff]
    %v1887 = vld [vmem:[%s1772 + $0x390] sm:$0xff]
    %v1888 = vld [vmem:[%s1772 + $0x398] sm:$0xff]
    %v1889 = vld [vmem:[%s1772 + $0x3a0] sm:$0xff]
    %v1890 = vld [vmem:[%s1772 + $0x3a8] sm:$0xff]
    %v1891 = vld [vmem:[%s1772 + $0x3b0] sm:$0xff]
    %v1892 = vld [vmem:[%s1772 + $0x3b8] sm:$0xff]
    %v1894 = vsel %vm1290, %v1767, 0
    %v1897 = vsel %vm1290, %v1770, 0
    %1899 = vmatpush.msra.mxu0 %v1803
    %1900 = vmatpush.msra.mxu0 %v1801
    %1901 = vmatpush.msra.mxu0 %v1799
    %1902 = vmatpush.msra.mxu0 %v1797
    %1903 = vmatpush.msra.mxu0 %v1795
    %1904 = vmatpush.msra.mxu0 %v1793
    %1905 = vmatpush.msra.mxu0 %v1791
    %1906 = vmatpush.msra.mxu0 %v1789
    %1907 = vmatpush.msra.mxu0 %v1787
    %1908 = vmatpush.msra.mxu0 %v1785
    %1909 = vmatpush.msra.mxu0 %v1783
    %1910 = vmatpush.msra.mxu0 %v1781
    %1911 = vmatpush.msra.mxu0 %v1779
    %1912 = vmatpush.msra.mxu0 %v1777
    %1913 = vmatpush.msra.mxu0 %v1775
    %1914 = vmatpush.msra.mxu0 %v1773
    %1915 = vmatmul.f32.gmra.mxu0 %v1698
    %v1916 = vpop.f32.mrf.mxu0
    %v1917 = vadd.f32 0.0, %v1916
    %1918 = vmatmul.f32.gmra.mxu0 %v1701
    %v1919 = vpop.f32.mrf.mxu0
    %v1920 = vadd.f32 0.0, %v1919
    %1921 = vdwg.mxu0
    %1922 = vmatpush.msra.mxu0 %v1835
    %1923 = vmatpush.msra.mxu0 %v1833
    %1924 = vmatpush.msra.mxu0 %v1831
    %1925 = vmatpush.msra.mxu0 %v1829
    %1926 = vmatpush.msra.mxu0 %v1827
    %1927 = vmatpush.msra.mxu0 %v1825
    %1928 = vmatpush.msra.mxu0 %v1823
    %1929 = vmatpush.msra.mxu0 %v1821
    %1930 = vmatpush.msra.mxu0 %v1819
    %1931 = vmatpush.msra.mxu0 %v1817
    %1932 = vmatpush.msra.mxu0 %v1815
    %1933 = vmatpush.msra.mxu0 %v1813
    %1934 = vmatpush.msra.mxu0 %v1811
    %1935 = vmatpush.msra.mxu0 %v1809
    %1936 = vmatpush.msra.mxu0 %v1807
    %1937 = vmatpush.msra.mxu0 %v1805
    %1938 = vmatmul.f32.gmra.mxu0 %v1721
    %v1939 = vpop.f32.mrf.mxu0
    %v1940 = vadd.f32 %v1917, %v1939
    %1941 = vmatmul.f32.gmra.mxu0 %v1724
    %v1942 = vpop.f32.mrf.mxu0
    %v1943 = vadd.f32 %v1920, %v1942
    %1944 = vdwg.mxu0
    %1945 = vmatpush.msra.mxu0 %v1867
    %1946 = vmatpush.msra.mxu0 %v1865
    %1947 = vmatpush.msra.mxu0 %v1863
    %1948 = vmatpush.msra.mxu0 %v1861
    %1949 = vmatpush.msra.mxu0 %v1859
    %1950 = vmatpush.msra.mxu0 %v1857
    %1951 = vmatpush.msra.mxu0 %v1855
    %1952 = vmatpush.msra.mxu0 %v1853
    %1953 = vmatpush.msra.mxu0 %v1851
    %1954 = vmatpush.msra.mxu0 %v1849
    %1955 = vmatpush.msra.mxu0 %v1847
    %1956 = vmatpush.msra.mxu0 %v1845
    %1957 = vmatpush.msra.mxu0 %v1843
    %1958 = vmatpush.msra.mxu0 %v1841
    %1959 = vmatpush.msra.mxu0 %v1839
    %1960 = vmatpush.msra.mxu0 %v1837
    %1961 = vmatmul.f32.gmra.mxu0 %v1744
    %v1962 = vpop.f32.mrf.mxu0
    %v1963 = vadd.f32 %v1940, %v1962
    %1964 = vmatmul.f32.gmra.mxu0 %v1747
    %v1965 = vpop.f32.mrf.mxu0
    %v1966 = vadd.f32 %v1943, %v1965
    %1967 = vdwg.mxu0
    %1968 = vmatpush.msra.mxu0 0.0
    %1969 = vmatpush.msra.mxu0 0.0
    %1970 = vmatpush.msra.mxu0 0.0
    %1971 = vmatpush.msra.mxu0 0.0
    %1972 = vmatpush.msra.mxu0 %v1891
    %1973 = vmatpush.msra.mxu0 %v1889
    %1974 = vmatpush.msra.mxu0 %v1887
    %1975 = vmatpush.msra.mxu0 %v1885
    %1976 = vmatpush.msra.mxu0 %v1883
    %1977 = vmatpush.msra.mxu0 %v1881
    %1978 = vmatpush.msra.mxu0 %v1879
    %1979 = vmatpush.msra.mxu0 %v1877
    %1980 = vmatpush.msra.mxu0 %v1875
    %1981 = vmatpush.msra.mxu0 %v1873
    %1982 = vmatpush.msra.mxu0 %v1871
    %1983 = vmatpush.msra.mxu0 %v1869
    %1984 = vmatmul.f32.gmra.mxu0 %v1894
    %v1985 = vpop.f32.mrf.mxu0
    %v1986 = vadd.f32 %v1963, %v1985
    %1987 = vmatmul.f32.gmra.mxu0 %v1897
    %v1988 = vpop.f32.mrf.mxu0
    %v1989 = vadd.f32 %v1966, %v1988
    %1990 = vdwg.mxu0
    %1991 = vmatpush.msra.mxu0 %v1804
    %1992 = vmatpush.msra.mxu0 %v1802
    %1993 = vmatpush.msra.mxu0 %v1800
    %1994 = vmatpush.msra.mxu0 %v1798
    %1995 = vmatpush.msra.mxu0 %v1796
    %1996 = vmatpush.msra.mxu0 %v1794
    %1997 = vmatpush.msra.mxu0 %v1792
    %1998 = vmatpush.msra.mxu0 %v1790
    %1999 = vmatpush.msra.mxu0 %v1788
    %2000 = vmatpush.msra.mxu0 %v1786
    %2001 = vmatpush.msra.mxu0 %v1784
    %2002 = vmatpush.msra.mxu0 %v1782
    %2003 = vmatpush.msra.mxu0 %v1780
    %2004 = vmatpush.msra.mxu0 %v1778
    %2005 = vmatpush.msra.mxu0 %v1776
    %2006 = vmatpush.msra.mxu0 %v1774
    %2007 = vmatmul.f32.gmra.mxu0 %v1698
    %v2008 = vpop.f32.mrf.mxu0
    %v2009 = vadd.f32 0.0, %v2008
    %2010 = vmatmul.f32.gmra.mxu0 %v1701
    %v2011 = vpop.f32.mrf.mxu0
    %v2012 = vadd.f32 0.0, %v2011
    %2013 = vdwg.mxu0
    %2014 = vmatpush.msra.mxu0 %v1836
    %2015 = vmatpush.msra.mxu0 %v1834
    %2016 = vmatpush.msra.mxu0 %v1832
    %2017 = vmatpush.msra.mxu0 %v1830
    %2018 = vmatpush.msra.mxu0 %v1828
    %2019 = vmatpush.msra.mxu0 %v1826
    %2020 = vmatpush.msra.mxu0 %v1824
    %2021 = vmatpush.msra.mxu0 %v1822
    %2022 = vmatpush.msra.mxu0 %v1820
    %2023 = vmatpush.msra.mxu0 %v1818
    %2024 = vmatpush.msra.mxu0 %v1816
    %2025 = vmatpush.msra.mxu0 %v1814
    %2026 = vmatpush.msra.mxu0 %v1812
    %2027 = vmatpush.msra.mxu0 %v1810
    %2028 = vmatpush.msra.mxu0 %v1808
    %2029 = vmatpush.msra.mxu0 %v1806
    %2030 = vmatmul.f32.gmra.mxu0 %v1721
    %v2031 = vpop.f32.mrf.mxu0
    %v2032 = vadd.f32 %v2009, %v2031
    %2033 = vmatmul.f32.gmra.mxu0 %v1724
    %v2034 = vpop.f32.mrf.mxu0
    %v2035 = vadd.f32 %v2012, %v2034
    %2036 = vdwg.mxu0
    %2037 = vmatpush.msra.mxu0 %v1868
    %2038 = vmatpush.msra.mxu0 %v1866
    %2039 = vmatpush.msra.mxu0 %v1864
    %2040 = vmatpush.msra.mxu0 %v1862
    %2041 = vmatpush.msra.mxu0 %v1860
    %2042 = vmatpush.msra.mxu0 %v1858
    %2043 = vmatpush.msra.mxu0 %v1856
    %2044 = vmatpush.msra.mxu0 %v1854
    %2045 = vmatpush.msra.mxu0 %v1852
    %2046 = vmatpush.msra.mxu0 %v1850
    %2047 = vmatpush.msra.mxu0 %v1848
    %2048 = vmatpush.msra.mxu0 %v1846
    %2049 = vmatpush.msra.mxu0 %v1844
    %2050 = vmatpush.msra.mxu0 %v1842
    %2051 = vmatpush.msra.mxu0 %v1840
    %2052 = vmatpush.msra.mxu0 %v1838
    %2053 = vmatmul.f32.gmra.mxu0 %v1744
    %v2054 = vpop.f32.mrf.mxu0
    %v2055 = vadd.f32 %v2032, %v2054
    %2056 = vmatmul.f32.gmra.mxu0 %v1747
    %v2057 = vpop.f32.mrf.mxu0
    %v2058 = vadd.f32 %v2035, %v2057
    %2059 = vdwg.mxu0
    %2060 = vmatpush.msra.mxu0 0.0
    %2061 = vmatpush.msra.mxu0 0.0
    %2062 = vmatpush.msra.mxu0 0.0
    %2063 = vmatpush.msra.mxu0 0.0
    %2064 = vmatpush.msra.mxu0 %v1892
    %2065 = vmatpush.msra.mxu0 %v1890
    %2066 = vmatpush.msra.mxu0 %v1888
    %2067 = vmatpush.msra.mxu0 %v1886
    %2068 = vmatpush.msra.mxu0 %v1884
    %2069 = vmatpush.msra.mxu0 %v1882
    %2070 = vmatpush.msra.mxu0 %v1880
    %2071 = vmatpush.msra.mxu0 %v1878
    %2072 = vmatpush.msra.mxu0 %v1876
    %2073 = vmatpush.msra.mxu0 %v1874
    %2074 = vmatpush.msra.mxu0 %v1872
    %2075 = vmatpush.msra.mxu0 %v1870
    %2076 = vmatmul.f32.gmra.mxu0 %v1894
    %v2077 = vpop.f32.mrf.mxu0
    %v2078 = vadd.f32 %v2055, %v2077
    %2079 = vmatmul.f32.gmra.mxu0 %v1897
    %v2080 = vpop.f32.mrf.mxu0
    %v2081 = vadd.f32 %v2058, %v2080
    %2082 = vdwg.mxu0
    %v2083 = vadd.f32 %v1574, %v1986
    %v2084 = vadd.f32 %v1666, %v2078
    %v2085 = vadd.f32 %v1577, %v1989
    %v2086 = vadd.f32 %v1669, %v2081
    %v2087 = vld [vmem:[%s9] sm:$0x3]
    %v2089 = vperm.slane %v2087, 0
    %v2090 = vperm.slane %v2087, 1
    %v2093 = vadd.f32 %v2083, %v2089
    %v2094 = vadd.f32 %v2084, %v2090
    %v2095 = vadd.f32 %v2085, %v2089
    %v2096 = vadd.f32 %v2086, %v2090
    %v2097 = vmax.f32 %v2093, 0.0
    %v2098 = vmax.f32 %v2094, 0.0
    %v2099 = vmax.f32 %v2095, 0.0
    %v2100 = vmax.f32 %v2096, 0.0
    %v2101 = vld [vmem:[%s10] sm:$0x3f]
    %vm2102 = vcmask 113664
    %v2104 = vsel %vm2102, %v2101, 0
    %v2107 = vsel %vm843, %v2099, 0
    %v2110 = vsel %vm843, %v2100, 0
    %2112 = vmatpush.msra.mxu0 0.0
    %2113 = vmatpush.msra.mxu0 0.0
    %2114 = vmatpush.msra.mxu0 0.0
    %2115 = vmatpush.msra.mxu0 0.0
    %2116 = vmatpush.msra.mxu0 0.0
    %2117 = vmatpush.msra.mxu0 0.0
    %2118 = vmatpush.msra.mxu0 0.0
    %2119 = vmatpush.msra.mxu0 0.0
    %2120 = vmatpush.msra.mxu0 0.0
    %2121 = vmatpush.msra.mxu0 0.0
    %2122 = vmatpush.msra.mxu0 0.0
    %2123 = vmatpush.msra.mxu0 0.0
    %2124 = vmatpush.msra.mxu0 0.0
    %2125 = vmatpush.msra.mxu0 0.0
    %2126 = vmatpush.msra.mxu0 %v2107
    %2127 = vmatpush.msra.mxu0 %v2097
    %2128 = vmatmul.f32.gmra.mxu0 %v2104
    %v2129 = vpop.f32.mrf.mxu0
    %v2130 = vadd.f32 0.0, %v2129
    %2131 = vdwg.mxu0
    %2132 = vmatpush.msra.mxu0 0.0
    %2133 = vmatpush.msra.mxu0 0.0
    %2134 = vmatpush.msra.mxu0 0.0
    %2135 = vmatpush.msra.mxu0 0.0
    %2136 = vmatpush.msra.mxu0 0.0
    %2137 = vmatpush.msra.mxu0 0.0
    %2138 = vmatpush.msra.mxu0 0.0
    %2139 = vmatpush.msra.mxu0 0.0
    %2140 = vmatpush.msra.mxu0 0.0
    %2141 = vmatpush.msra.mxu0 0.0
    %2142 = vmatpush.msra.mxu0 0.0
    %2143 = vmatpush.msra.mxu0 0.0
    %2144 = vmatpush.msra.mxu0 0.0
    %2145 = vmatpush.msra.mxu0 0.0
    %2146 = vmatpush.msra.mxu0 %v2110
    %2147 = vmatpush.msra.mxu0 %v2098
    %2148 = vmatmul.f32.gmra.mxu0 %v2104
    %v2149 = vpop.f32.mrf.mxu0
    %v2150 = vadd.f32 0.0, %v2149
    %2151 = vdwg.mxu0
    %v2152 = vld [vmem:[%s11] sm:$0xff]
    %v2153 = vld [vmem:[%s11 + $0x8] sm:$0xff]
    %v2154 = vld [vmem:[%s11 + $0x10] sm:$0xff]
    %v2155 = vld [vmem:[%s11 + $0x18] sm:$0xff]
    %v2156 = vld [vmem:[%s11 + $0x20] sm:$0xff]
    %v2157 = vld [vmem:[%s11 + $0x28] sm:$0xff]
    %v2158 = vld [vmem:[%s11 + $0x30] sm:$0xff]
    %v2159 = vld [vmem:[%s11 + $0x38] sm:$0xff]
    %v2160 = vld [vmem:[%s11 + $0x40] sm:$0xff]
    %v2161 = vld [vmem:[%s11 + $0x48] sm:$0xff]
    %v2162 = vld [vmem:[%s11 + $0x50] sm:$0xff]
    %v2163 = vld [vmem:[%s11 + $0x58] sm:$0xff]
    %v2164 = vld [vmem:[%s11 + $0x60] sm:$0xff]
    %v2165 = vld [vmem:[%s11 + $0x68] sm:$0xff]
    %v2166 = vld [vmem:[%s11 + $0x70] sm:$0xff]
    %v2167 = vld [vmem:[%s11 + $0x78] sm:$0xff]
    %v2168 = vld [vmem:[%s11 + $0x80] sm:$0xff]
    %v2169 = vld [vmem:[%s11 + $0x88] sm:$0xff]
    %v2170 = vld [vmem:[%s11 + $0x90] sm:$0xff]
    %v2171 = vld [vmem:[%s11 + $0x98] sm:$0xff]
    %v2172 = vld [vmem:[%s11 + $0xa0] sm:$0xff]
    %v2173 = vld [vmem:[%s11 + $0xa8] sm:$0xff]
    %v2174 = vld [vmem:[%s11 + $0xb0] sm:$0xff]
    %v2175 = vld [vmem:[%s11 + $0xb8] sm:$0xff]
    %v2176 = vld [vmem:[%s11 + $0xc0] sm:$0xff]
    %v2177 = vld [vmem:[%s11 + $0xc8] sm:$0xff]
    %v2178 = vld [vmem:[%s11 + $0xd0] sm:$0xff]
    %v2179 = vld [vmem:[%s11 + $0xd8] sm:$0xff]
    %v2180 = vld [vmem:[%s11 + $0xe0] sm:$0xff]
    %v2181 = vld [vmem:[%s11 + $0xe8] sm:$0xff]
    %v2182 = vld [vmem:[%s11 + $0xf0] sm:$0xff]
    %v2183 = vld [vmem:[%s11 + $0xf8] sm:$0xff]
    %v2184 = vld [vmem:[%s11 + $0x100] sm:$0xff]
    %v2185 = vld [vmem:[%s11 + $0x108] sm:$0xff]
    %v2186 = vld [vmem:[%s11 + $0x110] sm:$0xff]
    %v2187 = vld [vmem:[%s11 + $0x118] sm:$0xff]
    %v2188 = vld [vmem:[%s11 + $0x120] sm:$0xff]
    %v2189 = vld [vmem:[%s11 + $0x128] sm:$0xff]
    %v2190 = vld [vmem:[%s11 + $0x130] sm:$0xff]
    %v2191 = vld [vmem:[%s11 + $0x138] sm:$0xff]
    %v2192 = vld [vmem:[%s11 + $0x140] sm:$0xff]
    %v2193 = vld [vmem:[%s11 + $0x148] sm:$0xff]
    %v2194 = vld [vmem:[%s11 + $0x150] sm:$0xff]
    %v2195 = vld [vmem:[%s11 + $0x158] sm:$0xff]
    %v2196 = vld [vmem:[%s11 + $0x160] sm:$0xff]
    %v2197 = vld [vmem:[%s11 + $0x168] sm:$0xff]
    %v2198 = vld [vmem:[%s11 + $0x170] sm:$0xff]
    %v2199 = vld [vmem:[%s11 + $0x178] sm:$0xff]
    %v2200 = vld [vmem:[%s11 + $0x180] sm:$0xff]
    %v2201 = vld [vmem:[%s11 + $0x188] sm:$0xff]
    %v2202 = vld [vmem:[%s11 + $0x190] sm:$0xff]
    %v2203 = vld [vmem:[%s11 + $0x198] sm:$0xff]
    %v2204 = vld [vmem:[%s11 + $0x1a0] sm:$0xff]
    %v2205 = vld [vmem:[%s11 + $0x1a8] sm:$0xff]
    %v2206 = vld [vmem:[%s11 + $0x1b0] sm:$0xff]
    %v2207 = vld [vmem:[%s11 + $0x1b8] sm:$0xff]
    %s2208 = scalar_lea.vmem %s10, 8
    %v2209 = vld [vmem:[%s2208] sm:$0x3f]
    %v2211 = vsel %vm2102, %v2209, 0
    %2213 = vmatpush.msra.mxu0 0.0
    %2214 = vmatpush.msra.mxu0 0.0
    %2215 = vmatpush.msra.mxu0 0.0
    %2216 = vmatpush.msra.mxu0 0.0
    %2217 = vmatpush.msra.mxu0 0.0
    %2218 = vmatpush.msra.mxu0 0.0
    %2219 = vmatpush.msra.mxu0 0.0
    %2220 = vmatpush.msra.mxu0 0.0
    %2221 = vmatpush.msra.mxu0 0.0
    %2222 = vmatpush.msra.mxu0 0.0
    %2223 = vmatpush.msra.mxu0 0.0
    %2224 = vmatpush.msra.mxu0 0.0
    %2225 = vmatpush.msra.mxu0 0.0
    %2226 = vmatpush.msra.mxu0 0.0
    %2227 = vmatpush.msra.mxu0 %v2107
    %2228 = vmatpush.msra.mxu0 %v2097
    %2229 = vmatmul.f32.gmra.mxu0 %v2211
    %v2230 = vpop.f32.mrf.mxu0
    %v2231 = vadd.f32 0.0, %v2230
    %2232 = vdwg.mxu0
    %2233 = vmatpush.msra.mxu0 0.0
    %2234 = vmatpush.msra.mxu0 0.0
    %2235 = vmatpush.msra.mxu0 0.0
    %2236 = vmatpush.msra.mxu0 0.0
    %2237 = vmatpush.msra.mxu0 0.0
    %2238 = vmatpush.msra.mxu0 0.0
    %2239 = vmatpush.msra.mxu0 0.0
    %2240 = vmatpush.msra.mxu0 0.0
    %2241 = vmatpush.msra.mxu0 0.0
    %2242 = vmatpush.msra.mxu0 0.0
    %2243 = vmatpush.msra.mxu0 0.0
    %2244 = vmatpush.msra.mxu0 0.0
    %2245 = vmatpush.msra.mxu0 0.0
    %2246 = vmatpush.msra.mxu0 0.0
    %2247 = vmatpush.msra.mxu0 %v2110
    %2248 = vmatpush.msra.mxu0 %v2098
    %2249 = vmatmul.f32.gmra.mxu0 %v2211
    %v2250 = vpop.f32.mrf.mxu0
    %v2251 = vadd.f32 0.0, %v2250
    %2252 = vdwg.mxu0
    %s2253 = scalar_lea.vmem %s11, 448
    %v2254 = vld [vmem:[%s2253] sm:$0xff]
    %v2255 = vld [vmem:[%s2253 + $0x8] sm:$0xff]
    %v2256 = vld [vmem:[%s2253 + $0x10] sm:$0xff]
    %v2257 = vld [vmem:[%s2253 + $0x18] sm:$0xff]
    %v2258 = vld [vmem:[%s2253 + $0x20] sm:$0xff]
    %v2259 = vld [vmem:[%s2253 + $0x28] sm:$0xff]
    %v2260 = vld [vmem:[%s2253 + $0x30] sm:$0xff]
    %v2261 = vld [vmem:[%s2253 + $0x38] sm:$0xff]
    %v2262 = vld [vmem:[%s2253 + $0x40] sm:$0xff]
    %v2263 = vld [vmem:[%s2253 + $0x48] sm:$0xff]
    %v2264 = vld [vmem:[%s2253 + $0x50] sm:$0xff]
    %v2265 = vld [vmem:[%s2253 + $0x58] sm:$0xff]
    %v2266 = vld [vmem:[%s2253 + $0x60] sm:$0xff]
    %v2267 = vld [vmem:[%s2253 + $0x68] sm:$0xff]
    %v2268 = vld [vmem:[%s2253 + $0x70] sm:$0xff]
    %v2269 = vld [vmem:[%s2253 + $0x78] sm:$0xff]
    %v2270 = vld [vmem:[%s2253 + $0x80] sm:$0xff]
    %v2271 = vld [vmem:[%s2253 + $0x88] sm:$0xff]
    %v2272 = vld [vmem:[%s2253 + $0x90] sm:$0xff]
    %v2273 = vld [vmem:[%s2253 + $0x98] sm:$0xff]
    %v2274 = vld [vmem:[%s2253 + $0xa0] sm:$0xff]
    %v2275 = vld [vmem:[%s2253 + $0xa8] sm:$0xff]
    %v2276 = vld [vmem:[%s2253 + $0xb0] sm:$0xff]
    %v2277 = vld [vmem:[%s2253 + $0xb8] sm:$0xff]
    %v2278 = vld [vmem:[%s2253 + $0xc0] sm:$0xff]
    %v2279 = vld [vmem:[%s2253 + $0xc8] sm:$0xff]
    %v2280 = vld [vmem:[%s2253 + $0xd0] sm:$0xff]
    %v2281 = vld [vmem:[%s2253 + $0xd8] sm:$0xff]
    %v2282 = vld [vmem:[%s2253 + $0xe0] sm:$0xff]
    %v2283 = vld [vmem:[%s2253 + $0xe8] sm:$0xff]
    %v2284 = vld [vmem:[%s2253 + $0xf0] sm:$0xff]
    %v2285 = vld [vmem:[%s2253 + $0xf8] sm:$0xff]
    %v2286 = vld [vmem:[%s2253 + $0x100] sm:$0xff]
    %v2287 = vld [vmem:[%s2253 + $0x108] sm:$0xff]
    %v2288 = vld [vmem:[%s2253 + $0x110] sm:$0xff]
    %v2289 = vld [vmem:[%s2253 + $0x118] sm:$0xff]
    %v2290 = vld [vmem:[%s2253 + $0x120] sm:$0xff]
    %v2291 = vld [vmem:[%s2253 + $0x128] sm:$0xff]
    %v2292 = vld [vmem:[%s2253 + $0x130] sm:$0xff]
    %v2293 = vld [vmem:[%s2253 + $0x138] sm:$0xff]
    %v2294 = vld [vmem:[%s2253 + $0x140] sm:$0xff]
    %v2295 = vld [vmem:[%s2253 + $0x148] sm:$0xff]
    %v2296 = vld [vmem:[%s2253 + $0x150] sm:$0xff]
    %v2297 = vld [vmem:[%s2253 + $0x158] sm:$0xff]
    %v2298 = vld [vmem:[%s2253 + $0x160] sm:$0xff]
    %v2299 = vld [vmem:[%s2253 + $0x168] sm:$0xff]
    %v2300 = vld [vmem:[%s2253 + $0x170] sm:$0xff]
    %v2301 = vld [vmem:[%s2253 + $0x178] sm:$0xff]
    %v2302 = vld [vmem:[%s2253 + $0x180] sm:$0xff]
    %v2303 = vld [vmem:[%s2253 + $0x188] sm:$0xff]
    %v2304 = vld [vmem:[%s2253 + $0x190] sm:$0xff]
    %v2305 = vld [vmem:[%s2253 + $0x198] sm:$0xff]
    %v2306 = vld [vmem:[%s2253 + $0x1a0] sm:$0xff]
    %v2307 = vld [vmem:[%s2253 + $0x1a8] sm:$0xff]
    %v2308 = vld [vmem:[%s2253 + $0x1b0] sm:$0xff]
    %v2309 = vld [vmem:[%s2253 + $0x1b8] sm:$0xff]
    %v2311 = vsel %vm1290, %v2251, 0
    %2313 = vmatpush.msra.mxu0 %v2284
    %2314 = vmatpush.msra.mxu0 %v2282
    %2315 = vmatpush.msra.mxu0 %v2280
    %2316 = vmatpush.msra.mxu0 %v2278
    %2317 = vmatpush.msra.mxu0 %v2276
    %2318 = vmatpush.msra.mxu0 %v2274
    %2319 = vmatpush.msra.mxu0 %v2272
    %2320 = vmatpush.msra.mxu0 %v2270
    %2321 = vmatpush.msra.mxu0 %v2268
    %2322 = vmatpush.msra.mxu0 %v2266
    %2323 = vmatpush.msra.mxu0 %v2264
    %2324 = vmatpush.msra.mxu0 %v2262
    %2325 = vmatpush.msra.mxu0 %v2260
    %2326 = vmatpush.msra.mxu0 %v2258
    %2327 = vmatpush.msra.mxu0 %v2256
    %2328 = vmatpush.msra.mxu0 %v2254
    %2329 = vmatmul.f32.gmra.mxu0 %v2231
    %v2330 = vpop.f32.mrf.mxu0
    %v2331 = vadd.f32 0.0, %v2330
    %2332 = vdwg.mxu0
    %2333 = vmatpush.msra.mxu0 0.0
    %2334 = vmatpush.msra.mxu0 0.0
    %2335 = vmatpush.msra.mxu0 0.0
    %2336 = vmatpush.msra.mxu0 0.0
    %2337 = vmatpush.msra.mxu0 %v2308
    %2338 = vmatpush.msra.mxu0 %v2306
    %2339 = vmatpush.msra.mxu0 %v2304
    %2340 = vmatpush.msra.mxu0 %v2302
    %2341 = vmatpush.msra.mxu0 %v2300
    %2342 = vmatpush.msra.mxu0 %v2298
    %2343 = vmatpush.msra.mxu0 %v2296
    %2344 = vmatpush.msra.mxu0 %v2294
    %2345 = vmatpush.msra.mxu0 %v2292
    %2346 = vmatpush.msra.mxu0 %v2290
    %2347 = vmatpush.msra.mxu0 %v2288
    %2348 = vmatpush.msra.mxu0 %v2286
    %2349 = vmatmul.f32.gmra.mxu0 %v2311
    %v2350 = vpop.f32.mrf.mxu0
    %v2351 = vadd.f32 %v2331, %v2350
    %2352 = vdwg.mxu0
    %2353 = vmatpush.msra.mxu0 %v2285
    %2354 = vmatpush.msra.mxu0 %v2283
    %2355 = vmatpush.msra.mxu0 %v2281
    %2356 = vmatpush.msra.mxu0 %v2279
    %2357 = vmatpush.msra.mxu0 %v2277
    %2358 = vmatpush.msra.mxu0 %v2275
    %2359 = vmatpush.msra.mxu0 %v2273
    %2360 = vmatpush.msra.mxu0 %v2271
    %2361 = vmatpush.msra.mxu0 %v2269
    %2362 = vmatpush.msra.mxu0 %v2267
    %2363 = vmatpush.msra.mxu0 %v2265
    %2364 = vmatpush.msra.mxu0 %v2263
    %2365 = vmatpush.msra.mxu0 %v2261
    %2366 = vmatpush.msra.mxu0 %v2259
    %2367 = vmatpush.msra.mxu0 %v2257
    %2368 = vmatpush.msra.mxu0 %v2255
    %2369 = vmatmul.f32.gmra.mxu0 %v2231
    %v2370 = vpop.f32.mrf.mxu0
    %v2371 = vadd.f32 0.0, %v2370
    %2372 = vdwg.mxu0
    %2373 = vmatpush.msra.mxu0 0.0
    %2374 = vmatpush.msra.mxu0 0.0
    %2375 = vmatpush.msra.mxu0 0.0
    %2376 = vmatpush.msra.mxu0 0.0
    %2377 = vmatpush.msra.mxu0 %v2309
    %2378 = vmatpush.msra.mxu0 %v2307
    %2379 = vmatpush.msra.mxu0 %v2305
    %2380 = vmatpush.msra.mxu0 %v2303
    %2381 = vmatpush.msra.mxu0 %v2301
    %2382 = vmatpush.msra.mxu0 %v2299
    %2383 = vmatpush.msra.mxu0 %v2297
    %2384 = vmatpush.msra.mxu0 %v2295
    %2385 = vmatpush.msra.mxu0 %v2293
    %2386 = vmatpush.msra.mxu0 %v2291
    %2387 = vmatpush.msra.mxu0 %v2289
    %2388 = vmatpush.msra.mxu0 %v2287
    %2389 = vmatmul.f32.gmra.mxu0 %v2311
    %v2390 = vpop.f32.mrf.mxu0
    %v2391 = vadd.f32 %v2371, %v2390
    %2392 = vdwg.mxu0
    %v2394 = vsel %vm1290, %v2150, 0
    %2396 = vmatpush.msra.mxu0 %v2182
    %2397 = vmatpush.msra.mxu0 %v2180
    %2398 = vmatpush.msra.mxu0 %v2178
    %2399 = vmatpush.msra.mxu0 %v2176
    %2400 = vmatpush.msra.mxu0 %v2174
    %2401 = vmatpush.msra.mxu0 %v2172
    %2402 = vmatpush.msra.mxu0 %v2170
    %2403 = vmatpush.msra.mxu0 %v2168
    %2404 = vmatpush.msra.mxu0 %v2166
    %2405 = vmatpush.msra.mxu0 %v2164
    %2406 = vmatpush.msra.mxu0 %v2162
    %2407 = vmatpush.msra.mxu0 %v2160
    %2408 = vmatpush.msra.mxu0 %v2158
    %2409 = vmatpush.msra.mxu0 %v2156
    %2410 = vmatpush.msra.mxu0 %v2154
    %2411 = vmatpush.msra.mxu0 %v2152
    %2412 = vmatmul.f32.gmra.mxu0 %v2130
    %v2413 = vpop.f32.mrf.mxu0
    %v2414 = vadd.f32 %v2351, %v2413
    %2415 = vdwg.mxu0
    %2416 = vmatpush.msra.mxu0 0.0
    %2417 = vmatpush.msra.mxu0 0.0
    %2418 = vmatpush.msra.mxu0 0.0
    %2419 = vmatpush.msra.mxu0 0.0
    %2420 = vmatpush.msra.mxu0 %v2206
    %2421 = vmatpush.msra.mxu0 %v2204
    %2422 = vmatpush.msra.mxu0 %v2202
    %2423 = vmatpush.msra.mxu0 %v2200
    %2424 = vmatpush.msra.mxu0 %v2198
    %2425 = vmatpush.msra.mxu0 %v2196
    %2426 = vmatpush.msra.mxu0 %v2194
    %2427 = vmatpush.msra.mxu0 %v2192
    %2428 = vmatpush.msra.mxu0 %v2190
    %2429 = vmatpush.msra.mxu0 %v2188
    %2430 = vmatpush.msra.mxu0 %v2186
    %2431 = vmatpush.msra.mxu0 %v2184
    %2432 = vmatmul.f32.gmra.mxu0 %v2394
    %v2433 = vpop.f32.mrf.mxu0
    %v2434 = vadd.f32 %v2414, %v2433
    %2435 = vdwg.mxu0
    %2436 = vmatpush.msra.mxu0 %v2183
    %2437 = vmatpush.msra.mxu0 %v2181
    %2438 = vmatpush.msra.mxu0 %v2179
    %2439 = vmatpush.msra.mxu0 %v2177
    %2440 = vmatpush.msra.mxu0 %v2175
    %2441 = vmatpush.msra.mxu0 %v2173
    %2442 = vmatpush.msra.mxu0 %v2171
    %2443 = vmatpush.msra.mxu0 %v2169
    %2444 = vmatpush.msra.mxu0 %v2167
    %2445 = vmatpush.msra.mxu0 %v2165
    %2446 = vmatpush.msra.mxu0 %v2163
    %2447 = vmatpush.msra.mxu0 %v2161
    %2448 = vmatpush.msra.mxu0 %v2159
    %2449 = vmatpush.msra.mxu0 %v2157
    %2450 = vmatpush.msra.mxu0 %v2155
    %2451 = vmatpush.msra.mxu0 %v2153
    %2452 = vmatmul.f32.gmra.mxu0 %v2130
    %v2453 = vpop.f32.mrf.mxu0
    %v2454 = vadd.f32 %v2391, %v2453
    %2455 = vdwg.mxu0
    %2456 = vmatpush.msra.mxu0 0.0
    %2457 = vmatpush.msra.mxu0 0.0
    %2458 = vmatpush.msra.mxu0 0.0
    %2459 = vmatpush.msra.mxu0 0.0
    %2460 = vmatpush.msra.mxu0 %v2207
    %2461 = vmatpush.msra.mxu0 %v2205
    %2462 = vmatpush.msra.mxu0 %v2203
    %2463 = vmatpush.msra.mxu0 %v2201
    %2464 = vmatpush.msra.mxu0 %v2199
    %2465 = vmatpush.msra.mxu0 %v2197
    %2466 = vmatpush.msra.mxu0 %v2195
    %2467 = vmatpush.msra.mxu0 %v2193
    %2468 = vmatpush.msra.mxu0 %v2191
    %2469 = vmatpush.msra.mxu0 %v2189
    %2470 = vmatpush.msra.mxu0 %v2187
    %2471 = vmatpush.msra.mxu0 %v2185
    %2472 = vmatmul.f32.gmra.mxu0 %v2394
    %v2473 = vpop.f32.mrf.mxu0
    %v2474 = vadd.f32 %v2454, %v2473
    %2475 = vdwg.mxu0
    %s2476 = scalar_lea.vmem %s10, 16
    %v2477 = vld [vmem:[%s2476] sm:$0x3f]
    %v2479 = vsel %vm2102, %v2477, 0
    %2481 = vmatpush.msra.mxu0 0.0
    %2482 = vmatpush.msra.mxu0 0.0
    %2483 = vmatpush.msra.mxu0 0.0
    %2484 = vmatpush.msra.mxu0 0.0
    %2485 = vmatpush.msra.mxu0 0.0
    %2486 = vmatpush.msra.mxu0 0.0
    %2487 = vmatpush.msra.mxu0 0.0
    %2488 = vmatpush.msra.mxu0 0.0
    %2489 = vmatpush.msra.mxu0 0.0
    %2490 = vmatpush.msra.mxu0 0.0
    %2491 = vmatpush.msra.mxu0 0.0
    %2492 = vmatpush.msra.mxu0 0.0
    %2493 = vmatpush.msra.mxu0 0.0
    %2494 = vmatpush.msra.mxu0 0.0
    %2495 = vmatpush.msra.mxu0 %v2107
    %2496 = vmatpush.msra.mxu0 %v2097
    %2497 = vmatmul.f32.gmra.mxu0 %v2479
    %v2498 = vpop.f32.mrf.mxu0
    %v2499 = vadd.f32 0.0, %v2498
    %2500 = vdwg.mxu0
    %2501 = vmatpush.msra.mxu0 0.0
    %2502 = vmatpush.msra.mxu0 0.0
    %2503 = vmatpush.msra.mxu0 0.0
    %2504 = vmatpush.msra.mxu0 0.0
    %2505 = vmatpush.msra.mxu0 0.0
    %2506 = vmatpush.msra.mxu0 0.0
    %2507 = vmatpush.msra.mxu0 0.0
    %2508 = vmatpush.msra.mxu0 0.0
    %2509 = vmatpush.msra.mxu0 0.0
    %2510 = vmatpush.msra.mxu0 0.0
    %2511 = vmatpush.msra.mxu0 0.0
    %2512 = vmatpush.msra.mxu0 0.0
    %2513 = vmatpush.msra.mxu0 0.0
    %2514 = vmatpush.msra.mxu0 0.0
    %2515 = vmatpush.msra.mxu0 %v2110
    %2516 = vmatpush.msra.mxu0 %v2098
    %2517 = vmatmul.f32.gmra.mxu0 %v2479
    %v2518 = vpop.f32.mrf.mxu0
    %v2519 = vadd.f32 0.0, %v2518
    %2520 = vdwg.mxu0
    %s2521 = scalar_lea.vmem %s11, 896
    %v2522 = vld [vmem:[%s2521] sm:$0xff]
    %v2523 = vld [vmem:[%s2521 + $0x8] sm:$0xff]
    %v2524 = vld [vmem:[%s2521 + $0x10] sm:$0xff]
    %v2525 = vld [vmem:[%s2521 + $0x18] sm:$0xff]
    %v2526 = vld [vmem:[%s2521 + $0x20] sm:$0xff]
    %v2527 = vld [vmem:[%s2521 + $0x28] sm:$0xff]
    %v2528 = vld [vmem:[%s2521 + $0x30] sm:$0xff]
    %v2529 = vld [vmem:[%s2521 + $0x38] sm:$0xff]
    %v2530 = vld [vmem:[%s2521 + $0x40] sm:$0xff]
    %v2531 = vld [vmem:[%s2521 + $0x48] sm:$0xff]
    %v2532 = vld [vmem:[%s2521 + $0x50] sm:$0xff]
    %v2533 = vld [vmem:[%s2521 + $0x58] sm:$0xff]
    %v2534 = vld [vmem:[%s2521 + $0x60] sm:$0xff]
    %v2535 = vld [vmem:[%s2521 + $0x68] sm:$0xff]
    %v2536 = vld [vmem:[%s2521 + $0x70] sm:$0xff]
    %v2537 = vld [vmem:[%s2521 + $0x78] sm:$0xff]
    %v2538 = vld [vmem:[%s2521 + $0x80] sm:$0xff]
    %v2539 = vld [vmem:[%s2521 + $0x88] sm:$0xff]
    %v2540 = vld [vmem:[%s2521 + $0x90] sm:$0xff]
    %v2541 = vld [vmem:[%s2521 + $0x98] sm:$0xff]
    %v2542 = vld [vmem:[%s2521 + $0xa0] sm:$0xff]
    %v2543 = vld [vmem:[%s2521 + $0xa8] sm:$0xff]
    %v2544 = vld [vmem:[%s2521 + $0xb0] sm:$0xff]
    %v2545 = vld [vmem:[%s2521 + $0xb8] sm:$0xff]
    %v2546 = vld [vmem:[%s2521 + $0xc0] sm:$0xff]
    %v2547 = vld [vmem:[%s2521 + $0xc8] sm:$0xff]
    %v2548 = vld [vmem:[%s2521 + $0xd0] sm:$0xff]
    %v2549 = vld [vmem:[%s2521 + $0xd8] sm:$0xff]
    %v2550 = vld [vmem:[%s2521 + $0xe0] sm:$0xff]
    %v2551 = vld [vmem:[%s2521 + $0xe8] sm:$0xff]
    %v2552 = vld [vmem:[%s2521 + $0xf0] sm:$0xff]
    %v2553 = vld [vmem:[%s2521 + $0xf8] sm:$0xff]
    %v2554 = vld [vmem:[%s2521 + $0x100] sm:$0xff]
    %v2555 = vld [vmem:[%s2521 + $0x108] sm:$0xff]
    %v2556 = vld [vmem:[%s2521 + $0x110] sm:$0xff]
    %v2557 = vld [vmem:[%s2521 + $0x118] sm:$0xff]
    %v2558 = vld [vmem:[%s2521 + $0x120] sm:$0xff]
    %v2559 = vld [vmem:[%s2521 + $0x128] sm:$0xff]
    %v2560 = vld [vmem:[%s2521 + $0x130] sm:$0xff]
    %v2561 = vld [vmem:[%s2521 + $0x138] sm:$0xff]
    %v2562 = vld [vmem:[%s2521 + $0x140] sm:$0xff]
    %v2563 = vld [vmem:[%s2521 + $0x148] sm:$0xff]
    %v2564 = vld [vmem:[%s2521 + $0x150] sm:$0xff]
    %v2565 = vld [vmem:[%s2521 + $0x158] sm:$0xff]
    %v2566 = vld [vmem:[%s2521 + $0x160] sm:$0xff]
    %v2567 = vld [vmem:[%s2521 + $0x168] sm:$0xff]
    %v2568 = vld [vmem:[%s2521 + $0x170] sm:$0xff]
    %v2569 = vld [vmem:[%s2521 + $0x178] sm:$0xff]
    %v2570 = vld [vmem:[%s2521 + $0x180] sm:$0xff]
    %v2571 = vld [vmem:[%s2521 + $0x188] sm:$0xff]
    %v2572 = vld [vmem:[%s2521 + $0x190] sm:$0xff]
    %v2573 = vld [vmem:[%s2521 + $0x198] sm:$0xff]
    %v2574 = vld [vmem:[%s2521 + $0x1a0] sm:$0xff]
    %v2575 = vld [vmem:[%s2521 + $0x1a8] sm:$0xff]
    %v2576 = vld [vmem:[%s2521 + $0x1b0] sm:$0xff]
    %v2577 = vld [vmem:[%s2521 + $0x1b8] sm:$0xff]
    %v2579 = vsel %vm1290, %v2519, 0
    %2581 = vmatpush.msra.mxu0 %v2552
    %2582 = vmatpush.msra.mxu0 %v2550
    %2583 = vmatpush.msra.mxu0 %v2548
    %2584 = vmatpush.msra.mxu0 %v2546
    %2585 = vmatpush.msra.mxu0 %v2544
    %2586 = vmatpush.msra.mxu0 %v2542
    %2587 = vmatpush.msra.mxu0 %v2540
    %2588 = vmatpush.msra.mxu0 %v2538
    %2589 = vmatpush.msra.mxu0 %v2536
    %2590 = vmatpush.msra.mxu0 %v2534
    %2591 = vmatpush.msra.mxu0 %v2532
    %2592 = vmatpush.msra.mxu0 %v2530
    %2593 = vmatpush.msra.mxu0 %v2528
    %2594 = vmatpush.msra.mxu0 %v2526
    %2595 = vmatpush.msra.mxu0 %v2524
    %2596 = vmatpush.msra.mxu0 %v2522
    %2597 = vmatmul.f32.gmra.mxu0 %v2499
    %v2598 = vpop.f32.mrf.mxu0
    %v2599 = vadd.f32 0.0, %v2598
    %2600 = vdwg.mxu0
    %2601 = vmatpush.msra.mxu0 0.0
    %2602 = vmatpush.msra.mxu0 0.0
    %2603 = vmatpush.msra.mxu0 0.0
    %2604 = vmatpush.msra.mxu0 0.0
    %2605 = vmatpush.msra.mxu0 %v2576
    %2606 = vmatpush.msra.mxu0 %v2574
    %2607 = vmatpush.msra.mxu0 %v2572
    %2608 = vmatpush.msra.mxu0 %v2570
    %2609 = vmatpush.msra.mxu0 %v2568
    %2610 = vmatpush.msra.mxu0 %v2566
    %2611 = vmatpush.msra.mxu0 %v2564
    %2612 = vmatpush.msra.mxu0 %v2562
    %2613 = vmatpush.msra.mxu0 %v2560
    %2614 = vmatpush.msra.mxu0 %v2558
    %2615 = vmatpush.msra.mxu0 %v2556
    %2616 = vmatpush.msra.mxu0 %v2554
    %2617 = vmatmul.f32.gmra.mxu0 %v2579
    %v2618 = vpop.f32.mrf.mxu0
    %v2619 = vadd.f32 %v2599, %v2618
    %2620 = vdwg.mxu0
    %2621 = vmatpush.msra.mxu0 %v2553
    %2622 = vmatpush.msra.mxu0 %v2551
    %2623 = vmatpush.msra.mxu0 %v2549
    %2624 = vmatpush.msra.mxu0 %v2547
    %2625 = vmatpush.msra.mxu0 %v2545
    %2626 = vmatpush.msra.mxu0 %v2543
    %2627 = vmatpush.msra.mxu0 %v2541
    %2628 = vmatpush.msra.mxu0 %v2539
    %2629 = vmatpush.msra.mxu0 %v2537
    %2630 = vmatpush.msra.mxu0 %v2535
    %2631 = vmatpush.msra.mxu0 %v2533
    %2632 = vmatpush.msra.mxu0 %v2531
    %2633 = vmatpush.msra.mxu0 %v2529
    %2634 = vmatpush.msra.mxu0 %v2527
    %2635 = vmatpush.msra.mxu0 %v2525
    %2636 = vmatpush.msra.mxu0 %v2523
    %2637 = vmatmul.f32.gmra.mxu0 %v2499
    %v2638 = vpop.f32.mrf.mxu0
    %v2639 = vadd.f32 0.0, %v2638
    %2640 = vdwg.mxu0
    %2641 = vmatpush.msra.mxu0 0.0
    %2642 = vmatpush.msra.mxu0 0.0
    %2643 = vmatpush.msra.mxu0 0.0
    %2644 = vmatpush.msra.mxu0 0.0
    %2645 = vmatpush.msra.mxu0 %v2577
    %2646 = vmatpush.msra.mxu0 %v2575
    %2647 = vmatpush.msra.mxu0 %v2573
    %2648 = vmatpush.msra.mxu0 %v2571
    %2649 = vmatpush.msra.mxu0 %v2569
    %2650 = vmatpush.msra.mxu0 %v2567
    %2651 = vmatpush.msra.mxu0 %v2565
    %2652 = vmatpush.msra.mxu0 %v2563
    %2653 = vmatpush.msra.mxu0 %v2561
    %2654 = vmatpush.msra.mxu0 %v2559
    %2655 = vmatpush.msra.mxu0 %v2557
    %2656 = vmatpush.msra.mxu0 %v2555
    %2657 = vmatmul.f32.gmra.mxu0 %v2579
    %v2658 = vpop.f32.mrf.mxu0
    %v2659 = vadd.f32 %v2639, %v2658
    %2660 = vdwg.mxu0
    %v2661 = vadd.f32 %v2434, %v2619
    %v2662 = vadd.f32 %v2474, %v2659
    %v2663 = vld [vmem:[%s12] sm:$0x3]
    %v2665 = vperm.slane %v2663, 0
    %v2666 = vperm.slane %v2663, 1
    %v2669 = vadd.f32 %v2661, %v2665
    %v2670 = vadd.f32 %v2662, %v2666
    %v2671 = vmax.f32 %v2669, 0.0
    %v2672 = vmax.f32 %v2670, 0.0
    %v2673 = vld [vmem:[%s13] sm:$0x3]
    %vm2674 = vcmask 48128
    %v2676 = vsel %vm2674, %v2673, 0
    %v2679 = vsel %vm843, %v2671, 0
    %v2682 = vsel %vm843, %v2672, 0
    %2684 = vmatpush.msra.mxu0 0.0
    %2685 = vmatpush.msra.mxu0 0.0
    %2686 = vmatpush.msra.mxu0 0.0
    %2687 = vmatpush.msra.mxu0 0.0
    %2688 = vmatpush.msra.mxu0 0.0
    %2689 = vmatpush.msra.mxu0 0.0
    %2690 = vmatpush.msra.mxu0 0.0
    %2691 = vmatpush.msra.mxu0 0.0
    %2692 = vmatpush.msra.mxu0 0.0
    %2693 = vmatpush.msra.mxu0 0.0
    %2694 = vmatpush.msra.mxu0 0.0
    %2695 = vmatpush.msra.mxu0 0.0
    %2696 = vmatpush.msra.mxu0 0.0
    %2697 = vmatpush.msra.mxu0 0.0
    %2698 = vmatpush.msra.mxu0 0.0
    %2699 = vmatpush.msra.mxu0 %v2679
    %2700 = vmatmul.f32.gmra.mxu0 %v2676
    %v2701 = vpop.f32.mrf.mxu0
    %v2702 = vadd.f32 0.0, %v2701
    %2703 = vdwg.mxu0
    %2704 = vmatpush.msra.mxu0 0.0
    %2705 = vmatpush.msra.mxu0 0.0
    %2706 = vmatpush.msra.mxu0 0.0
    %2707 = vmatpush.msra.mxu0 0.0
    %2708 = vmatpush.msra.mxu0 0.0
    %2709 = vmatpush.msra.mxu0 0.0
    %2710 = vmatpush.msra.mxu0 0.0
    %2711 = vmatpush.msra.mxu0 0.0
    %2712 = vmatpush.msra.mxu0 0.0
    %2713 = vmatpush.msra.mxu0 0.0
    %2714 = vmatpush.msra.mxu0 0.0
    %2715 = vmatpush.msra.mxu0 0.0
    %2716 = vmatpush.msra.mxu0 0.0
    %2717 = vmatpush.msra.mxu0 0.0
    %2718 = vmatpush.msra.mxu0 0.0
    %2719 = vmatpush.msra.mxu0 %v2682
    %2720 = vmatmul.f32.gmra.mxu0 %v2676
    %v2721 = vpop.f32.mrf.mxu0
    %v2722 = vadd.f32 0.0, %v2721
    %2723 = vdwg.mxu0
    %v2724 = vld [vmem:[%s14] sm:$0xff]
    %v2725 = vld [vmem:[%s14 + $0x8] sm:$0xff]
    %v2726 = vld [vmem:[%s14 + $0x10] sm:$0xff]
    %v2727 = vld [vmem:[%s14 + $0x18] sm:$0xff]
    %v2728 = vld [vmem:[%s14 + $0x20] sm:$0xff]
    %v2729 = vld [vmem:[%s14 + $0x28] sm:$0xff]
    %v2730 = vld [vmem:[%s14 + $0x30] sm:$0xff]
    %v2731 = vld [vmem:[%s14 + $0x38] sm:$0xff]
    %v2732 = vld [vmem:[%s14 + $0x40] sm:$0xff]
    %v2733 = vld [vmem:[%s14 + $0x48] sm:$0xff]
    %v2734 = vld [vmem:[%s14 + $0x50] sm:$0xff]
    %v2735 = vld [vmem:[%s14 + $0x58] sm:$0xff]
    %v2736 = vld [vmem:[%s14 + $0x60] sm:$0xff]
    %v2737 = vld [vmem:[%s14 + $0x68] sm:$0xff]
    %v2738 = vld [vmem:[%s14 + $0x70] sm:$0xff]
    %v2739 = vld [vmem:[%s14 + $0x78] sm:$0xff]
    %v2740 = vld [vmem:[%s14 + $0x80] sm:$0xff]
    %v2741 = vld [vmem:[%s14 + $0x88] sm:$0xff]
    %v2742 = vld [vmem:[%s14 + $0x90] sm:$0xff]
    %v2743 = vld [vmem:[%s14 + $0x98] sm:$0xff]
    %v2744 = vld [vmem:[%s14 + $0xa0] sm:$0xff]
    %v2745 = vld [vmem:[%s14 + $0xa8] sm:$0xff]
    %v2746 = vld [vmem:[%s14 + $0xb0] sm:$0xff]
    %v2747 = vld [vmem:[%s14 + $0xb8] sm:$0xff]
    %s2748 = scalar_lea.vmem %s13, 2
    %v2749 = vld [vmem:[%s2748] sm:$0x3]
    %v2751 = vsel %vm2674, %v2749, 0
    %2753 = vmatpush.msra.mxu0 0.0
    %2754 = vmatpush.msra.mxu0 0.0
    %2755 = vmatpush.msra.mxu0 0.0
    %2756 = vmatpush.msra.mxu0 0.0
    %2757 = vmatpush.msra.mxu0 0.0
    %2758 = vmatpush.msra.mxu0 0.0
    %2759 = vmatpush.msra.mxu0 0.0
    %2760 = vmatpush.msra.mxu0 0.0
    %2761 = vmatpush.msra.mxu0 0.0
    %2762 = vmatpush.msra.mxu0 0.0
    %2763 = vmatpush.msra.mxu0 0.0
    %2764 = vmatpush.msra.mxu0 0.0
    %2765 = vmatpush.msra.mxu0 0.0
    %2766 = vmatpush.msra.mxu0 0.0
    %2767 = vmatpush.msra.mxu0 0.0
    %2768 = vmatpush.msra.mxu0 %v2679
    %2769 = vmatmul.f32.gmra.mxu0 %v2751
    %v2770 = vpop.f32.mrf.mxu0
    %v2771 = vadd.f32 0.0, %v2770
    %2772 = vdwg.mxu0
    %2773 = vmatpush.msra.mxu0 0.0
    %2774 = vmatpush.msra.mxu0 0.0
    %2775 = vmatpush.msra.mxu0 0.0
    %2776 = vmatpush.msra.mxu0 0.0
    %2777 = vmatpush.msra.mxu0 0.0
    %2778 = vmatpush.msra.mxu0 0.0
    %2779 = vmatpush.msra.mxu0 0.0
    %2780 = vmatpush.msra.mxu0 0.0
    %2781 = vmatpush.msra.mxu0 0.0
    %2782 = vmatpush.msra.mxu0 0.0
    %2783 = vmatpush.msra.mxu0 0.0
    %2784 = vmatpush.msra.mxu0 0.0
    %2785 = vmatpush.msra.mxu0 0.0
    %2786 = vmatpush.msra.mxu0 0.0
    %2787 = vmatpush.msra.mxu0 0.0
    %2788 = vmatpush.msra.mxu0 %v2682
    %2789 = vmatmul.f32.gmra.mxu0 %v2751
    %v2790 = vpop.f32.mrf.mxu0
    %v2791 = vadd.f32 0.0, %v2790
    %2792 = vdwg.mxu0
    %s2793 = scalar_lea.vmem %s14, 192
    %v2794 = vld [vmem:[%s2793] sm:$0xff]
    %v2795 = vld [vmem:[%s2793 + $0x8] sm:$0xff]
    %v2796 = vld [vmem:[%s2793 + $0x10] sm:$0xff]
    %v2797 = vld [vmem:[%s2793 + $0x18] sm:$0xff]
    %v2798 = vld [vmem:[%s2793 + $0x20] sm:$0xff]
    %v2799 = vld [vmem:[%s2793 + $0x28] sm:$0xff]
    %v2800 = vld [vmem:[%s2793 + $0x30] sm:$0xff]
    %v2801 = vld [vmem:[%s2793 + $0x38] sm:$0xff]
    %v2802 = vld [vmem:[%s2793 + $0x40] sm:$0xff]
    %v2803 = vld [vmem:[%s2793 + $0x48] sm:$0xff]
    %v2804 = vld [vmem:[%s2793 + $0x50] sm:$0xff]
    %v2805 = vld [vmem:[%s2793 + $0x58] sm:$0xff]
    %v2806 = vld [vmem:[%s2793 + $0x60] sm:$0xff]
    %v2807 = vld [vmem:[%s2793 + $0x68] sm:$0xff]
    %v2808 = vld [vmem:[%s2793 + $0x70] sm:$0xff]
    %v2809 = vld [vmem:[%s2793 + $0x78] sm:$0xff]
    %v2810 = vld [vmem:[%s2793 + $0x80] sm:$0xff]
    %v2811 = vld [vmem:[%s2793 + $0x88] sm:$0xff]
    %v2812 = vld [vmem:[%s2793 + $0x90] sm:$0xff]
    %v2813 = vld [vmem:[%s2793 + $0x98] sm:$0xff]
    %v2814 = vld [vmem:[%s2793 + $0xa0] sm:$0xff]
    %v2815 = vld [vmem:[%s2793 + $0xa8] sm:$0xff]
    %v2816 = vld [vmem:[%s2793 + $0xb0] sm:$0xff]
    %v2817 = vld [vmem:[%s2793 + $0xb8] sm:$0xff]
    %v2819 = vsel %vm100, %v2791, 0
    %2821 = vmatpush.msra.mxu0 %v2809
    %2822 = vmatpush.msra.mxu0 %v2808
    %2823 = vmatpush.msra.mxu0 %v2807
    %2824 = vmatpush.msra.mxu0 %v2806
    %2825 = vmatpush.msra.mxu0 %v2805
    %2826 = vmatpush.msra.mxu0 %v2804
    %2827 = vmatpush.msra.mxu0 %v2803
    %2828 = vmatpush.msra.mxu0 %v2802
    %2829 = vmatpush.msra.mxu0 %v2801
    %2830 = vmatpush.msra.mxu0 %v2800
    %2831 = vmatpush.msra.mxu0 %v2799
    %2832 = vmatpush.msra.mxu0 %v2798
    %2833 = vmatpush.msra.mxu0 %v2797
    %2834 = vmatpush.msra.mxu0 %v2796
    %2835 = vmatpush.msra.mxu0 %v2795
    %2836 = vmatpush.msra.mxu0 %v2794
    %2837 = vmatmul.f32.gmra.mxu0 %v2771
    %v2838 = vpop.f32.mrf.mxu0
    %v2839 = vadd.f32 0.0, %v2838
    %2840 = vdwg.mxu0
    %2841 = vmatpush.msra.mxu0 0.0
    %2842 = vmatpush.msra.mxu0 0.0
    %2843 = vmatpush.msra.mxu0 0.0
    %2844 = vmatpush.msra.mxu0 0.0
    %2845 = vmatpush.msra.mxu0 0.0
    %2846 = vmatpush.msra.mxu0 0.0
    %2847 = vmatpush.msra.mxu0 0.0
    %2848 = vmatpush.msra.mxu0 0.0
    %2849 = vmatpush.msra.mxu0 %v2817
    %2850 = vmatpush.msra.mxu0 %v2816
    %2851 = vmatpush.msra.mxu0 %v2815
    %2852 = vmatpush.msra.mxu0 %v2814
    %2853 = vmatpush.msra.mxu0 %v2813
    %2854 = vmatpush.msra.mxu0 %v2812
    %2855 = vmatpush.msra.mxu0 %v2811
    %2856 = vmatpush.msra.mxu0 %v2810
    %2857 = vmatmul.f32.gmra.mxu0 %v2819
    %v2858 = vpop.f32.mrf.mxu0
    %v2859 = vadd.f32 %v2839, %v2858
    %2860 = vdwg.mxu0
    %v2862 = vsel %vm100, %v2722, 0
    %2864 = vmatpush.msra.mxu0 %v2739
    %2865 = vmatpush.msra.mxu0 %v2738
    %2866 = vmatpush.msra.mxu0 %v2737
    %2867 = vmatpush.msra.mxu0 %v2736
    %2868 = vmatpush.msra.mxu0 %v2735
    %2869 = vmatpush.msra.mxu0 %v2734
    %2870 = vmatpush.msra.mxu0 %v2733
    %2871 = vmatpush.msra.mxu0 %v2732
    %2872 = vmatpush.msra.mxu0 %v2731
    %2873 = vmatpush.msra.mxu0 %v2730
    %2874 = vmatpush.msra.mxu0 %v2729
    %2875 = vmatpush.msra.mxu0 %v2728
    %2876 = vmatpush.msra.mxu0 %v2727
    %2877 = vmatpush.msra.mxu0 %v2726
    %2878 = vmatpush.msra.mxu0 %v2725
    %2879 = vmatpush.msra.mxu0 %v2724
    %2880 = vmatmul.f32.gmra.mxu0 %v2702
    %v2881 = vpop.f32.mrf.mxu0
    %v2882 = vadd.f32 %v2859, %v2881
    %2883 = vdwg.mxu0
    %2884 = vmatpush.msra.mxu0 0.0
    %2885 = vmatpush.msra.mxu0 0.0
    %2886 = vmatpush.msra.mxu0 0.0
    %2887 = vmatpush.msra.mxu0 0.0
    %2888 = vmatpush.msra.mxu0 0.0
    %2889 = vmatpush.msra.mxu0 0.0
    %2890 = vmatpush.msra.mxu0 0.0
    %2891 = vmatpush.msra.mxu0 0.0
    %2892 = vmatpush.msra.mxu0 %v2747
    %2893 = vmatpush.msra.mxu0 %v2746
    %2894 = vmatpush.msra.mxu0 %v2745
    %2895 = vmatpush.msra.mxu0 %v2744
    %2896 = vmatpush.msra.mxu0 %v2743
    %2897 = vmatpush.msra.mxu0 %v2742
    %2898 = vmatpush.msra.mxu0 %v2741
    %2899 = vmatpush.msra.mxu0 %v2740
    %2900 = vmatmul.f32.gmra.mxu0 %v2862
    %v2901 = vpop.f32.mrf.mxu0
    %v2902 = vadd.f32 %v2882, %v2901
    %2903 = vdwg.mxu0
    %s2904 = scalar_lea.vmem %s13, 4
    %v2905 = vld [vmem:[%s2904] sm:$0x3]
    %v2907 = vsel %vm2674, %v2905, 0
    %2909 = vmatpush.msra.mxu0 0.0
    %2910 = vmatpush.msra.mxu0 0.0
    %2911 = vmatpush.msra.mxu0 0.0
    %2912 = vmatpush.msra.mxu0 0.0
    %2913 = vmatpush.msra.mxu0 0.0
    %2914 = vmatpush.msra.mxu0 0.0
    %2915 = vmatpush.msra.mxu0 0.0
    %2916 = vmatpush.msra.mxu0 0.0
    %2917 = vmatpush.msra.mxu0 0.0
    %2918 = vmatpush.msra.mxu0 0.0
    %2919 = vmatpush.msra.mxu0 0.0
    %2920 = vmatpush.msra.mxu0 0.0
    %2921 = vmatpush.msra.mxu0 0.0
    %2922 = vmatpush.msra.mxu0 0.0
    %2923 = vmatpush.msra.mxu0 0.0
    %2924 = vmatpush.msra.mxu0 %v2679
    %2925 = vmatmul.f32.gmra.mxu0 %v2907
    %v2926 = vpop.f32.mrf.mxu0
    %v2927 = vadd.f32 0.0, %v2926
    %2928 = vdwg.mxu0
    %2929 = vmatpush.msra.mxu0 0.0
    %2930 = vmatpush.msra.mxu0 0.0
    %2931 = vmatpush.msra.mxu0 0.0
    %2932 = vmatpush.msra.mxu0 0.0
    %2933 = vmatpush.msra.mxu0 0.0
    %2934 = vmatpush.msra.mxu0 0.0
    %2935 = vmatpush.msra.mxu0 0.0
    %2936 = vmatpush.msra.mxu0 0.0
    %2937 = vmatpush.msra.mxu0 0.0
    %2938 = vmatpush.msra.mxu0 0.0
    %2939 = vmatpush.msra.mxu0 0.0
    %2940 = vmatpush.msra.mxu0 0.0
    %2941 = vmatpush.msra.mxu0 0.0
    %2942 = vmatpush.msra.mxu0 0.0
    %2943 = vmatpush.msra.mxu0 0.0
    %2944 = vmatpush.msra.mxu0 %v2682
    %2945 = vmatmul.f32.gmra.mxu0 %v2907
    %v2946 = vpop.f32.mrf.mxu0
    %v2947 = vadd.f32 0.0, %v2946
    %2948 = vdwg.mxu0
    %s2949 = scalar_lea.vmem %s14, 384
    %v2950 = vld [vmem:[%s2949] sm:$0xff]
    %v2951 = vld [vmem:[%s2949 + $0x8] sm:$0xff]
    %v2952 = vld [vmem:[%s2949 + $0x10] sm:$0xff]
    %v2953 = vld [vmem:[%s2949 + $0x18] sm:$0xff]
    %v2954 = vld [vmem:[%s2949 + $0x20] sm:$0xff]
    %v2955 = vld [vmem:[%s2949 + $0x28] sm:$0xff]
    %v2956 = vld [vmem:[%s2949 + $0x30] sm:$0xff]
    %v2957 = vld [vmem:[%s2949 + $0x38] sm:$0xff]
    %v2958 = vld [vmem:[%s2949 + $0x40] sm:$0xff]
    %v2959 = vld [vmem:[%s2949 + $0x48] sm:$0xff]
    %v2960 = vld [vmem:[%s2949 + $0x50] sm:$0xff]
    %v2961 = vld [vmem:[%s2949 + $0x58] sm:$0xff]
    %v2962 = vld [vmem:[%s2949 + $0x60] sm:$0xff]
    %v2963 = vld [vmem:[%s2949 + $0x68] sm:$0xff]
    %v2964 = vld [vmem:[%s2949 + $0x70] sm:$0xff]
    %v2965 = vld [vmem:[%s2949 + $0x78] sm:$0xff]
    %v2966 = vld [vmem:[%s2949 + $0x80] sm:$0xff]
    %v2967 = vld [vmem:[%s2949 + $0x88] sm:$0xff]
    %v2968 = vld [vmem:[%s2949 + $0x90] sm:$0xff]
    %v2969 = vld [vmem:[%s2949 + $0x98] sm:$0xff]
    %v2970 = vld [vmem:[%s2949 + $0xa0] sm:$0xff]
    %v2971 = vld [vmem:[%s2949 + $0xa8] sm:$0xff]
    %v2972 = vld [vmem:[%s2949 + $0xb0] sm:$0xff]
    %v2973 = vld [vmem:[%s2949 + $0xb8] sm:$0xff]
    %v2975 = vsel %vm100, %v2947, 0
    %2977 = vmatpush.msra.mxu0 %v2965
    %2978 = vmatpush.msra.mxu0 %v2964
    %2979 = vmatpush.msra.mxu0 %v2963
    %2980 = vmatpush.msra.mxu0 %v2962
    %2981 = vmatpush.msra.mxu0 %v2961
    %2982 = vmatpush.msra.mxu0 %v2960
    %2983 = vmatpush.msra.mxu0 %v2959
    %2984 = vmatpush.msra.mxu0 %v2958
    %2985 = vmatpush.msra.mxu0 %v2957
    %2986 = vmatpush.msra.mxu0 %v2956
    %2987 = vmatpush.msra.mxu0 %v2955
    %2988 = vmatpush.msra.mxu0 %v2954
    %2989 = vmatpush.msra.mxu0 %v2953
    %2990 = vmatpush.msra.mxu0 %v2952
    %2991 = vmatpush.msra.mxu0 %v2951
    %2992 = vmatpush.msra.mxu0 %v2950
    %2993 = vmatmul.f32.gmra.mxu0 %v2927
    %v2994 = vpop.f32.mrf.mxu0
    %v2995 = vadd.f32 0.0, %v2994
    %2996 = vdwg.mxu0
    %2997 = vmatpush.msra.mxu0 0.0
    %2998 = vmatpush.msra.mxu0 0.0
    %2999 = vmatpush.msra.mxu0 0.0
    %3000 = vmatpush.msra.mxu0 0.0
    %3001 = vmatpush.msra.mxu0 0.0
    %3002 = vmatpush.msra.mxu0 0.0
    %3003 = vmatpush.msra.mxu0 0.0
    %3004 = vmatpush.msra.mxu0 0.0
    %3005 = vmatpush.msra.mxu0 %v2973
    %3006 = vmatpush.msra.mxu0 %v2972
    %3007 = vmatpush.msra.mxu0 %v2971
    %3008 = vmatpush.msra.mxu0 %v2970
    %3009 = vmatpush.msra.mxu0 %v2969
    %3010 = vmatpush.msra.mxu0 %v2968
    %3011 = vmatpush.msra.mxu0 %v2967
    %3012 = vmatpush.msra.mxu0 %v2966
    %3013 = vmatmul.f32.gmra.mxu0 %v2975
    %v3014 = vpop.f32.mrf.mxu0
    %v3015 = vadd.f32 %v2995, %v3014
    %3016 = vdwg.mxu0
    %v3017 = vadd.f32 %v2902, %v3015
    %v3018 = vld [vmem:[%s15] sm:$0x1]
    %v3020 = vperm.slane %v3018, 0
    %v3022 = vadd.f32 %v3017, %v3020
    %v3023 = vmax.f32 %v3022, 0.0
    %v3024 = vld [vmem:[%s16] sm:$0xff]
    %v3025 = vld [vmem:[%s16 + $0x8] sm:$0xff]
    %v3026 = vld [vmem:[%s16 + $0x10] sm:$0xff]
    %v3027 = vld [vmem:[%s16 + $0x18] sm:$0xff]
    %v3028 = vld [vmem:[%s16 + $0x20] sm:$0xff]
    %v3029 = vld [vmem:[%s16 + $0x28] sm:$0xff]
    %v3030 = vld [vmem:[%s16 + $0x30] sm:$0xff]
    %v3031 = vld [vmem:[%s16 + $0x38] sm:$0xff]
    %v3032 = vld [vmem:[%s16 + $0x40] sm:$0xff]
    %v3033 = vld [vmem:[%s16 + $0x48] sm:$0xff]
    %v3034 = vld [vmem:[%s16 + $0x50] sm:$0xff]
    %v3035 = vld [vmem:[%s16 + $0x58] sm:$0xff]
    %v3036 = vld [vmem:[%s16 + $0x60] sm:$0xff]
    %v3037 = vld [vmem:[%s16 + $0x68] sm:$0xff]
    %v3038 = vld [vmem:[%s16 + $0x70] sm:$0xff]
    %v3039 = vld [vmem:[%s16 + $0x78] sm:$0xff]
    %v3040 = vld [vmem:[%s17] sm:$0x3]
    %v3042 = vperm.slane %v3040, 0
    %v3043 = vperm.slane %v3040, 1
    %v3047 = vsel %vm100, %v3023, 0
    %3049 = vmatpush.msra.mxu0 0.0
    %3050 = vmatpush.msra.mxu0 0.0
    %3051 = vmatpush.msra.mxu0 0.0
    %3052 = vmatpush.msra.mxu0 0.0
    %3053 = vmatpush.msra.mxu0 0.0
    %3054 = vmatpush.msra.mxu0 0.0
    %3055 = vmatpush.msra.mxu0 0.0
    %3056 = vmatpush.msra.mxu0 0.0
    %3057 = vmatpush.msra.mxu0 %v3038
    %3058 = vmatpush.msra.mxu0 %v3036
    %3059 = vmatpush.msra.mxu0 %v3034
    %3060 = vmatpush.msra.mxu0 %v3032
    %3061 = vmatpush.msra.mxu0 %v3030
    %3062 = vmatpush.msra.mxu0 %v3028
    %3063 = vmatpush.msra.mxu0 %v3026
    %3064 = vmatpush.msra.mxu0 %v3024
    %3065 = vmatmul.f32.gmra.mxu0 %v3047
    %v3066 = vpop.f32.mrf.mxu0
    %v3067 = vadd.f32 %v3042, %v3066
    %3068 = vdwg.mxu0
    %3069 = vmatpush.msra.mxu0 0.0
    %3070 = vmatpush.msra.mxu0 0.0
    %3071 = vmatpush.msra.mxu0 0.0
    %3072 = vmatpush.msra.mxu0 0.0
    %3073 = vmatpush.msra.mxu0 0.0
    %3074 = vmatpush.msra.mxu0 0.0
    %3075 = vmatpush.msra.mxu0 0.0
    %3076 = vmatpush.msra.mxu0 0.0
    %3077 = vmatpush.msra.mxu0 %v3039
    %3078 = vmatpush.msra.mxu0 %v3037
    %3079 = vmatpush.msra.mxu0 %v3035
    %3080 = vmatpush.msra.mxu0 %v3033
    %3081 = vmatpush.msra.mxu0 %v3031
    %3082 = vmatpush.msra.mxu0 %v3029
    %3083 = vmatpush.msra.mxu0 %v3027
    %3084 = vmatpush.msra.mxu0 %v3025
    %3085 = vmatmul.f32.gmra.mxu0 %v3047
    %v3086 = vpop.f32.mrf.mxu0
    %v3087 = vadd.f32 %v3043, %v3086
    %3088 = vdwg.mxu0
    %v3089 = vmax.f32 %v3067, 0.0
    %v3090 = vmax.f32 %v3087, 0.0
    %v3091 = vld [vmem:[%s18] sm:$0xff]
    %v3092 = vld [vmem:[%s18 + $0x8] sm:$0xff]
    %v3093 = vld [vmem:[%s18 + $0x10] sm:$0xff]
    %v3094 = vld [vmem:[%s18 + $0x18] sm:$0xff]
    %v3095 = vld [vmem:[%s18 + $0x20] sm:$0xff]
    %v3096 = vld [vmem:[%s18 + $0x28] sm:$0xff]
    %v3097 = vld [vmem:[%s18 + $0x30] sm:$0xff]
    %v3098 = vld [vmem:[%s18 + $0x38] sm:$0xff]
    %v3099 = vld [vmem:[%s18 + $0x40] sm:$0xff]
    %v3100 = vld [vmem:[%s18 + $0x48] sm:$0xff]
    %v3101 = vld [vmem:[%s18 + $0x50] sm:$0xff]
    %v3102 = vld [vmem:[%s18 + $0x58] sm:$0xff]
    %v3103 = vld [vmem:[%s18 + $0x60] sm:$0xff]
    %v3104 = vld [vmem:[%s18 + $0x68] sm:$0xff]
    %v3105 = vld [vmem:[%s18 + $0x70] sm:$0xff]
    %v3106 = vld [vmem:[%s18 + $0x78] sm:$0xff]
    %v3107 = vld [vmem:[%s18 + $0x80] sm:$0xff]
    %v3108 = vld [vmem:[%s18 + $0x88] sm:$0xff]
    %v3109 = vld [vmem:[%s18 + $0x90] sm:$0xff]
    %v3110 = vld [vmem:[%s18 + $0x98] sm:$0xff]
    %v3111 = vld [vmem:[%s18 + $0xa0] sm:$0xff]
    %v3112 = vld [vmem:[%s18 + $0xa8] sm:$0xff]
    %v3113 = vld [vmem:[%s18 + $0xb0] sm:$0xff]
    %v3114 = vld [vmem:[%s18 + $0xb8] sm:$0xff]
    %v3115 = vld [vmem:[%s18 + $0xc0] sm:$0xff]
    %v3116 = vld [vmem:[%s18 + $0xc8] sm:$0xff]
    %v3117 = vld [vmem:[%s18 + $0xd0] sm:$0xff]
    %v3118 = vld [vmem:[%s18 + $0xd8] sm:$0xff]
    %v3119 = vld [vmem:[%s18 + $0xe0] sm:$0xff]
    %v3120 = vld [vmem:[%s18 + $0xe8] sm:$0xff]
    %v3121 = vld [vmem:[%s18 + $0xf0] sm:$0xff]
    %v3122 = vld [vmem:[%s18 + $0xf8] sm:$0xff]
    %v3123 = vld [vmem:[%s19] sm:$0x1]
    %v3125 = vperm.slane %v3123, 0
    %3127 = vmatpush.msra.mxu0 %v3106
    %3128 = vmatpush.msra.mxu0 %v3105
    %3129 = vmatpush.msra.mxu0 %v3104
    %3130 = vmatpush.msra.mxu0 %v3103
    %3131 = vmatpush.msra.mxu0 %v3102
    %3132 = vmatpush.msra.mxu0 %v3101
    %3133 = vmatpush.msra.mxu0 %v3100
    %3134 = vmatpush.msra.mxu0 %v3099
    %3135 = vmatpush.msra.mxu0 %v3098
    %3136 = vmatpush.msra.mxu0 %v3097
    %3137 = vmatpush.msra.mxu0 %v3096
    %3138 = vmatpush.msra.mxu0 %v3095
    %3139 = vmatpush.msra.mxu0 %v3094
    %3140 = vmatpush.msra.mxu0 %v3093
    %3141 = vmatpush.msra.mxu0 %v3092
    %3142 = vmatpush.msra.mxu0 %v3091
    %3143 = vmatmul.f32.gmra.mxu0 %v3089
    %v3144 = vpop.f32.mrf.mxu0
    %v3145 = vadd.f32 %v3125, %v3144
    %3146 = vdwg.mxu0
    %3147 = vmatpush.msra.mxu0 %v3122
    %3148 = vmatpush.msra.mxu0 %v3121
    %3149 = vmatpush.msra.mxu0 %v3120
    %3150 = vmatpush.msra.mxu0 %v3119
    %3151 = vmatpush.msra.mxu0 %v3118
    %3152 = vmatpush.msra.mxu0 %v3117
    %3153 = vmatpush.msra.mxu0 %v3116
    %3154 = vmatpush.msra.mxu0 %v3115
    %3155 = vmatpush.msra.mxu0 %v3114
    %3156 = vmatpush.msra.mxu0 %v3113
    %3157 = vmatpush.msra.mxu0 %v3112
    %3158 = vmatpush.msra.mxu0 %v3111
    %3159 = vmatpush.msra.mxu0 %v3110
    %3160 = vmatpush.msra.mxu0 %v3109
    %3161 = vmatpush.msra.mxu0 %v3108
    %3162 = vmatpush.msra.mxu0 %v3107
    %3163 = vmatmul.f32.gmra.mxu0 %v3090
    %v3164 = vpop.f32.mrf.mxu0
    %v3165 = vadd.f32 %v3145, %v3164
    %3166 = vdwg.mxu0
    %v3167 = vld [vmem:[%s1] sm:$0x3]
    %v3168 = vld [vmem:[%s20] sm:$0xff]
    %v3169 = vld [vmem:[%s20 + $0x8] sm:$0xff]
    %v3170 = vld [vmem:[%s20 + $0x10] sm:$0xff]
    %v3171 = vld [vmem:[%s20 + $0x18] sm:$0xff]
    %v3172 = vld [vmem:[%s20 + $0x20] sm:$0xff]
    %v3173 = vld [vmem:[%s20 + $0x28] sm:$0xff]
    %v3174 = vld [vmem:[%s20 + $0x30] sm:$0xff]
    %v3175 = vld [vmem:[%s20 + $0x38] sm:$0xff]
    %v3176 = vld [vmem:[%s21] sm:$0xff]
    %v3177 = vld [vmem:[%s21 + $0x8] sm:$0xff]
    %v3178 = vld [vmem:[%s21 + $0x10] sm:$0xff]
    %v3179 = vld [vmem:[%s21 + $0x18] sm:$0xff]
    %v3180 = vld [vmem:[%s21 + $0x20] sm:$0xff]
    %v3181 = vld [vmem:[%s21 + $0x28] sm:$0xff]
    %v3182 = vld [vmem:[%s21 + $0x30] sm:$0xff]
    %v3183 = vld [vmem:[%s21 + $0x38] sm:$0xff]
    %v3184 = vld [vmem:[%s21 + $0x40] sm:$0xff]
    %v3185 = vld [vmem:[%s21 + $0x48] sm:$0xff]
    %v3186 = vld [vmem:[%s21 + $0x50] sm:$0xff]
    %v3187 = vld [vmem:[%s21 + $0x58] sm:$0xff]
    %v3188 = vld [vmem:[%s21 + $0x60] sm:$0xff]
    %v3189 = vld [vmem:[%s21 + $0x68] sm:$0xff]
    %v3190 = vld [vmem:[%s21 + $0x70] sm:$0xff]
    %v3191 = vld [vmem:[%s21 + $0x78] sm:$0xff]
    %v3192 = vld [vmem:[%s21 + $0x80] sm:$0xff]
    %v3193 = vld [vmem:[%s21 + $0x88] sm:$0xff]
    %v3194 = vld [vmem:[%s21 + $0x90] sm:$0xff]
    %v3195 = vld [vmem:[%s21 + $0x98] sm:$0xff]
    %v3196 = vld [vmem:[%s21 + $0xa0] sm:$0xff]
    %v3197 = vld [vmem:[%s21 + $0xa8] sm:$0xff]
    %v3198 = vld [vmem:[%s21 + $0xb0] sm:$0xff]
    %v3199 = vld [vmem:[%s21 + $0xb8] sm:$0xff]
    %v3200 = vld [vmem:[%s21 + $0xc0] sm:$0xff]
    %v3201 = vld [vmem:[%s21 + $0xc8] sm:$0xff]
    %v3202 = vld [vmem:[%s21 + $0xd0] sm:$0xff]
    %v3203 = vld [vmem:[%s21 + $0xd8] sm:$0xff]
    %v3204 = vld [vmem:[%s21 + $0xe0] sm:$0xff]
    %v3205 = vld [vmem:[%s21 + $0xe8] sm:$0xff]
    %v3206 = vld [vmem:[%s21 + $0xf0] sm:$0xff]
    %v3207 = vld [vmem:[%s21 + $0xf8] sm:$0xff]
    %v3208 = vld [vmem:[%s21 + $0x100] sm:$0xff]
    %v3209 = vld [vmem:[%s21 + $0x108] sm:$0xff]
    %v3210 = vld [vmem:[%s21 + $0x110] sm:$0xff]
    %v3211 = vld [vmem:[%s21 + $0x118] sm:$0xff]
    %v3212 = vld [vmem:[%s21 + $0x120] sm:$0xff]
    %v3213 = vld [vmem:[%s21 + $0x128] sm:$0xff]
    %v3214 = vld [vmem:[%s21 + $0x130] sm:$0xff]
    %v3215 = vld [vmem:[%s21 + $0x138] sm:$0xff]
    %v3216 = vld [vmem:[%s21 + $0x140] sm:$0xff]
    %v3217 = vld [vmem:[%s21 + $0x148] sm:$0xff]
    %v3218 = vld [vmem:[%s21 + $0x150] sm:$0xff]
    %v3219 = vld [vmem:[%s21 + $0x158] sm:$0xff]
    %v3220 = vld [vmem:[%s21 + $0x160] sm:$0xff]
    %v3221 = vld [vmem:[%s21 + $0x168] sm:$0xff]
    %v3222 = vld [vmem:[%s21 + $0x170] sm:$0xff]
    %v3223 = vld [vmem:[%s21 + $0x178] sm:$0xff]
    %v3224 = vld [vmem:[%s21 + $0x180] sm:$0xff]
    %v3225 = vld [vmem:[%s21 + $0x188] sm:$0xff]
    %v3226 = vld [vmem:[%s21 + $0x190] sm:$0xff]
    %v3227 = vld [vmem:[%s21 + $0x198] sm:$0xff]
    %v3228 = vld [vmem:[%s21 + $0x1a0] sm:$0xff]
    %v3229 = vld [vmem:[%s21 + $0x1a8] sm:$0xff]
    %v3230 = vld [vmem:[%s21 + $0x1b0] sm:$0xff]
    %v3231 = vld [vmem:[%s21 + $0x1b8] sm:$0xff]
    %v3232 = vld [vmem:[%s21 + $0x1c0] sm:$0xff]
    %v3233 = vld [vmem:[%s21 + $0x1c8] sm:$0xff]
    %v3234 = vld [vmem:[%s21 + $0x1d0] sm:$0xff]
    %v3235 = vld [vmem:[%s21 + $0x1d8] sm:$0xff]
    %v3236 = vld [vmem:[%s21 + $0x1e0] sm:$0xff]
    %v3237 = vld [vmem:[%s21 + $0x1e8] sm:$0xff]
    %v3238 = vld [vmem:[%s21 + $0x1f0] sm:$0xff]
    %v3239 = vld [vmem:[%s21 + $0x1f8] sm:$0xff]
    %3240 = vmatpush.msra.mxu0 %v3236
    %3241 = vmatpush.msra.mxu0 %v3232
    %3242 = vmatpush.msra.mxu0 %v3228
    %3243 = vmatpush.msra.mxu0 %v3224
    %3244 = vmatpush.msra.mxu0 %v3220
    %3245 = vmatpush.msra.mxu0 %v3216
    %3246 = vmatpush.msra.mxu0 %v3212
    %3247 = vmatpush.msra.mxu0 %v3208
    %3248 = vmatpush.msra.mxu0 %v3204
    %3249 = vmatpush.msra.mxu0 %v3200
    %3250 = vmatpush.msra.mxu0 %v3196
    %3251 = vmatpush.msra.mxu0 %v3192
    %3252 = vmatpush.msra.mxu0 %v3188
    %3253 = vmatpush.msra.mxu0 %v3184
    %3254 = vmatpush.msra.mxu0 %v3180
    %3255 = vmatpush.msra.mxu0 %v3176
    %3256 = vmatmul.f32.gmra.mxu0 %v3165
    %v3257 = vpop.f32.mrf.mxu0
    %v3258 = vadd.f32 0.0, %v3257
    %3259 = vdwg.mxu0
    %3260 = vmatpush.msra.mxu0 %v3237
    %3261 = vmatpush.msra.mxu0 %v3233
    %3262 = vmatpush.msra.mxu0 %v3229
    %3263 = vmatpush.msra.mxu0 %v3225
    %3264 = vmatpush.msra.mxu0 %v3221
    %3265 = vmatpush.msra.mxu0 %v3217
    %3266 = vmatpush.msra.mxu0 %v3213
    %3267 = vmatpush.msra.mxu0 %v3209
    %3268 = vmatpush.msra.mxu0 %v3205
    %3269 = vmatpush.msra.mxu0 %v3201
    %3270 = vmatpush.msra.mxu0 %v3197
    %3271 = vmatpush.msra.mxu0 %v3193
    %3272 = vmatpush.msra.mxu0 %v3189
    %3273 = vmatpush.msra.mxu0 %v3185
    %3274 = vmatpush.msra.mxu0 %v3181
    %3275 = vmatpush.msra.mxu0 %v3177
    %3276 = vmatmul.f32.gmra.mxu0 %v3165
    %v3277 = vpop.f32.mrf.mxu0
    %v3278 = vadd.f32 0.0, %v3277
    %3279 = vdwg.mxu0
    %3280 = vmatpush.msra.mxu0 %v3238
    %3281 = vmatpush.msra.mxu0 %v3234
    %3282 = vmatpush.msra.mxu0 %v3230
    %3283 = vmatpush.msra.mxu0 %v3226
    %3284 = vmatpush.msra.mxu0 %v3222
    %3285 = vmatpush.msra.mxu0 %v3218
    %3286 = vmatpush.msra.mxu0 %v3214
    %3287 = vmatpush.msra.mxu0 %v3210
    %3288 = vmatpush.msra.mxu0 %v3206
    %3289 = vmatpush.msra.mxu0 %v3202
    %3290 = vmatpush.msra.mxu0 %v3198
    %3291 = vmatpush.msra.mxu0 %v3194
    %3292 = vmatpush.msra.mxu0 %v3190
    %3293 = vmatpush.msra.mxu0 %v3186
    %3294 = vmatpush.msra.mxu0 %v3182
    %3295 = vmatpush.msra.mxu0 %v3178
    %3296 = vmatmul.f32.gmra.mxu0 %v3165
    %v3297 = vpop.f32.mrf.mxu0
    %v3298 = vadd.f32 0.0, %v3297
    %3299 = vdwg.mxu0
    %3300 = vmatpush.msra.mxu0 %v3239
    %3301 = vmatpush.msra.mxu0 %v3235
    %3302 = vmatpush.msra.mxu0 %v3231
    %3303 = vmatpush.msra.mxu0 %v3227
    %3304 = vmatpush.msra.mxu0 %v3223
    %3305 = vmatpush.msra.mxu0 %v3219
    %3306 = vmatpush.msra.mxu0 %v3215
    %3307 = vmatpush.msra.mxu0 %v3211
    %3308 = vmatpush.msra.mxu0 %v3207
    %3309 = vmatpush.msra.mxu0 %v3203
    %3310 = vmatpush.msra.mxu0 %v3199
    %3311 = vmatpush.msra.mxu0 %v3195
    %3312 = vmatpush.msra.mxu0 %v3191
    %3313 = vmatpush.msra.mxu0 %v3187
    %3314 = vmatpush.msra.mxu0 %v3183
    %3315 = vmatpush.msra.mxu0 %v3179
    %3316 = vmatmul.f32.gmra.mxu0 %v3165
    %v3317 = vpop.f32.mrf.mxu0
    %v3318 = vadd.f32 0.0, %v3317
    %3319 = vdwg.mxu0
    %vm3320 = vcmask 130048
    %v3322 = vsel %vm3320, %v3167, 0
    %3324 = vmatpush.msra.mxu0 0.0
    %3325 = vmatpush.msra.mxu0 0.0
    %3326 = vmatpush.msra.mxu0 0.0
    %3327 = vmatpush.msra.mxu0 0.0
    %3328 = vmatpush.msra.mxu0 0.0
    %3329 = vmatpush.msra.mxu0 0.0
    %3330 = vmatpush.msra.mxu0 0.0
    %3331 = vmatpush.msra.mxu0 0.0
    %3332 = vmatpush.msra.mxu0 0.0
    %3333 = vmatpush.msra.mxu0 0.0
    %3334 = vmatpush.msra.mxu0 0.0
    %3335 = vmatpush.msra.mxu0 0.0
    %3336 = vmatpush.msra.mxu0 0.0
    %3337 = vmatpush.msra.mxu0 0.0
    %3338 = vmatpush.msra.mxu0 %v3172
    %3339 = vmatpush.msra.mxu0 %v3168
    %3340 = vmatmul.f32.gmra.mxu0 %v3322
    %v3341 = vpop.f32.mrf.mxu0
    %v3342 = vadd.f32 %v3258, %v3341
    %3343 = vdwg.mxu0
    %3344 = vmatpush.msra.mxu0 0.0
    %3345 = vmatpush.msra.mxu0 0.0
    %3346 = vmatpush.msra.mxu0 0.0
    %3347 = vmatpush.msra.mxu0 0.0
    %3348 = vmatpush.msra.mxu0 0.0
    %3349 = vmatpush.msra.mxu0 0.0
    %3350 = vmatpush.msra.mxu0 0.0
    %3351 = vmatpush.msra.mxu0 0.0
    %3352 = vmatpush.msra.mxu0 0.0
    %3353 = vmatpush.msra.mxu0 0.0
    %3354 = vmatpush.msra.mxu0 0.0
    %3355 = vmatpush.msra.mxu0 0.0
    %3356 = vmatpush.msra.mxu0 0.0
    %3357 = vmatpush.msra.mxu0 0.0
    %3358 = vmatpush.msra.mxu0 %v3173
    %3359 = vmatpush.msra.mxu0 %v3169
    %3360 = vmatmul.f32.gmra.mxu0 %v3322
    %v3361 = vpop.f32.mrf.mxu0
    %v3362 = vadd.f32 %v3278, %v3361
    %3363 = vdwg.mxu0
    %3364 = vmatpush.msra.mxu0 0.0
    %3365 = vmatpush.msra.mxu0 0.0
    %3366 = vmatpush.msra.mxu0 0.0
    %3367 = vmatpush.msra.mxu0 0.0
    %3368 = vmatpush.msra.mxu0 0.0
    %3369 = vmatpush.msra.mxu0 0.0
    %3370 = vmatpush.msra.mxu0 0.0
    %3371 = vmatpush.msra.mxu0 0.0
    %3372 = vmatpush.msra.mxu0 0.0
    %3373 = vmatpush.msra.mxu0 0.0
    %3374 = vmatpush.msra.mxu0 0.0
    %3375 = vmatpush.msra.mxu0 0.0
    %3376 = vmatpush.msra.mxu0 0.0
    %3377 = vmatpush.msra.mxu0 0.0
    %3378 = vmatpush.msra.mxu0 %v3174
    %3379 = vmatpush.msra.mxu0 %v3170
    %3380 = vmatmul.f32.gmra.mxu0 %v3322
    %v3381 = vpop.f32.mrf.mxu0
    %v3382 = vadd.f32 %v3298, %v3381
    %3383 = vdwg.mxu0
    %3384 = vmatpush.msra.mxu0 0.0
    %3385 = vmatpush.msra.mxu0 0.0
    %3386 = vmatpush.msra.mxu0 0.0
    %3387 = vmatpush.msra.mxu0 0.0
    %3388 = vmatpush.msra.mxu0 0.0
    %3389 = vmatpush.msra.mxu0 0.0
    %3390 = vmatpush.msra.mxu0 0.0
    %3391 = vmatpush.msra.mxu0 0.0
    %3392 = vmatpush.msra.mxu0 0.0
    %3393 = vmatpush.msra.mxu0 0.0
    %3394 = vmatpush.msra.mxu0 0.0
    %3395 = vmatpush.msra.mxu0 0.0
    %3396 = vmatpush.msra.mxu0 0.0
    %3397 = vmatpush.msra.mxu0 0.0
    %3398 = vmatpush.msra.mxu0 %v3175
    %3399 = vmatpush.msra.mxu0 %v3171
    %3400 = vmatmul.f32.gmra.mxu0 %v3322
    %v3401 = vpop.f32.mrf.mxu0
    %v3402 = vadd.f32 %v3318, %v3401
    %3403 = vdwg.mxu0
    %v3404 = vld [vmem:[%s2] sm:$0x3]
    %v3405 = vld [vmem:[%s22] sm:$0xff]
    %v3406 = vld [vmem:[%s22 + $0x8] sm:$0xff]
    %v3407 = vld [vmem:[%s22 + $0x10] sm:$0xff]
    %v3408 = vld [vmem:[%s22 + $0x18] sm:$0xff]
    %v3409 = vld [vmem:[%s22 + $0x20] sm:$0xff]
    %v3410 = vld [vmem:[%s22 + $0x28] sm:$0xff]
    %v3411 = vld [vmem:[%s22 + $0x30] sm:$0xff]
    %v3412 = vld [vmem:[%s22 + $0x38] sm:$0xff]
    %v3413 = vld [vmem:[%s22 + $0x40] sm:$0xff]
    %v3414 = vld [vmem:[%s22 + $0x48] sm:$0xff]
    %v3415 = vld [vmem:[%s22 + $0x50] sm:$0xff]
    %v3416 = vld [vmem:[%s22 + $0x58] sm:$0xff]
    %v3417 = vld [vmem:[%s22 + $0x60] sm:$0xff]
    %v3418 = vld [vmem:[%s22 + $0x68] sm:$0xff]
    %v3419 = vld [vmem:[%s22 + $0x70] sm:$0xff]
    %v3420 = vld [vmem:[%s22 + $0x78] sm:$0xff]
    %v3421 = vld [vmem:[%s22 + $0x80] sm:$0xff]
    %v3422 = vld [vmem:[%s22 + $0x88] sm:$0xff]
    %v3423 = vld [vmem:[%s22 + $0x90] sm:$0xff]
    %v3424 = vld [vmem:[%s22 + $0x98] sm:$0xff]
    %v3425 = vld [vmem:[%s22 + $0xa0] sm:$0xff]
    %v3426 = vld [vmem:[%s22 + $0xa8] sm:$0xff]
    %v3427 = vld [vmem:[%s22 + $0xb0] sm:$0xff]
    %v3428 = vld [vmem:[%s22 + $0xb8] sm:$0xff]
    %v3429 = vld [vmem:[%s22 + $0xc0] sm:$0xff]
    %v3430 = vld [vmem:[%s22 + $0xc8] sm:$0xff]
    %v3431 = vld [vmem:[%s22 + $0xd0] sm:$0xff]
    %v3432 = vld [vmem:[%s22 + $0xd8] sm:$0xff]
    %v3433 = vld [vmem:[%s22 + $0xe0] sm:$0xff]
    %v3434 = vld [vmem:[%s22 + $0xe8] sm:$0xff]
    %v3435 = vld [vmem:[%s22 + $0xf0] sm:$0xff]
    %v3436 = vld [vmem:[%s22 + $0xf8] sm:$0xff]
    %v3437 = vld [vmem:[%s22 + $0x100] sm:$0xff]
    %v3438 = vld [vmem:[%s22 + $0x108] sm:$0xff]
    %v3439 = vld [vmem:[%s22 + $0x110] sm:$0xff]
    %v3440 = vld [vmem:[%s22 + $0x118] sm:$0xff]
    %v3441 = vld [vmem:[%s22 + $0x120] sm:$0xff]
    %v3442 = vld [vmem:[%s22 + $0x128] sm:$0xff]
    %v3443 = vld [vmem:[%s22 + $0x130] sm:$0xff]
    %v3444 = vld [vmem:[%s22 + $0x138] sm:$0xff]
    %v3445 = vld [vmem:[%s22 + $0x140] sm:$0xff]
    %v3446 = vld [vmem:[%s22 + $0x148] sm:$0xff]
    %v3447 = vld [vmem:[%s22 + $0x150] sm:$0xff]
    %v3448 = vld [vmem:[%s22 + $0x158] sm:$0xff]
    %v3449 = vld [vmem:[%s22 + $0x160] sm:$0xff]
    %v3450 = vld [vmem:[%s22 + $0x168] sm:$0xff]
    %v3451 = vld [vmem:[%s22 + $0x170] sm:$0xff]
    %v3452 = vld [vmem:[%s22 + $0x178] sm:$0xff]
    %v3453 = vld [vmem:[%s22 + $0x180] sm:$0xff]
    %v3454 = vld [vmem:[%s22 + $0x188] sm:$0xff]
    %v3455 = vld [vmem:[%s22 + $0x190] sm:$0xff]
    %v3456 = vld [vmem:[%s22 + $0x198] sm:$0xff]
    %v3457 = vld [vmem:[%s22 + $0x1a0] sm:$0xff]
    %v3458 = vld [vmem:[%s22 + $0x1a8] sm:$0xff]
    %v3459 = vld [vmem:[%s22 + $0x1b0] sm:$0xff]
    %v3460 = vld [vmem:[%s22 + $0x1b8] sm:$0xff]
    %v3461 = vld [vmem:[%s22 + $0x1c0] sm:$0xff]
    %v3462 = vld [vmem:[%s22 + $0x1c8] sm:$0xff]
    %v3463 = vld [vmem:[%s22 + $0x1d0] sm:$0xff]
    %v3464 = vld [vmem:[%s22 + $0x1d8] sm:$0xff]
    %v3465 = vld [vmem:[%s22 + $0x1e0] sm:$0xff]
    %v3466 = vld [vmem:[%s22 + $0x1e8] sm:$0xff]
    %v3467 = vld [vmem:[%s22 + $0x1f0] sm:$0xff]
    %v3468 = vld [vmem:[%s22 + $0x1f8] sm:$0xff]
    %3469 = vmatpush.msra.mxu0 %v3465
    %3470 = vmatpush.msra.mxu0 %v3461
    %3471 = vmatpush.msra.mxu0 %v3457
    %3472 = vmatpush.msra.mxu0 %v3453
    %3473 = vmatpush.msra.mxu0 %v3449
    %3474 = vmatpush.msra.mxu0 %v3445
    %3475 = vmatpush.msra.mxu0 %v3441
    %3476 = vmatpush.msra.mxu0 %v3437
    %3477 = vmatpush.msra.mxu0 %v3433
    %3478 = vmatpush.msra.mxu0 %v3429
    %3479 = vmatpush.msra.mxu0 %v3425
    %3480 = vmatpush.msra.mxu0 %v3421
    %3481 = vmatpush.msra.mxu0 %v3417
    %3482 = vmatpush.msra.mxu0 %v3413
    %3483 = vmatpush.msra.mxu0 %v3409
    %3484 = vmatpush.msra.mxu0 %v3405
    %3485 = vmatmul.f32.gmra.mxu0 %v3404
    %v3486 = vpop.f32.mrf.mxu0
    %v3487 = vadd.f32 0.0, %v3486
    %3488 = vdwg.mxu0
    %3489 = vmatpush.msra.mxu0 %v3466
    %3490 = vmatpush.msra.mxu0 %v3462
    %3491 = vmatpush.msra.mxu0 %v3458
    %3492 = vmatpush.msra.mxu0 %v3454
    %3493 = vmatpush.msra.mxu0 %v3450
    %3494 = vmatpush.msra.mxu0 %v3446
    %3495 = vmatpush.msra.mxu0 %v3442
    %3496 = vmatpush.msra.mxu0 %v3438
    %3497 = vmatpush.msra.mxu0 %v3434
    %3498 = vmatpush.msra.mxu0 %v3430
    %3499 = vmatpush.msra.mxu0 %v3426
    %3500 = vmatpush.msra.mxu0 %v3422
    %3501 = vmatpush.msra.mxu0 %v3418
    %3502 = vmatpush.msra.mxu0 %v3414
    %3503 = vmatpush.msra.mxu0 %v3410
    %3504 = vmatpush.msra.mxu0 %v3406
    %3505 = vmatmul.f32.gmra.mxu0 %v3404
    %v3506 = vpop.f32.mrf.mxu0
    %v3507 = vadd.f32 0.0, %v3506
    %3508 = vdwg.mxu0
    %3509 = vmatpush.msra.mxu0 %v3467
    %3510 = vmatpush.msra.mxu0 %v3463
    %3511 = vmatpush.msra.mxu0 %v3459
    %3512 = vmatpush.msra.mxu0 %v3455
    %3513 = vmatpush.msra.mxu0 %v3451
    %3514 = vmatpush.msra.mxu0 %v3447
    %3515 = vmatpush.msra.mxu0 %v3443
    %3516 = vmatpush.msra.mxu0 %v3439
    %3517 = vmatpush.msra.mxu0 %v3435
    %3518 = vmatpush.msra.mxu0 %v3431
    %3519 = vmatpush.msra.mxu0 %v3427
    %3520 = vmatpush.msra.mxu0 %v3423
    %3521 = vmatpush.msra.mxu0 %v3419
    %3522 = vmatpush.msra.mxu0 %v3415
    %3523 = vmatpush.msra.mxu0 %v3411
    %3524 = vmatpush.msra.mxu0 %v3407
    %3525 = vmatmul.f32.gmra.mxu0 %v3404
    %v3526 = vpop.f32.mrf.mxu0
    %v3527 = vadd.f32 0.0, %v3526
    %3528 = vdwg.mxu0
    %3529 = vmatpush.msra.mxu0 %v3468
    %3530 = vmatpush.msra.mxu0 %v3464
    %3531 = vmatpush.msra.mxu0 %v3460
    %3532 = vmatpush.msra.mxu0 %v3456
    %3533 = vmatpush.msra.mxu0 %v3452
    %3534 = vmatpush.msra.mxu0 %v3448
    %3535 = vmatpush.msra.mxu0 %v3444
    %3536 = vmatpush.msra.mxu0 %v3440
    %3537 = vmatpush.msra.mxu0 %v3436
    %3538 = vmatpush.msra.mxu0 %v3432
    %3539 = vmatpush.msra.mxu0 %v3428
    %3540 = vmatpush.msra.mxu0 %v3424
    %3541 = vmatpush.msra.mxu0 %v3420
    %3542 = vmatpush.msra.mxu0 %v3416
    %3543 = vmatpush.msra.mxu0 %v3412
    %3544 = vmatpush.msra.mxu0 %v3408
    %3545 = vmatmul.f32.gmra.mxu0 %v3404
    %v3546 = vpop.f32.mrf.mxu0
    %v3547 = vadd.f32 0.0, %v3546
    %3548 = vdwg.mxu0
    %v3549 = vadd.f32 %v3342, %v3487
    %v3550 = vadd.f32 %v3362, %v3507
    %v3551 = vadd.f32 %v3382, %v3527
    %v3552 = vadd.f32 %v3402, %v3547
    %v3553 = vld [vmem:[%s23] sm:$0xf]
    %v3555 = vperm.slane %v3553, 0
    %v3556 = vperm.slane %v3553, 1
    %v3557 = vperm.slane %v3553, 2
    %v3558 = vperm.slane %v3553, 3
    %v3563 = vadd.f32 %v3549, %v3555
    %v3564 = vadd.f32 %v3550, %v3556
    %v3565 = vadd.f32 %v3551, %v3557
    %v3566 = vadd.f32 %v3552, %v3558
    %v3567 = vsub.f32 0.0, %v3563
    %v3568 = vmul.f32 %v3567, 1.442695
    %v3569 = vpow.pop %v3568
    %v3570 = vadd.f32 %v3569, 1.0
    %v3571 = vrcp.pop %v3570
    %v3572 = vmul.f32 %v3570, %v3571
    %v3573 = vsub.f32 1.0, %v3572
    %v3574 = vmul.f32 %v3571, %v3573
    %v3575 = vadd.f32 %v3571, %v3574
    %vm3576 = vweird.f32 %v3570
    %vm3577 = vweird.f32 %v3571
    %vm3578 = vmor %vm3576, %vm3577
    %v3579 = vsel %vm3578, %v3571, %v3575
    %v3580 = vand.u32 2147483647, %v3570
    %vm3581 = vcmp.eq.f32.partialorder %v3580, 8.507059e+37
    %v3582 = vand.u32 %v3570, 2147483648
    %v3583 = vor.u32 1.1754944e-38, %v3582
    %v3584 = vsel %vm3581, %v3583, %v3579
    %v3585 = vmul.f32 1.0, %v3584
    %v3586 = vsub.f32 0.0, %v3564
    %v3587 = vmul.f32 %v3586, 1.442695
    %v3588 = vpow.pop %v3587
    %v3589 = vadd.f32 %v3588, 1.0
    %v3590 = vrcp.pop %v3589
    %v3591 = vmul.f32 %v3589, %v3590
    %v3592 = vsub.f32 1.0, %v3591
    %v3593 = vmul.f32 %v3590, %v3592
    %v3594 = vadd.f32 %v3590, %v3593
    %vm3595 = vweird.f32 %v3589
    %vm3596 = vweird.f32 %v3590
    %vm3597 = vmor %vm3595, %vm3596
    %v3598 = vsel %vm3597, %v3590, %v3594
    %v3599 = vand.u32 2147483647, %v3589
    %vm3600 = vcmp.eq.f32.partialorder %v3599, 8.507059e+37
    %v3601 = vand.u32 %v3589, 2147483648
    %v3602 = vor.u32 1.1754944e-38, %v3601
    %v3603 = vsel %vm3600, %v3602, %v3598
    %v3604 = vmul.f32 1.0, %v3603
    %v3605 = vtanh.pop %v3565
    %v3606 = vsub.f32 0.0, %v3566
    %v3607 = vmul.f32 %v3606, 1.442695
    %v3608 = vpow.pop %v3607
    %v3609 = vadd.f32 %v3608, 1.0
    %v3610 = vrcp.pop %v3609
    %v3611 = vmul.f32 %v3609, %v3610
    %v3612 = vsub.f32 1.0, %v3611
    %v3613 = vmul.f32 %v3610, %v3612
    %v3614 = vadd.f32 %v3610, %v3613
    %vm3615 = vweird.f32 %v3609
    %vm3616 = vweird.f32 %v3610
    %vm3617 = vmor %vm3615, %vm3616
    %v3618 = vsel %vm3617, %v3610, %v3614
    %v3619 = vand.u32 2147483647, %v3609
    %vm3620 = vcmp.eq.f32.partialorder %v3619, 8.507059e+37
    %v3621 = vand.u32 %v3609, 2147483648
    %v3622 = vor.u32 1.1754944e-38, %v3621
    %v3623 = vsel %vm3620, %v3622, %v3618
    %v3624 = vmul.f32 1.0, %v3623
    %v3625 = vld [vmem:[%s3] sm:$0x3]
    %v3626 = vmul.f32 %v3604, %v3625
    %v3627 = vmul.f32 %v3585, %v3605
    %v3628 = vadd.f32 %v3626, %v3627
    %v3629 = vtanh.pop %v3628
    %v3630 = vmul.f32 %v3624, %v3629
    %v3631 = vld [vmem:[%s24] sm:$0xff]
    %v3632 = vld [vmem:[%s24 + $0x8] sm:$0xff]
    %v3633 = vld [vmem:[%s24 + $0x10] sm:$0xff]
    %v3634 = vld [vmem:[%s24 + $0x18] sm:$0xff]
    %v3635 = vld [vmem:[%s24 + $0x20] sm:$0xff]
    %v3636 = vld [vmem:[%s24 + $0x28] sm:$0xff]
    %v3637 = vld [vmem:[%s24 + $0x30] sm:$0xff]
    %v3638 = vld [vmem:[%s24 + $0x38] sm:$0xff]
    %v3639 = vld [vmem:[%s24 + $0x40] sm:$0xff]
    %v3640 = vld [vmem:[%s24 + $0x48] sm:$0xff]
    %v3641 = vld [vmem:[%s24 + $0x50] sm:$0xff]
    %v3642 = vld [vmem:[%s24 + $0x58] sm:$0xff]
    %v3643 = vld [vmem:[%s24 + $0x60] sm:$0xff]
    %v3644 = vld [vmem:[%s24 + $0x68] sm:$0xff]
    %v3645 = vld [vmem:[%s24 + $0x70] sm:$0xff]
    %v3646 = vld [vmem:[%s24 + $0x78] sm:$0xff]
    %v3647 = vld [vmem:[%s25] sm:$0x1]
    %v3649 = vperm.slane %v3647, 0
    %3651 = vmatpush.msra.mxu0 %v3646
    %3652 = vmatpush.msra.mxu0 %v3645
    %3653 = vmatpush.msra.mxu0 %v3644
    %3654 = vmatpush.msra.mxu0 %v3643
    %3655 = vmatpush.msra.mxu0 %v3642
    %3656 = vmatpush.msra.mxu0 %v3641
    %3657 = vmatpush.msra.mxu0 %v3640
    %3658 = vmatpush.msra.mxu0 %v3639
    %3659 = vmatpush.msra.mxu0 %v3638
    %3660 = vmatpush.msra.mxu0 %v3637
    %3661 = vmatpush.msra.mxu0 %v3636
    %3662 = vmatpush.msra.mxu0 %v3635
    %3663 = vmatpush.msra.mxu0 %v3634
    %3664 = vmatpush.msra.mxu0 %v3633
    %3665 = vmatpush.msra.mxu0 %v3632
    %3666 = vmatpush.msra.mxu0 %v3631
    %3667 = vmatmul.f32.gmra.mxu0 %v3630
    %v3668 = vpop.f32.mrf.mxu0
    %v3669 = vadd.f32 %v3649, %v3668
    %3670 = vdwg.mxu0
    %vm3671 = vcmask 58368
    %3672 = vst.msk [vmem:[#allocation2] sm:$0x3] %vm3671, %v3669
    %3673 = vst [vmem:[#allocation4] sm:$0x3] %v3630
    %3674 = vst [vmem:[#allocation6] sm:$0x3] %v3628
    // Predicated region
    $region106: #{tpu_custom_call.1} parent=1 // pred_check
      _
    $region107: #{tpu_custom_call.1} parent=1 // pred_check_branch
      %3676 = sbr.rel (0) target = $region109
    $region108: #{tpu_custom_call.1} parent=1 // pred_region
      %3678 = vsyncadd [#allocation3], 0
      %s3680 = sshll.u32 [#allocation2], 4
      %s3681 = int_to_ptr.vmem [resolvable:$true] %s3680
      %s3682 = sshll.u32 %s26, 4
      %s3683 = int_to_ptr.hbm [resolvable:$true] %s3682
      %3685 = dma.vmem_to_hbm [thread:$0]  %s3681, 32, %s3683, [#allocation3]
    $region109: #{tpu_custom_call.1} parent=1 // pred_fallthru
      _
    // Predicated region
    $region110: #{tpu_custom_call.1} parent=1 // pred_check
      _
    $region111: #{tpu_custom_call.1} parent=1 // pred_check_branch
      %3687 = sbr.rel (0) target = $region113
    $region112: #{tpu_custom_call.1} parent=1 // pred_region
      %3689 = vsyncadd [#allocation5], 0
      %s3691 = sshll.u32 [#allocation4], 4
      %s3692 = int_to_ptr.vmem [resolvable:$true] %s3691
      %s3693 = sshll.u32 %s27, 4
      %s3694 = int_to_ptr.hbm [resolvable:$true] %s3693
      %3696 = dma.vmem_to_hbm [thread:$0]  %s3692, 32, %s3694, [#allocation5]
    $region113: #{tpu_custom_call.1} parent=1 // pred_fallthru
      _
    // Predicated region
    $region114: #{tpu_custom_call.1} parent=1 // pred_check
      _
    $region115: #{tpu_custom_call.1} parent=1 // pred_check_branch
      %3698 = sbr.rel (0) target = $region117
    $region116: #{tpu_custom_call.1} parent=1 // pred_region
      %3700 = vsyncadd [#allocation5], 0
      %s3702 = sshll.u32 [#allocation6], 4
      %s3703 = int_to_ptr.vmem [resolvable:$true] %s3702
      %s3704 = sshll.u32 %s28, 4
      %s3705 = int_to_ptr.hbm [resolvable:$true] %s3704
      %3707 = dma.vmem_to_hbm [thread:$0]  %s3703, 32, %s3705, [#allocation5]
    $region117: #{tpu_custom_call.1} parent=1 // pred_fallthru
      _
    // Predicated region
    $region118: #{tpu_custom_call.1} parent=1 // pred_check
      _
    $region119: #{tpu_custom_call.1} parent=1 // pred_check_branch
      %3709 = sbr.rel (0) target = $region121
    $region120: #{tpu_custom_call.1} parent=1 // pred_region
      %3711 = dma.done [#allocation3], 32
    $region121: #{tpu_custom_call.1} parent=1 // pred_fallthru
      _
    // Predicated region
    $region122: #{tpu_custom_call.1} parent=1 // pred_check
      _
    $region123: #{tpu_custom_call.1} parent=1 // pred_check_branch
      %3713 = sbr.rel (0) target = $region125
    $region124: #{tpu_custom_call.1} parent=1 // pred_region
      %3715 = dma.done [#allocation5], 32
    $region125: #{tpu_custom_call.1} parent=1 // pred_fallthru
      _
    // Predicated region
    $region126: #{tpu_custom_call.1} parent=1 // pred_check
      _
    $region127: #{tpu_custom_call.1} parent=1 // pred_check_branch
      %3717 = sbr.rel (0) target = $region129
    $region128: #{tpu_custom_call.1} parent=1 // pred_region
      %3719 = dma.done [#allocation5], 32
    $region129: #{tpu_custom_call.1} parent=1 // pred_fallthru
      _
    %3720 = vsyncpa [#allocation3], 1
    %3721 = vsyncpa [#allocation5], 1

</llo_original>
